<compile_context>
chip_gen: v7x
topology: tpu7x:2x2x1
jax: 0.10.0
libtpu: 0.0.40
codegen_flags: <defaults>
</compile_context>

<pallas_src>
import math
from functools import partial

import jax
import jax.numpy as jnp
from jax.experimental import pallas as pl
from jax.experimental.pallas import tpu as pltpu

NUM_HEADS = 2
N_MECATT_INSIDE = 2
KH, KW = 3, 7            # Conv2d kernel_size=(3, 7), padding='same', 1->1 channel
BN_EPS = 1e-5


# ---------------------------------------------------------------------------
# Single fused kernel.
#
#   x_ref     : (B, C*T*V)             f32  VMEM  (row-major, lane order (c,t,v))
#   convw_ref : (n_heads*KH*KW,)       f32  SMEM
#   convb_ref : (n_heads,)             f32  SMEM
#   gamma_ref : (n_heads,)             f32  SMEM
#   beta_ref  : (n_heads,)             f32  SMEM
#   projw_ref : (n_heads*C*T*V, C*T*V) bf16 VMEM  (rows permuted to (h,c,t,v))
#   projb_ref : (1, C*T*V)             f32  VMEM
#   out_ref   : (B, C*T*V)             f32  VMEM
# ---------------------------------------------------------------------------
def _fused_kernel(x_ref, convw_ref, convb_ref, gamma_ref, beta_ref,
                  projw_ref, projb_ref, out_ref, *, C, T, V, n_heads, n_inside):
    B = x_ref.shape[0]
    TV = T * V
    CTV = C * TV
    CB = C * B
    pad_v = KW // 2
    n_double = int(math.log2(T))          # T asserted power of two in wrapper

    # Hoisted constants (JAX does not CSE broadcasts inside unrolled loops).
    zero_rep = jnp.zeros((CB, TV - V), jnp.float32)
    zero_lane = jnp.zeros((CB, pad_v), jnp.float32)
    zero_row = jnp.zeros((B, V + 2 * pad_v), jnp.float32)

    x_flat = x_ref[...]                                      # (B, CTV) f32

    for _ in range(n_inside):                                # static unroll (2)
        # ---- c-major slab: row (c,b), lanes (t,v).  Built from 128-lane-
        #      aligned slices -> cheap vreg-granular copies. -----------------
        slab = jnp.concatenate(
            [x_flat[:, c * TV:(c + 1) * TV] for c in range(C)], axis=0)  # (CB, TV)

        # ---- max over T: log-tree of XLU rolls on the TV lane axis.  The
        #      rolls wrap inside each row, so lanes [0, V) hold the max over
        #      all T regardless of roll direction. ---------------------------
        m = slab
        sh = V
        for _ in range(n_double):
            m = jnp.maximum(m, pltpu.roll(m, shift=sh, axis=1))
            sh *= 2
        x_max = m[:, :V]                                     # (CB, V)

        # ---- zero 'same' padding for the (3,7) conv.  The conv's c-shifts
        #      are row shifts by B (rows are c-major), so padding one c on
        #      each side is just B zero rows top and bottom. -----------------
        xm_l = jnp.concatenate([zero_lane, x_max, zero_lane], axis=1)
        xp = jnp.concatenate([zero_row, xm_l, zero_row], axis=0)  # ((C+2)*B, V+6)

        # ---- 21-tap conv on the VPU; each tap slice is shared by all heads -
        accs = [None] * n_heads
        for kh in range(KH):
            for kw in range(KW):
                xs = xp[kh * B: kh * B + CB, kw: kw + V]     # (CB, V)
                for h in range(n_heads):
                    w = convw_ref[h * KH * KW + kh * KW + kw]
                    accs[h] = w * xs if accs[h] is None else accs[h] + w * xs

        x_new = None
        for h in range(n_heads):                             # static unroll (2)
            acc = accs[h] + convb_ref[h]
            # BatchNorm2d, training mode (fresh module => batch statistics),
            # single output channel => stats over every element, biased var.
            mean = jnp.mean(acc)
            var = jnp.mean((acc - mean) ** 2)
            xn = (acc - mean) * jax.lax.rsqrt(var + BN_EPS)
            att = jax.nn.sigmoid(gamma_ref[h] * xn + beta_ref[h])   # (CB, V)

            # ---- broadcast att over T with log2(T) roll-doublings (each lane
            #      receives exactly one copy, direction-independent). --------
            rep = jnp.concatenate([att, zero_rep], axis=1)   # (CB, TV)
            sh = V
            for _ in range(n_double):
                rep = rep + pltpu.roll(rep, shift=sh, axis=1)
                sh *= 2

            head = rep * slab                                # (CB, TV) f32

            # ---- projection: per-(h, c) weight blocks, MXU bf16 with f32
            #      accumulation.  LHS blocks are contiguous row slices, so no
            #      head/lane concatenation is ever materialized. -------------
            for c in range(C):
                lhs = head[c * B:(c + 1) * B, :].astype(jnp.bfloat16)  # (B, TV)
                blk = (h * C + c) * TV
                part = jnp.dot(lhs, projw_ref[blk: blk + TV, :],
                               preferred_element_type=jnp.float32)     # (B, CTV)
                x_new = part if x_new is None else x_new + part

        x_flat = x_new + projb_ref[...]                      # (B, CTV) f32

    out_ref[...] = x_flat                                    # lane-dense store


# ---------------------------------------------------------------------------
# One-time parameter preparation (hoisted out of the per-call jitted path):
# permute the projection-weight rows from the torch flatten order (h, t, c, v)
# to the kernel's (h, c, t, v) lane order and cast to bf16.
# ---------------------------------------------------------------------------
def prepare_params(params, C, T, V):
    conv_w, conv_b, bn_gamma, bn_beta, proj_w, proj_b = params
    H = conv_w.shape[0]
    CTV = C * T * V
    w = jnp.transpose(proj_w)                                  # (H*T*C*V, CTV)
    w = w.reshape(H, T, C, V, CTV).transpose(0, 2, 1, 3, 4)    # (H, C, T, V, CTV)
    w = w.reshape(H * CTV, CTV).astype(jnp.bfloat16)           # rows (h, c, t, v)
    return (conv_w.reshape(-1).astype(jnp.float32),
            conv_b.astype(jnp.float32),
            bn_gamma.astype(jnp.float32),
            bn_beta.astype(jnp.float32),
            w,
            proj_b.reshape(1, CTV).astype(jnp.float32))


@partial(jax.jit, static_argnums=(2,))
def _forward(x, prepared, n_inside):
    convw, convb, gamma, beta, projw, projb = prepared
    B, C, T, V = x.shape
    CTV = C * T * V
    kernel = partial(_fused_kernel, C=C, T=T, V=V,
                     n_heads=convb.shape[0], n_inside=n_inside)

    out_flat = pl.pallas_call(
        kernel,
        out_shape=jax.ShapeDtypeStruct((B, CTV), jnp.float32),
        in_specs=[
            pl.BlockSpec(memory_space=pltpu.MemorySpace.VMEM),   # x (B, CTV)
            pl.BlockSpec(memory_space=pltpu.MemorySpace.SMEM),   # conv weights
            pl.BlockSpec(memory_space=pltpu.MemorySpace.SMEM),   # conv bias
            pl.BlockSpec(memory_space=pltpu.MemorySpace.SMEM),   # bn gamma
            pl.BlockSpec(memory_space=pltpu.MemorySpace.SMEM),   # bn beta
            pl.BlockSpec(memory_space=pltpu.MemorySpace.VMEM),   # proj weight bf16
            pl.BlockSpec(memory_space=pltpu.MemorySpace.VMEM),   # proj bias
        ],
        out_specs=pl.BlockSpec(memory_space=pltpu.MemorySpace.VMEM),
    )(x.reshape(B, CTV), convw, convb, gamma, beta, projw, projb)

    return out_flat.reshape(B, C, T, V)


def multi_head_attention(x, prepared, n_inside=N_MECATT_INSIDE):
    T = x.shape[2]
    assert T & (T - 1) == 0, "T must be a power of two for the roll-based reduction"
    return _forward(x, prepared, n_inside)


# ---------------------------------------------------------------------------
# Pure-JAX reference (mirrors the PyTorch forward, full f32) for verification.
# ---------------------------------------------------------------------------
def multi_head_attention_reference(x, params, n_inside=N_MECATT_INSIDE):
    conv_w, conv_b, bn_gamma, bn_beta, proj_w, proj_b = params
    B, C, T, V = x.shape
    H = conv_w.shape[0]
    for _ in range(n_inside):
        heads = []
        for h in range(H):
            x_perm = jnp.transpose(x, (0, 2, 1, 3))                 # (B,T,C,V)
            x_max = jnp.max(x_perm, axis=1, keepdims=True)          # (B,1,C,V)
            w = conv_w[h].reshape(1, 1, KH, KW)
            conv = jax.lax.conv_general_dilated(
                x_max, w, window_strides=(1, 1),
                padding=((KH // 2, KH // 2), (KW // 2, KW // 2)),
                dimension_numbers=("NCHW", "OIHW", "NCHW")) + conv_b[h]
            mean = jnp.mean(conv)
            var = jnp.mean((conv - mean) ** 2)
            bn = bn_gamma[h] * (conv - mean) / jnp.sqrt(var + BN_EPS) + bn_beta[h]
            att = jax.nn.sigmoid(bn)
            heads.append(att * x_perm)                              # (B,T,C,V)
        cat = jnp.concatenate(heads, axis=1)                        # (B,H*T,C,V)
        proj = cat.reshape(B, -1) @ proj_w.T + proj_b
        x = proj.reshape(B, C, T, V)
    return x


def init_params(key, C, T, V, num_heads=NUM_HEADS):
    k1, k2, k3, k4 = jax.random.split(key, 4)
    b_conv = 1.0 / math.sqrt(1 * KH * KW)
    conv_w = jax.random.uniform(k1, (num_heads, KH * KW), jnp.float32,
                                minval=-b_conv, maxval=b_conv)
    conv_b = jax.random.uniform(k2, (num_heads,), jnp.float32,
                                minval=-b_conv, maxval=b_conv)
    bn_gamma = jnp.ones((num_heads,), jnp.float32)    # PyTorch BN init
    bn_beta = jnp.zeros((num_heads,), jnp.float32)
    in_feat = num_heads * C * T * V
    b_lin = 1.0 / math.sqrt(in_feat)
    proj_w = jax.random.uniform(k3, (C * T * V, in_feat), jnp.float32,
                                minval=-b_lin, maxval=b_lin)
    proj_b = jax.random.uniform(k4, (C * T * V,), jnp.float32,
                                minval=-b_lin, maxval=b_lin)
    return conv_w, conv_b, bn_gamma, bn_beta, proj_w, proj_b


if __name__ == "__main__":
    B, C, T, V = 2, 4, 8, 16
    key = jax.random.PRNGKey(0)
    kx, kp = jax.random.split(key)
    x = jax.random.normal(kx, (B, C, T, V), dtype=jnp.float32)
    params = init_params(kp, C, T, V)
    prepared = prepare_params(params, C, T, V)     # once, outside the hot path

    out = jax.block_until_ready(multi_head_attention(x, prepared))
    ref = jax.block_until_ready(multi_head_attention_reference(x, params))

    assert out.shape == x.shape
    assert bool(jnp.all(jnp.isfinite(out)))
    err = float(jnp.max(jnp.abs(out - ref)))
    # loose tolerance: the projection runs in bf16 (f32 accumulation) on-chip
    assert err < 5e-2, f"mismatch vs reference: {err}"
    print("KERNEL_OK")
</pallas_src>

<mosaic_0001>
module attributes {stable_mosaic.version = 11 : i64} {
  func.func @_fused_kernel(%arg0: memref<2x512xf32, #tpu.memory_space<vmem>>, %arg1: memref<42xf32, #tpu.memory_space<smem>>, %arg2: memref<2xf32, #tpu.memory_space<smem>>, %arg3: memref<2xf32, #tpu.memory_space<smem>>, %arg4: memref<2xf32, #tpu.memory_space<smem>>, %arg5: memref<1024x512xbf16, #tpu.memory_space<vmem>>, %arg6: memref<1x512xf32, #tpu.memory_space<vmem>>, %arg7: memref<2x512xf32, #tpu.memory_space<vmem>>) attributes {dimension_semantics = [], scalar_prefetch = 0 : i64, scratch_operands = 0 : i64, tpu.core_type = #tpu.core_type<tc>} {
    %cst = arith.constant 0.000000e+00 : f32
    %0 = vector.broadcast %cst : f32 to vector<8x112xf32>
    %cst_0 = arith.constant 0.000000e+00 : f32
    %1 = vector.broadcast %cst_0 : f32 to vector<8x3xf32>
    %cst_1 = arith.constant 0.000000e+00 : f32
    %2 = vector.broadcast %cst_1 : f32 to vector<2x22xf32>
    %c0 = arith.constant 0 : index
    %c0_2 = arith.constant 0 : index
    %3 = vector.load %arg0[%c0, %c0_2] : memref<2x512xf32, #tpu.memory_space<vmem>>, vector<2x512xf32>
    %4 = vector.extract_strided_slice %3 {offsets = [0, 0], sizes = [2, 128], strides = [1, 1]} : vector<2x512xf32> to vector<2x128xf32>
    %5 = vector.extract_strided_slice %3 {offsets = [0, 128], sizes = [2, 128], strides = [1, 1]} : vector<2x512xf32> to vector<2x128xf32>
    %6 = vector.extract_strided_slice %3 {offsets = [0, 256], sizes = [2, 128], strides = [1, 1]} : vector<2x512xf32> to vector<2x128xf32>
    %7 = vector.extract_strided_slice %3 {offsets = [0, 384], sizes = [2, 128], strides = [1, 1]} : vector<2x512xf32> to vector<2x128xf32>
    %8 = tpu.concatenate %4, %5, %6, %7 in 0 : vector<2x128xf32>, vector<2x128xf32>, vector<2x128xf32>, vector<2x128xf32> -> vector<8x128xf32>
    %c16_i32 = arith.constant 16 : i32
    %9 = tpu.dynamic_rotate %8 by %c16_i32 dim 1 : vector<8x128xf32>, i32 -> vector<8x128xf32>
    %10 = arith.maximumf %8, %9 : vector<8x128xf32>
    %c32_i32 = arith.constant 32 : i32
    %11 = tpu.dynamic_rotate %10 by %c32_i32 dim 1 : vector<8x128xf32>, i32 -> vector<8x128xf32>
    %12 = arith.maximumf %10, %11 : vector<8x128xf32>
    %c64_i32 = arith.constant 64 : i32
    %13 = tpu.dynamic_rotate %12 by %c64_i32 dim 1 : vector<8x128xf32>, i32 -> vector<8x128xf32>
    %14 = arith.maximumf %12, %13 : vector<8x128xf32>
    %15 = vector.extract_strided_slice %14 {offsets = [0, 0], sizes = [8, 16], strides = [1, 1]} : vector<8x128xf32> to vector<8x16xf32>
    %16 = tpu.concatenate %1, %15, %1 in 1 : vector<8x3xf32>, vector<8x16xf32>, vector<8x3xf32> -> vector<8x22xf32>
    %17 = tpu.concatenate %2, %16, %2 in 0 : vector<2x22xf32>, vector<8x22xf32>, vector<2x22xf32> -> vector<12x22xf32>
    %18 = vector.extract_strided_slice %17 {offsets = [0, 0], sizes = [8, 16], strides = [1, 1]} : vector<12x22xf32> to vector<8x16xf32>
    %c0_3 = arith.constant 0 : index
    %19 = memref.load %arg1[%c0_3] : memref<42xf32, #tpu.memory_space<smem>>
    %20 = vector.broadcast %19 : f32 to vector<8x16xf32>
    %21 = arith.mulf %20, %18 : vector<8x16xf32>
    %c21 = arith.constant 21 : index
    %22 = memref.load %arg1[%c21] : memref<42xf32, #tpu.memory_space<smem>>
    %23 = vector.broadcast %22 : f32 to vector<8x16xf32>
    %24 = arith.mulf %23, %18 : vector<8x16xf32>
    %25 = vector.extract_strided_slice %17 {offsets = [0, 1], sizes = [8, 16], strides = [1, 1]} : vector<12x22xf32> to vector<8x16xf32>
    %c1 = arith.constant 1 : index
    %26 = memref.load %arg1[%c1] : memref<42xf32, #tpu.memory_space<smem>>
    %27 = vector.broadcast %26 : f32 to vector<8x16xf32>
    %28 = arith.mulf %27, %25 : vector<8x16xf32>
    %29 = arith.addf %21, %28 : vector<8x16xf32>
    %c22 = arith.constant 22 : index
    %30 = memref.load %arg1[%c22] : memref<42xf32, #tpu.memory_space<smem>>
    %31 = vector.broadcast %30 : f32 to vector<8x16xf32>
    %32 = arith.mulf %31, %25 : vector<8x16xf32>
    %33 = arith.addf %24, %32 : vector<8x16xf32>
    %34 = vector.extract_strided_slice %17 {offsets = [0, 2], sizes = [8, 16], strides = [1, 1]} : vector<12x22xf32> to vector<8x16xf32>
    %c2 = arith.constant 2 : index
    %35 = memref.load %arg1[%c2] : memref<42xf32, #tpu.memory_space<smem>>
    %36 = vector.broadcast %35 : f32 to vector<8x16xf32>
    %37 = arith.mulf %36, %34 : vector<8x16xf32>
    %38 = arith.addf %29, %37 : vector<8x16xf32>
    %c23 = arith.constant 23 : index
    %39 = memref.load %arg1[%c23] : memref<42xf32, #tpu.memory_space<smem>>
    %40 = vector.broadcast %39 : f32 to vector<8x16xf32>
    %41 = arith.mulf %40, %34 : vector<8x16xf32>
    %42 = arith.addf %33, %41 : vector<8x16xf32>
    %43 = vector.extract_strided_slice %17 {offsets = [0, 3], sizes = [8, 16], strides = [1, 1]} : vector<12x22xf32> to vector<8x16xf32>
    %c3 = arith.constant 3 : index
    %44 = memref.load %arg1[%c3] : memref<42xf32, #tpu.memory_space<smem>>
    %45 = vector.broadcast %44 : f32 to vector<8x16xf32>
    %46 = arith.mulf %45, %43 : vector<8x16xf32>
    %47 = arith.addf %38, %46 : vector<8x16xf32>
    %c24 = arith.constant 24 : index
    %48 = memref.load %arg1[%c24] : memref<42xf32, #tpu.memory_space<smem>>
    %49 = vector.broadcast %48 : f32 to vector<8x16xf32>
    %50 = arith.mulf %49, %43 : vector<8x16xf32>
    %51 = arith.addf %42, %50 : vector<8x16xf32>
    %52 = vector.extract_strided_slice %17 {offsets = [0, 4], sizes = [8, 16], strides = [1, 1]} : vector<12x22xf32> to vector<8x16xf32>
    %c4 = arith.constant 4 : index
    %53 = memref.load %arg1[%c4] : memref<42xf32, #tpu.memory_space<smem>>
    %54 = vector.broadcast %53 : f32 to vector<8x16xf32>
    %55 = arith.mulf %54, %52 : vector<8x16xf32>
    %56 = arith.addf %47, %55 : vector<8x16xf32>
    %c25 = arith.constant 25 : index
    %57 = memref.load %arg1[%c25] : memref<42xf32, #tpu.memory_space<smem>>
    %58 = vector.broadcast %57 : f32 to vector<8x16xf32>
    %59 = arith.mulf %58, %52 : vector<8x16xf32>
    %60 = arith.addf %51, %59 : vector<8x16xf32>
    %61 = vector.extract_strided_slice %17 {offsets = [0, 5], sizes = [8, 16], strides = [1, 1]} : vector<12x22xf32> to vector<8x16xf32>
    %c5 = arith.constant 5 : index
    %62 = memref.load %arg1[%c5] : memref<42xf32, #tpu.memory_space<smem>>
    %63 = vector.broadcast %62 : f32 to vector<8x16xf32>
    %64 = arith.mulf %63, %61 : vector<8x16xf32>
    %65 = arith.addf %56, %64 : vector<8x16xf32>
    %c26 = arith.constant 26 : index
    %66 = memref.load %arg1[%c26] : memref<42xf32, #tpu.memory_space<smem>>
    %67 = vector.broadcast %66 : f32 to vector<8x16xf32>
    %68 = arith.mulf %67, %61 : vector<8x16xf32>
    %69 = arith.addf %60, %68 : vector<8x16xf32>
    %70 = vector.extract_strided_slice %17 {offsets = [0, 6], sizes = [8, 16], strides = [1, 1]} : vector<12x22xf32> to vector<8x16xf32>
    %c6 = arith.constant 6 : index
    %71 = memref.load %arg1[%c6] : memref<42xf32, #tpu.memory_space<smem>>
    %72 = vector.broadcast %71 : f32 to vector<8x16xf32>
    %73 = arith.mulf %72, %70 : vector<8x16xf32>
    %74 = arith.addf %65, %73 : vector<8x16xf32>
    %c27 = arith.constant 27 : index
    %75 = memref.load %arg1[%c27] : memref<42xf32, #tpu.memory_space<smem>>
    %76 = vector.broadcast %75 : f32 to vector<8x16xf32>
    %77 = arith.mulf %76, %70 : vector<8x16xf32>
    %78 = arith.addf %69, %77 : vector<8x16xf32>
    %79 = vector.extract_strided_slice %17 {offsets = [2, 0], sizes = [8, 16], strides = [1, 1]} : vector<12x22xf32> to vector<8x16xf32>
    %c7 = arith.constant 7 : index
    %80 = memref.load %arg1[%c7] : memref<42xf32, #tpu.memory_space<smem>>
    %81 = vector.broadcast %80 : f32 to vector<8x16xf32>
    %82 = arith.mulf %81, %79 : vector<8x16xf32>
    %83 = arith.addf %74, %82 : vector<8x16xf32>
    %c28 = arith.constant 28 : index
    %84 = memref.load %arg1[%c28] : memref<42xf32, #tpu.memory_space<smem>>
    %85 = vector.broadcast %84 : f32 to vector<8x16xf32>
    %86 = arith.mulf %85, %79 : vector<8x16xf32>
    %87 = arith.addf %78, %86 : vector<8x16xf32>
    %88 = vector.extract_strided_slice %17 {offsets = [2, 1], sizes = [8, 16], strides = [1, 1]} : vector<12x22xf32> to vector<8x16xf32>
    %c8 = arith.constant 8 : index
    %89 = memref.load %arg1[%c8] : memref<42xf32, #tpu.memory_space<smem>>
    %90 = vector.broadcast %89 : f32 to vector<8x16xf32>
    %91 = arith.mulf %90, %88 : vector<8x16xf32>
    %92 = arith.addf %83, %91 : vector<8x16xf32>
    %c29 = arith.constant 29 : index
    %93 = memref.load %arg1[%c29] : memref<42xf32, #tpu.memory_space<smem>>
    %94 = vector.broadcast %93 : f32 to vector<8x16xf32>
    %95 = arith.mulf %94, %88 : vector<8x16xf32>
    %96 = arith.addf %87, %95 : vector<8x16xf32>
    %97 = vector.extract_strided_slice %17 {offsets = [2, 2], sizes = [8, 16], strides = [1, 1]} : vector<12x22xf32> to vector<8x16xf32>
    %c9 = arith.constant 9 : index
    %98 = memref.load %arg1[%c9] : memref<42xf32, #tpu.memory_space<smem>>
    %99 = vector.broadcast %98 : f32 to vector<8x16xf32>
    %100 = arith.mulf %99, %97 : vector<8x16xf32>
    %101 = arith.addf %92, %100 : vector<8x16xf32>
    %c30 = arith.constant 30 : index
    %102 = memref.load %arg1[%c30] : memref<42xf32, #tpu.memory_space<smem>>
    %103 = vector.broadcast %102 : f32 to vector<8x16xf32>
    %104 = arith.mulf %103, %97 : vector<8x16xf32>
    %105 = arith.addf %96, %104 : vector<8x16xf32>
    %106 = vector.extract_strided_slice %17 {offsets = [2, 3], sizes = [8, 16], strides = [1, 1]} : vector<12x22xf32> to vector<8x16xf32>
    %c10 = arith.constant 10 : index
    %107 = memref.load %arg1[%c10] : memref<42xf32, #tpu.memory_space<smem>>
    %108 = vector.broadcast %107 : f32 to vector<8x16xf32>
    %109 = arith.mulf %108, %106 : vector<8x16xf32>
    %110 = arith.addf %101, %109 : vector<8x16xf32>
    %c31 = arith.constant 31 : index
    %111 = memref.load %arg1[%c31] : memref<42xf32, #tpu.memory_space<smem>>
    %112 = vector.broadcast %111 : f32 to vector<8x16xf32>
    %113 = arith.mulf %112, %106 : vector<8x16xf32>
    %114 = arith.addf %105, %113 : vector<8x16xf32>
    %115 = vector.extract_strided_slice %17 {offsets = [2, 4], sizes = [8, 16], strides = [1, 1]} : vector<12x22xf32> to vector<8x16xf32>
    %c11 = arith.constant 11 : index
    %116 = memref.load %arg1[%c11] : memref<42xf32, #tpu.memory_space<smem>>
    %117 = vector.broadcast %116 : f32 to vector<8x16xf32>
    %118 = arith.mulf %117, %115 : vector<8x16xf32>
    %119 = arith.addf %110, %118 : vector<8x16xf32>
    %c32 = arith.constant 32 : index
    %120 = memref.load %arg1[%c32] : memref<42xf32, #tpu.memory_space<smem>>
    %121 = vector.broadcast %120 : f32 to vector<8x16xf32>
    %122 = arith.mulf %121, %115 : vector<8x16xf32>
    %123 = arith.addf %114, %122 : vector<8x16xf32>
    %124 = vector.extract_strided_slice %17 {offsets = [2, 5], sizes = [8, 16], strides = [1, 1]} : vector<12x22xf32> to vector<8x16xf32>
    %c12 = arith.constant 12 : index
    %125 = memref.load %arg1[%c12] : memref<42xf32, #tpu.memory_space<smem>>
    %126 = vector.broadcast %125 : f32 to vector<8x16xf32>
    %127 = arith.mulf %126, %124 : vector<8x16xf32>
    %128 = arith.addf %119, %127 : vector<8x16xf32>
    %c33 = arith.constant 33 : index
    %129 = memref.load %arg1[%c33] : memref<42xf32, #tpu.memory_space<smem>>
    %130 = vector.broadcast %129 : f32 to vector<8x16xf32>
    %131 = arith.mulf %130, %124 : vector<8x16xf32>
    %132 = arith.addf %123, %131 : vector<8x16xf32>
    %133 = vector.extract_strided_slice %17 {offsets = [2, 6], sizes = [8, 16], strides = [1, 1]} : vector<12x22xf32> to vector<8x16xf32>
    %c13 = arith.constant 13 : index
    %134 = memref.load %arg1[%c13] : memref<42xf32, #tpu.memory_space<smem>>
    %135 = vector.broadcast %134 : f32 to vector<8x16xf32>
    %136 = arith.mulf %135, %133 : vector<8x16xf32>
    %137 = arith.addf %128, %136 : vector<8x16xf32>
    %c34 = arith.constant 34 : index
    %138 = memref.load %arg1[%c34] : memref<42xf32, #tpu.memory_space<smem>>
    %139 = vector.broadcast %138 : f32 to vector<8x16xf32>
    %140 = arith.mulf %139, %133 : vector<8x16xf32>
    %141 = arith.addf %132, %140 : vector<8x16xf32>
    %142 = vector.extract_strided_slice %17 {offsets = [4, 0], sizes = [8, 16], strides = [1, 1]} : vector<12x22xf32> to vector<8x16xf32>
    %c14 = arith.constant 14 : index
    %143 = memref.load %arg1[%c14] : memref<42xf32, #tpu.memory_space<smem>>
    %144 = vector.broadcast %143 : f32 to vector<8x16xf32>
    %145 = arith.mulf %144, %142 : vector<8x16xf32>
    %146 = arith.addf %137, %145 : vector<8x16xf32>
    %c35 = arith.constant 35 : index
    %147 = memref.load %arg1[%c35] : memref<42xf32, #tpu.memory_space<smem>>
    %148 = vector.broadcast %147 : f32 to vector<8x16xf32>
    %149 = arith.mulf %148, %142 : vector<8x16xf32>
    %150 = arith.addf %141, %149 : vector<8x16xf32>
    %151 = vector.extract_strided_slice %17 {offsets = [4, 1], sizes = [8, 16], strides = [1, 1]} : vector<12x22xf32> to vector<8x16xf32>
    %c15 = arith.constant 15 : index
    %152 = memref.load %arg1[%c15] : memref<42xf32, #tpu.memory_space<smem>>
    %153 = vector.broadcast %152 : f32 to vector<8x16xf32>
    %154 = arith.mulf %153, %151 : vector<8x16xf32>
    %155 = arith.addf %146, %154 : vector<8x16xf32>
    %c36 = arith.constant 36 : index
    %156 = memref.load %arg1[%c36] : memref<42xf32, #tpu.memory_space<smem>>
    %157 = vector.broadcast %156 : f32 to vector<8x16xf32>
    %158 = arith.mulf %157, %151 : vector<8x16xf32>
    %159 = arith.addf %150, %158 : vector<8x16xf32>
    %160 = vector.extract_strided_slice %17 {offsets = [4, 2], sizes = [8, 16], strides = [1, 1]} : vector<12x22xf32> to vector<8x16xf32>
    %c16 = arith.constant 16 : index
    %161 = memref.load %arg1[%c16] : memref<42xf32, #tpu.memory_space<smem>>
    %162 = vector.broadcast %161 : f32 to vector<8x16xf32>
    %163 = arith.mulf %162, %160 : vector<8x16xf32>
    %164 = arith.addf %155, %163 : vector<8x16xf32>
    %c37 = arith.constant 37 : index
    %165 = memref.load %arg1[%c37] : memref<42xf32, #tpu.memory_space<smem>>
    %166 = vector.broadcast %165 : f32 to vector<8x16xf32>
    %167 = arith.mulf %166, %160 : vector<8x16xf32>
    %168 = arith.addf %159, %167 : vector<8x16xf32>
    %169 = vector.extract_strided_slice %17 {offsets = [4, 3], sizes = [8, 16], strides = [1, 1]} : vector<12x22xf32> to vector<8x16xf32>
    %c17 = arith.constant 17 : index
    %170 = memref.load %arg1[%c17] : memref<42xf32, #tpu.memory_space<smem>>
    %171 = vector.broadcast %170 : f32 to vector<8x16xf32>
    %172 = arith.mulf %171, %169 : vector<8x16xf32>
    %173 = arith.addf %164, %172 : vector<8x16xf32>
    %c38 = arith.constant 38 : index
    %174 = memref.load %arg1[%c38] : memref<42xf32, #tpu.memory_space<smem>>
    %175 = vector.broadcast %174 : f32 to vector<8x16xf32>
    %176 = arith.mulf %175, %169 : vector<8x16xf32>
    %177 = arith.addf %168, %176 : vector<8x16xf32>
    %178 = vector.extract_strided_slice %17 {offsets = [4, 4], sizes = [8, 16], strides = [1, 1]} : vector<12x22xf32> to vector<8x16xf32>
    %c18 = arith.constant 18 : index
    %179 = memref.load %arg1[%c18] : memref<42xf32, #tpu.memory_space<smem>>
    %180 = vector.broadcast %179 : f32 to vector<8x16xf32>
    %181 = arith.mulf %180, %178 : vector<8x16xf32>
    %182 = arith.addf %173, %181 : vector<8x16xf32>
    %c39 = arith.constant 39 : index
    %183 = memref.load %arg1[%c39] : memref<42xf32, #tpu.memory_space<smem>>
    %184 = vector.broadcast %183 : f32 to vector<8x16xf32>
    %185 = arith.mulf %184, %178 : vector<8x16xf32>
    %186 = arith.addf %177, %185 : vector<8x16xf32>
    %187 = vector.extract_strided_slice %17 {offsets = [4, 5], sizes = [8, 16], strides = [1, 1]} : vector<12x22xf32> to vector<8x16xf32>
    %c19 = arith.constant 19 : index
    %188 = memref.load %arg1[%c19] : memref<42xf32, #tpu.memory_space<smem>>
    %189 = vector.broadcast %188 : f32 to vector<8x16xf32>
    %190 = arith.mulf %189, %187 : vector<8x16xf32>
    %191 = arith.addf %182, %190 : vector<8x16xf32>
    %c40 = arith.constant 40 : index
    %192 = memref.load %arg1[%c40] : memref<42xf32, #tpu.memory_space<smem>>
    %193 = vector.broadcast %192 : f32 to vector<8x16xf32>
    %194 = arith.mulf %193, %187 : vector<8x16xf32>
    %195 = arith.addf %186, %194 : vector<8x16xf32>
    %196 = vector.extract_strided_slice %17 {offsets = [4, 6], sizes = [8, 16], strides = [1, 1]} : vector<12x22xf32> to vector<8x16xf32>
    %c20 = arith.constant 20 : index
    %197 = memref.load %arg1[%c20] : memref<42xf32, #tpu.memory_space<smem>>
    %198 = vector.broadcast %197 : f32 to vector<8x16xf32>
    %199 = arith.mulf %198, %196 : vector<8x16xf32>
    %200 = arith.addf %191, %199 : vector<8x16xf32>
    %c41 = arith.constant 41 : index
    %201 = memref.load %arg1[%c41] : memref<42xf32, #tpu.memory_space<smem>>
    %202 = vector.broadcast %201 : f32 to vector<8x16xf32>
    %203 = arith.mulf %202, %196 : vector<8x16xf32>
    %204 = arith.addf %195, %203 : vector<8x16xf32>
    %c0_4 = arith.constant 0 : index
    %205 = memref.load %arg2[%c0_4] : memref<2xf32, #tpu.memory_space<smem>>
    %206 = vector.broadcast %205 : f32 to vector<8x16xf32>
    %207 = arith.addf %200, %206 : vector<8x16xf32>
    %208 = vector.shape_cast %207 : vector<8x16xf32> to vector<1x8x16xf32>
    %cst_5 = arith.constant dense<0.000000e+00> : vector<1xf32>
    %209 = vector.multi_reduction <add>, %208, %cst_5 [1, 2] : vector<1x8x16xf32> to vector<1xf32>
    %210 = vector.shape_cast %209 : vector<1xf32> to vector<1x1x1xf32>
    %211 = vector.extract %210[0, 0, 0] : f32 from vector<1x1x1xf32>
    %cst_6 = arith.constant 1.280000e+02 : f32
    %212 = arith.divf %211, %cst_6 : f32
    %213 = vector.broadcast %212 : f32 to vector<8x16xf32>
    %214 = arith.subf %207, %213 : vector<8x16xf32>
    %215 = arith.mulf %214, %214 : vector<8x16xf32>
    %216 = vector.shape_cast %215 : vector<8x16xf32> to vector<1x8x16xf32>
    %cst_7 = arith.constant dense<0.000000e+00> : vector<1xf32>
    %217 = vector.multi_reduction <add>, %216, %cst_7 [1, 2] : vector<1x8x16xf32> to vector<1xf32>
    %218 = vector.shape_cast %217 : vector<1xf32> to vector<1x1x1xf32>
    %219 = vector.extract %218[0, 0, 0] : f32 from vector<1x1x1xf32>
    %cst_8 = arith.constant 1.280000e+02 : f32
    %220 = arith.divf %219, %cst_8 : f32
    %221 = vector.broadcast %212 : f32 to vector<8x16xf32>
    %222 = arith.subf %207, %221 : vector<8x16xf32>
    %cst_9 = arith.constant 9.99999974E-6 : f32
    %223 = arith.addf %220, %cst_9 : f32
    %224 = math.rsqrt %223 : f32
    %225 = vector.broadcast %224 : f32 to vector<8x16xf32>
    %226 = arith.mulf %222, %225 : vector<8x16xf32>
    %c0_10 = arith.constant 0 : index
    %227 = memref.load %arg3[%c0_10] : memref<2xf32, #tpu.memory_space<smem>>
    %228 = vector.broadcast %227 : f32 to vector<8x16xf32>
    %229 = arith.mulf %228, %226 : vector<8x16xf32>
    %c0_11 = arith.constant 0 : index
    %230 = memref.load %arg4[%c0_11] : memref<2xf32, #tpu.memory_space<smem>>
    %231 = vector.broadcast %230 : f32 to vector<8x16xf32>
    %232 = arith.addf %229, %231 : vector<8x16xf32>
    %233 = arith.negf %232 : vector<8x16xf32>
    %234 = math.exp %233 : vector<8x16xf32>
    %cst_12 = arith.constant 1.000000e+00 : f32
    %235 = vector.broadcast %cst_12 : f32 to vector<8x16xf32>
    %236 = arith.addf %235, %234 : vector<8x16xf32>
    %237 = arith.divf %235, %236 : vector<8x16xf32>
    %238 = tpu.concatenate %237, %0 in 1 : vector<8x16xf32>, vector<8x112xf32> -> vector<8x128xf32>
    %c16_i32_13 = arith.constant 16 : i32
    %239 = tpu.dynamic_rotate %238 by %c16_i32_13 dim 1 : vector<8x128xf32>, i32 -> vector<8x128xf32>
    %240 = arith.addf %238, %239 : vector<8x128xf32>
    %c32_i32_14 = arith.constant 32 : i32
    %241 = tpu.dynamic_rotate %240 by %c32_i32_14 dim 1 : vector<8x128xf32>, i32 -> vector<8x128xf32>
    %242 = arith.addf %240, %241 : vector<8x128xf32>
    %c64_i32_15 = arith.constant 64 : i32
    %243 = tpu.dynamic_rotate %242 by %c64_i32_15 dim 1 : vector<8x128xf32>, i32 -> vector<8x128xf32>
    %244 = arith.addf %242, %243 : vector<8x128xf32>
    %245 = arith.mulf %244, %8 : vector<8x128xf32>
    %246 = vector.extract_strided_slice %245 {offsets = [0, 0], sizes = [2, 128], strides = [1, 1]} : vector<8x128xf32> to vector<2x128xf32>
    %247 = arith.truncf %246 : vector<2x128xf32> to vector<2x128xbf16>
    %c0_16 = arith.constant 0 : index
    %c0_17 = arith.constant 0 : index
    %248 = vector.load %arg5[%c0_16, %c0_17] : memref<1024x512xbf16, #tpu.memory_space<vmem>>, vector<128x512xbf16>
    %cst_18 = arith.constant dense<0.000000e+00> : vector<2x512xf32>
    %249 = tpu.matmul %247, %248, %cst_18 {dimension_numbers = #tpu.dot_dimension_numbers<[1], [0], [0], [1], [0, 0, 1, 1], [], []>} : vector<2x128xbf16>, vector<128x512xbf16>, vector<2x512xf32> -> vector<2x512xf32>
    %250 = vector.extract_strided_slice %245 {offsets = [2, 0], sizes = [2, 128], strides = [1, 1]} : vector<8x128xf32> to vector<2x128xf32>
    %251 = arith.truncf %250 : vector<2x128xf32> to vector<2x128xbf16>
    %c128 = arith.constant 128 : index
    %c0_19 = arith.constant 0 : index
    %252 = vector.load %arg5[%c128, %c0_19] : memref<1024x512xbf16, #tpu.memory_space<vmem>>, vector<128x512xbf16>
    %cst_20 = arith.constant dense<0.000000e+00> : vector<2x512xf32>
    %253 = tpu.matmul %251, %252, %cst_20 {dimension_numbers = #tpu.dot_dimension_numbers<[1], [0], [0], [1], [0, 0, 1, 1], [], []>} : vector<2x128xbf16>, vector<128x512xbf16>, vector<2x512xf32> -> vector<2x512xf32>
    %254 = arith.addf %249, %253 : vector<2x512xf32>
    %255 = vector.extract_strided_slice %245 {offsets = [4, 0], sizes = [2, 128], strides = [1, 1]} : vector<8x128xf32> to vector<2x128xf32>
    %256 = arith.truncf %255 : vector<2x128xf32> to vector<2x128xbf16>
    %c256 = arith.constant 256 : index
    %c0_21 = arith.constant 0 : index
    %257 = vector.load %arg5[%c256, %c0_21] : memref<1024x512xbf16, #tpu.memory_space<vmem>>, vector<128x512xbf16>
    %cst_22 = arith.constant dense<0.000000e+00> : vector<2x512xf32>
    %258 = tpu.matmul %256, %257, %cst_22 {dimension_numbers = #tpu.dot_dimension_numbers<[1], [0], [0], [1], [0, 0, 1, 1], [], []>} : vector<2x128xbf16>, vector<128x512xbf16>, vector<2x512xf32> -> vector<2x512xf32>
    %259 = arith.addf %254, %258 : vector<2x512xf32>
    %260 = vector.extract_strided_slice %245 {offsets = [6, 0], sizes = [2, 128], strides = [1, 1]} : vector<8x128xf32> to vector<2x128xf32>
    %261 = arith.truncf %260 : vector<2x128xf32> to vector<2x128xbf16>
    %c384 = arith.constant 384 : index
    %c0_23 = arith.constant 0 : index
    %262 = vector.load %arg5[%c384, %c0_23] : memref<1024x512xbf16, #tpu.memory_space<vmem>>, vector<128x512xbf16>
    %cst_24 = arith.constant dense<0.000000e+00> : vector<2x512xf32>
    %263 = tpu.matmul %261, %262, %cst_24 {dimension_numbers = #tpu.dot_dimension_numbers<[1], [0], [0], [1], [0, 0, 1, 1], [], []>} : vector<2x128xbf16>, vector<128x512xbf16>, vector<2x512xf32> -> vector<2x512xf32>
    %264 = arith.addf %259, %263 : vector<2x512xf32>
    %c1_25 = arith.constant 1 : index
    %265 = memref.load %arg2[%c1_25] : memref<2xf32, #tpu.memory_space<smem>>
    %266 = vector.broadcast %265 : f32 to vector<8x16xf32>
    %267 = arith.addf %204, %266 : vector<8x16xf32>
    %268 = vector.shape_cast %267 : vector<8x16xf32> to vector<1x8x16xf32>
    %cst_26 = arith.constant dense<0.000000e+00> : vector<1xf32>
    %269 = vector.multi_reduction <add>, %268, %cst_26 [1, 2] : vector<1x8x16xf32> to vector<1xf32>
    %270 = vector.shape_cast %269 : vector<1xf32> to vector<1x1x1xf32>
    %271 = vector.extract %270[0, 0, 0] : f32 from vector<1x1x1xf32>
    %cst_27 = arith.constant 1.280000e+02 : f32
    %272 = arith.divf %271, %cst_27 : f32
    %273 = vector.broadcast %272 : f32 to vector<8x16xf32>
    %274 = arith.subf %267, %273 : vector<8x16xf32>
    %275 = arith.mulf %274, %274 : vector<8x16xf32>
    %276 = vector.shape_cast %275 : vector<8x16xf32> to vector<1x8x16xf32>
    %cst_28 = arith.constant dense<0.000000e+00> : vector<1xf32>
    %277 = vector.multi_reduction <add>, %276, %cst_28 [1, 2] : vector<1x8x16xf32> to vector<1xf32>
    %278 = vector.shape_cast %277 : vector<1xf32> to vector<1x1x1xf32>
    %279 = vector.extract %278[0, 0, 0] : f32 from vector<1x1x1xf32>
    %cst_29 = arith.constant 1.280000e+02 : f32
    %280 = arith.divf %279, %cst_29 : f32
    %281 = vector.broadcast %272 : f32 to vector<8x16xf32>
    %282 = arith.subf %267, %281 : vector<8x16xf32>
    %cst_30 = arith.constant 9.99999974E-6 : f32
    %283 = arith.addf %280, %cst_30 : f32
    %284 = math.rsqrt %283 : f32
    %285 = vector.broadcast %284 : f32 to vector<8x16xf32>
    %286 = arith.mulf %282, %285 : vector<8x16xf32>
    %c1_31 = arith.constant 1 : index
    %287 = memref.load %arg3[%c1_31] : memref<2xf32, #tpu.memory_space<smem>>
    %288 = vector.broadcast %287 : f32 to vector<8x16xf32>
    %289 = arith.mulf %288, %286 : vector<8x16xf32>
    %c1_32 = arith.constant 1 : index
    %290 = memref.load %arg4[%c1_32] : memref<2xf32, #tpu.memory_space<smem>>
    %291 = vector.broadcast %290 : f32 to vector<8x16xf32>
    %292 = arith.addf %289, %291 : vector<8x16xf32>
    %293 = arith.negf %292 : vector<8x16xf32>
    %294 = math.exp %293 : vector<8x16xf32>
    %cst_33 = arith.constant 1.000000e+00 : f32
    %295 = vector.broadcast %cst_33 : f32 to vector<8x16xf32>
    %296 = arith.addf %295, %294 : vector<8x16xf32>
    %297 = arith.divf %295, %296 : vector<8x16xf32>
    %298 = tpu.concatenate %297, %0 in 1 : vector<8x16xf32>, vector<8x112xf32> -> vector<8x128xf32>
    %c16_i32_34 = arith.constant 16 : i32
    %299 = tpu.dynamic_rotate %298 by %c16_i32_34 dim 1 : vector<8x128xf32>, i32 -> vector<8x128xf32>
    %300 = arith.addf %298, %299 : vector<8x128xf32>
    %c32_i32_35 = arith.constant 32 : i32
    %301 = tpu.dynamic_rotate %300 by %c32_i32_35 dim 1 : vector<8x128xf32>, i32 -> vector<8x128xf32>
    %302 = arith.addf %300, %301 : vector<8x128xf32>
    %c64_i32_36 = arith.constant 64 : i32
    %303 = tpu.dynamic_rotate %302 by %c64_i32_36 dim 1 : vector<8x128xf32>, i32 -> vector<8x128xf32>
    %304 = arith.addf %302, %303 : vector<8x128xf32>
    %305 = arith.mulf %304, %8 : vector<8x128xf32>
    %306 = vector.extract_strided_slice %305 {offsets = [0, 0], sizes = [2, 128], strides = [1, 1]} : vector<8x128xf32> to vector<2x128xf32>
    %307 = arith.truncf %306 : vector<2x128xf32> to vector<2x128xbf16>
    %c512 = arith.constant 512 : index
    %c0_37 = arith.constant 0 : index
    %308 = vector.load %arg5[%c512, %c0_37] : memref<1024x512xbf16, #tpu.memory_space<vmem>>, vector<128x512xbf16>
    %cst_38 = arith.constant dense<0.000000e+00> : vector<2x512xf32>
    %309 = tpu.matmul %307, %308, %cst_38 {dimension_numbers = #tpu.dot_dimension_numbers<[1], [0], [0], [1], [0, 0, 1, 1], [], []>} : vector<2x128xbf16>, vector<128x512xbf16>, vector<2x512xf32> -> vector<2x512xf32>
    %310 = arith.addf %264, %309 : vector<2x512xf32>
    %311 = vector.extract_strided_slice %305 {offsets = [2, 0], sizes = [2, 128], strides = [1, 1]} : vector<8x128xf32> to vector<2x128xf32>
    %312 = arith.truncf %311 : vector<2x128xf32> to vector<2x128xbf16>
    %c640 = arith.constant 640 : index
    %c0_39 = arith.constant 0 : index
    %313 = vector.load %arg5[%c640, %c0_39] : memref<1024x512xbf16, #tpu.memory_space<vmem>>, vector<128x512xbf16>
    %cst_40 = arith.constant dense<0.000000e+00> : vector<2x512xf32>
    %314 = tpu.matmul %312, %313, %cst_40 {dimension_numbers = #tpu.dot_dimension_numbers<[1], [0], [0], [1], [0, 0, 1, 1], [], []>} : vector<2x128xbf16>, vector<128x512xbf16>, vector<2x512xf32> -> vector<2x512xf32>
    %315 = arith.addf %310, %314 : vector<2x512xf32>
    %316 = vector.extract_strided_slice %305 {offsets = [4, 0], sizes = [2, 128], strides = [1, 1]} : vector<8x128xf32> to vector<2x128xf32>
    %317 = arith.truncf %316 : vector<2x128xf32> to vector<2x128xbf16>
    %c768 = arith.constant 768 : index
    %c0_41 = arith.constant 0 : index
    %318 = vector.load %arg5[%c768, %c0_41] : memref<1024x512xbf16, #tpu.memory_space<vmem>>, vector<128x512xbf16>
    %cst_42 = arith.constant dense<0.000000e+00> : vector<2x512xf32>
    %319 = tpu.matmul %317, %318, %cst_42 {dimension_numbers = #tpu.dot_dimension_numbers<[1], [0], [0], [1], [0, 0, 1, 1], [], []>} : vector<2x128xbf16>, vector<128x512xbf16>, vector<2x512xf32> -> vector<2x512xf32>
    %320 = arith.addf %315, %319 : vector<2x512xf32>
    %321 = vector.extract_strided_slice %305 {offsets = [6, 0], sizes = [2, 128], strides = [1, 1]} : vector<8x128xf32> to vector<2x128xf32>
    %322 = arith.truncf %321 : vector<2x128xf32> to vector<2x128xbf16>
    %c896 = arith.constant 896 : index
    %c0_43 = arith.constant 0 : index
    %323 = vector.load %arg5[%c896, %c0_43] : memref<1024x512xbf16, #tpu.memory_space<vmem>>, vector<128x512xbf16>
    %cst_44 = arith.constant dense<0.000000e+00> : vector<2x512xf32>
    %324 = tpu.matmul %322, %323, %cst_44 {dimension_numbers = #tpu.dot_dimension_numbers<[1], [0], [0], [1], [0, 0, 1, 1], [], []>} : vector<2x128xbf16>, vector<128x512xbf16>, vector<2x512xf32> -> vector<2x512xf32>
    %325 = arith.addf %320, %324 : vector<2x512xf32>
    %c0_45 = arith.constant 0 : index
    %c0_46 = arith.constant 0 : index
    %326 = vector.load %arg6[%c0_45, %c0_46] : memref<1x512xf32, #tpu.memory_space<vmem>>, vector<1x512xf32>
    %327 = vector.broadcast %326 : vector<1x512xf32> to vector<2x512xf32>
    %328 = arith.addf %325, %327 : vector<2x512xf32>
    %329 = vector.extract_strided_slice %328 {offsets = [0, 0], sizes = [2, 128], strides = [1, 1]} : vector<2x512xf32> to vector<2x128xf32>
    %330 = vector.extract_strided_slice %328 {offsets = [0, 128], sizes = [2, 128], strides = [1, 1]} : vector<2x512xf32> to vector<2x128xf32>
    %331 = vector.extract_strided_slice %328 {offsets = [0, 256], sizes = [2, 128], strides = [1, 1]} : vector<2x512xf32> to vector<2x128xf32>
    %332 = vector.extract_strided_slice %328 {offsets = [0, 384], sizes = [2, 128], strides = [1, 1]} : vector<2x512xf32> to vector<2x128xf32>
    %333 = tpu.concatenate %329, %330, %331, %332 in 0 : vector<2x128xf32>, vector<2x128xf32>, vector<2x128xf32>, vector<2x128xf32> -> vector<8x128xf32>
    %c16_i32_47 = arith.constant 16 : i32
    %334 = tpu.dynamic_rotate %333 by %c16_i32_47 dim 1 : vector<8x128xf32>, i32 -> vector<8x128xf32>
    %335 = arith.maximumf %333, %334 : vector<8x128xf32>
    %c32_i32_48 = arith.constant 32 : i32
    %336 = tpu.dynamic_rotate %335 by %c32_i32_48 dim 1 : vector<8x128xf32>, i32 -> vector<8x128xf32>
    %337 = arith.maximumf %335, %336 : vector<8x128xf32>
    %c64_i32_49 = arith.constant 64 : i32
    %338 = tpu.dynamic_rotate %337 by %c64_i32_49 dim 1 : vector<8x128xf32>, i32 -> vector<8x128xf32>
    %339 = arith.maximumf %337, %338 : vector<8x128xf32>
    %340 = vector.extract_strided_slice %339 {offsets = [0, 0], sizes = [8, 16], strides = [1, 1]} : vector<8x128xf32> to vector<8x16xf32>
    %341 = tpu.concatenate %1, %340, %1 in 1 : vector<8x3xf32>, vector<8x16xf32>, vector<8x3xf32> -> vector<8x22xf32>
    %342 = tpu.concatenate %2, %341, %2 in 0 : vector<2x22xf32>, vector<8x22xf32>, vector<2x22xf32> -> vector<12x22xf32>
    %343 = vector.extract_strided_slice %342 {offsets = [0, 0], sizes = [8, 16], strides = [1, 1]} : vector<12x22xf32> to vector<8x16xf32>
    %c0_50 = arith.constant 0 : index
    %344 = memref.load %arg1[%c0_50] : memref<42xf32, #tpu.memory_space<smem>>
    %345 = vector.broadcast %344 : f32 to vector<8x16xf32>
    %346 = arith.mulf %345, %343 : vector<8x16xf32>
    %c21_51 = arith.constant 21 : index
    %347 = memref.load %arg1[%c21_51] : memref<42xf32, #tpu.memory_space<smem>>
    %348 = vector.broadcast %347 : f32 to vector<8x16xf32>
    %349 = arith.mulf %348, %343 : vector<8x16xf32>
    %350 = vector.extract_strided_slice %342 {offsets = [0, 1], sizes = [8, 16], strides = [1, 1]} : vector<12x22xf32> to vector<8x16xf32>
    %c1_52 = arith.constant 1 : index
    %351 = memref.load %arg1[%c1_52] : memref<42xf32, #tpu.memory_space<smem>>
    %352 = vector.broadcast %351 : f32 to vector<8x16xf32>
    %353 = arith.mulf %352, %350 : vector<8x16xf32>
    %354 = arith.addf %346, %353 : vector<8x16xf32>
    %c22_53 = arith.constant 22 : index
    %355 = memref.load %arg1[%c22_53] : memref<42xf32, #tpu.memory_space<smem>>
    %356 = vector.broadcast %355 : f32 to vector<8x16xf32>
    %357 = arith.mulf %356, %350 : vector<8x16xf32>
    %358 = arith.addf %349, %357 : vector<8x16xf32>
    %359 = vector.extract_strided_slice %342 {offsets = [0, 2], sizes = [8, 16], strides = [1, 1]} : vector<12x22xf32> to vector<8x16xf32>
    %c2_54 = arith.constant 2 : index
    %360 = memref.load %arg1[%c2_54] : memref<42xf32, #tpu.memory_space<smem>>
    %361 = vector.broadcast %360 : f32 to vector<8x16xf32>
    %362 = arith.mulf %361, %359 : vector<8x16xf32>
    %363 = arith.addf %354, %362 : vector<8x16xf32>
    %c23_55 = arith.constant 23 : index
    %364 = memref.load %arg1[%c23_55] : memref<42xf32, #tpu.memory_space<smem>>
    %365 = vector.broadcast %364 : f32 to vector<8x16xf32>
    %366 = arith.mulf %365, %359 : vector<8x16xf32>
    %367 = arith.addf %358, %366 : vector<8x16xf32>
    %368 = vector.extract_strided_slice %342 {offsets = [0, 3], sizes = [8, 16], strides = [1, 1]} : vector<12x22xf32> to vector<8x16xf32>
    %c3_56 = arith.constant 3 : index
    %369 = memref.load %arg1[%c3_56] : memref<42xf32, #tpu.memory_space<smem>>
    %370 = vector.broadcast %369 : f32 to vector<8x16xf32>
    %371 = arith.mulf %370, %368 : vector<8x16xf32>
    %372 = arith.addf %363, %371 : vector<8x16xf32>
    %c24_57 = arith.constant 24 : index
    %373 = memref.load %arg1[%c24_57] : memref<42xf32, #tpu.memory_space<smem>>
    %374 = vector.broadcast %373 : f32 to vector<8x16xf32>
    %375 = arith.mulf %374, %368 : vector<8x16xf32>
    %376 = arith.addf %367, %375 : vector<8x16xf32>
    %377 = vector.extract_strided_slice %342 {offsets = [0, 4], sizes = [8, 16], strides = [1, 1]} : vector<12x22xf32> to vector<8x16xf32>
    %c4_58 = arith.constant 4 : index
    %378 = memref.load %arg1[%c4_58] : memref<42xf32, #tpu.memory_space<smem>>
    %379 = vector.broadcast %378 : f32 to vector<8x16xf32>
    %380 = arith.mulf %379, %377 : vector<8x16xf32>
    %381 = arith.addf %372, %380 : vector<8x16xf32>
    %c25_59 = arith.constant 25 : index
    %382 = memref.load %arg1[%c25_59] : memref<42xf32, #tpu.memory_space<smem>>
    %383 = vector.broadcast %382 : f32 to vector<8x16xf32>
    %384 = arith.mulf %383, %377 : vector<8x16xf32>
    %385 = arith.addf %376, %384 : vector<8x16xf32>
    %386 = vector.extract_strided_slice %342 {offsets = [0, 5], sizes = [8, 16], strides = [1, 1]} : vector<12x22xf32> to vector<8x16xf32>
    %c5_60 = arith.constant 5 : index
    %387 = memref.load %arg1[%c5_60] : memref<42xf32, #tpu.memory_space<smem>>
    %388 = vector.broadcast %387 : f32 to vector<8x16xf32>
    %389 = arith.mulf %388, %386 : vector<8x16xf32>
    %390 = arith.addf %381, %389 : vector<8x16xf32>
    %c26_61 = arith.constant 26 : index
    %391 = memref.load %arg1[%c26_61] : memref<42xf32, #tpu.memory_space<smem>>
    %392 = vector.broadcast %391 : f32 to vector<8x16xf32>
    %393 = arith.mulf %392, %386 : vector<8x16xf32>
    %394 = arith.addf %385, %393 : vector<8x16xf32>
    %395 = vector.extract_strided_slice %342 {offsets = [0, 6], sizes = [8, 16], strides = [1, 1]} : vector<12x22xf32> to vector<8x16xf32>
    %c6_62 = arith.constant 6 : index
    %396 = memref.load %arg1[%c6_62] : memref<42xf32, #tpu.memory_space<smem>>
    %397 = vector.broadcast %396 : f32 to vector<8x16xf32>
    %398 = arith.mulf %397, %395 : vector<8x16xf32>
    %399 = arith.addf %390, %398 : vector<8x16xf32>
    %c27_63 = arith.constant 27 : index
    %400 = memref.load %arg1[%c27_63] : memref<42xf32, #tpu.memory_space<smem>>
    %401 = vector.broadcast %400 : f32 to vector<8x16xf32>
    %402 = arith.mulf %401, %395 : vector<8x16xf32>
    %403 = arith.addf %394, %402 : vector<8x16xf32>
    %404 = vector.extract_strided_slice %342 {offsets = [2, 0], sizes = [8, 16], strides = [1, 1]} : vector<12x22xf32> to vector<8x16xf32>
    %c7_64 = arith.constant 7 : index
    %405 = memref.load %arg1[%c7_64] : memref<42xf32, #tpu.memory_space<smem>>
    %406 = vector.broadcast %405 : f32 to vector<8x16xf32>
    %407 = arith.mulf %406, %404 : vector<8x16xf32>
    %408 = arith.addf %399, %407 : vector<8x16xf32>
    %c28_65 = arith.constant 28 : index
    %409 = memref.load %arg1[%c28_65] : memref<42xf32, #tpu.memory_space<smem>>
    %410 = vector.broadcast %409 : f32 to vector<8x16xf32>
    %411 = arith.mulf %410, %404 : vector<8x16xf32>
    %412 = arith.addf %403, %411 : vector<8x16xf32>
    %413 = vector.extract_strided_slice %342 {offsets = [2, 1], sizes = [8, 16], strides = [1, 1]} : vector<12x22xf32> to vector<8x16xf32>
    %c8_66 = arith.constant 8 : index
    %414 = memref.load %arg1[%c8_66] : memref<42xf32, #tpu.memory_space<smem>>
    %415 = vector.broadcast %414 : f32 to vector<8x16xf32>
    %416 = arith.mulf %415, %413 : vector<8x16xf32>
    %417 = arith.addf %408, %416 : vector<8x16xf32>
    %c29_67 = arith.constant 29 : index
    %418 = memref.load %arg1[%c29_67] : memref<42xf32, #tpu.memory_space<smem>>
    %419 = vector.broadcast %418 : f32 to vector<8x16xf32>
    %420 = arith.mulf %419, %413 : vector<8x16xf32>
    %421 = arith.addf %412, %420 : vector<8x16xf32>
    %422 = vector.extract_strided_slice %342 {offsets = [2, 2], sizes = [8, 16], strides = [1, 1]} : vector<12x22xf32> to vector<8x16xf32>
    %c9_68 = arith.constant 9 : index
    %423 = memref.load %arg1[%c9_68] : memref<42xf32, #tpu.memory_space<smem>>
    %424 = vector.broadcast %423 : f32 to vector<8x16xf32>
    %425 = arith.mulf %424, %422 : vector<8x16xf32>
    %426 = arith.addf %417, %425 : vector<8x16xf32>
    %c30_69 = arith.constant 30 : index
    %427 = memref.load %arg1[%c30_69] : memref<42xf32, #tpu.memory_space<smem>>
    %428 = vector.broadcast %427 : f32 to vector<8x16xf32>
    %429 = arith.mulf %428, %422 : vector<8x16xf32>
    %430 = arith.addf %421, %429 : vector<8x16xf32>
    %431 = vector.extract_strided_slice %342 {offsets = [2, 3], sizes = [8, 16], strides = [1, 1]} : vector<12x22xf32> to vector<8x16xf32>
    %c10_70 = arith.constant 10 : index
    %432 = memref.load %arg1[%c10_70] : memref<42xf32, #tpu.memory_space<smem>>
    %433 = vector.broadcast %432 : f32 to vector<8x16xf32>
    %434 = arith.mulf %433, %431 : vector<8x16xf32>
    %435 = arith.addf %426, %434 : vector<8x16xf32>
    %c31_71 = arith.constant 31 : index
    %436 = memref.load %arg1[%c31_71] : memref<42xf32, #tpu.memory_space<smem>>
    %437 = vector.broadcast %436 : f32 to vector<8x16xf32>
    %438 = arith.mulf %437, %431 : vector<8x16xf32>
    %439 = arith.addf %430, %438 : vector<8x16xf32>
    %440 = vector.extract_strided_slice %342 {offsets = [2, 4], sizes = [8, 16], strides = [1, 1]} : vector<12x22xf32> to vector<8x16xf32>
    %c11_72 = arith.constant 11 : index
    %441 = memref.load %arg1[%c11_72] : memref<42xf32, #tpu.memory_space<smem>>
    %442 = vector.broadcast %441 : f32 to vector<8x16xf32>
    %443 = arith.mulf %442, %440 : vector<8x16xf32>
    %444 = arith.addf %435, %443 : vector<8x16xf32>
    %c32_73 = arith.constant 32 : index
    %445 = memref.load %arg1[%c32_73] : memref<42xf32, #tpu.memory_space<smem>>
    %446 = vector.broadcast %445 : f32 to vector<8x16xf32>
    %447 = arith.mulf %446, %440 : vector<8x16xf32>
    %448 = arith.addf %439, %447 : vector<8x16xf32>
    %449 = vector.extract_strided_slice %342 {offsets = [2, 5], sizes = [8, 16], strides = [1, 1]} : vector<12x22xf32> to vector<8x16xf32>
    %c12_74 = arith.constant 12 : index
    %450 = memref.load %arg1[%c12_74] : memref<42xf32, #tpu.memory_space<smem>>
    %451 = vector.broadcast %450 : f32 to vector<8x16xf32>
    %452 = arith.mulf %451, %449 : vector<8x16xf32>
    %453 = arith.addf %444, %452 : vector<8x16xf32>
    %c33_75 = arith.constant 33 : index
    %454 = memref.load %arg1[%c33_75] : memref<42xf32, #tpu.memory_space<smem>>
    %455 = vector.broadcast %454 : f32 to vector<8x16xf32>
    %456 = arith.mulf %455, %449 : vector<8x16xf32>
    %457 = arith.addf %448, %456 : vector<8x16xf32>
    %458 = vector.extract_strided_slice %342 {offsets = [2, 6], sizes = [8, 16], strides = [1, 1]} : vector<12x22xf32> to vector<8x16xf32>
    %c13_76 = arith.constant 13 : index
    %459 = memref.load %arg1[%c13_76] : memref<42xf32, #tpu.memory_space<smem>>
    %460 = vector.broadcast %459 : f32 to vector<8x16xf32>
    %461 = arith.mulf %460, %458 : vector<8x16xf32>
    %462 = arith.addf %453, %461 : vector<8x16xf32>
    %c34_77 = arith.constant 34 : index
    %463 = memref.load %arg1[%c34_77] : memref<42xf32, #tpu.memory_space<smem>>
    %464 = vector.broadcast %463 : f32 to vector<8x16xf32>
    %465 = arith.mulf %464, %458 : vector<8x16xf32>
    %466 = arith.addf %457, %465 : vector<8x16xf32>
    %467 = vector.extract_strided_slice %342 {offsets = [4, 0], sizes = [8, 16], strides = [1, 1]} : vector<12x22xf32> to vector<8x16xf32>
    %c14_78 = arith.constant 14 : index
    %468 = memref.load %arg1[%c14_78] : memref<42xf32, #tpu.memory_space<smem>>
    %469 = vector.broadcast %468 : f32 to vector<8x16xf32>
    %470 = arith.mulf %469, %467 : vector<8x16xf32>
    %471 = arith.addf %462, %470 : vector<8x16xf32>
    %c35_79 = arith.constant 35 : index
    %472 = memref.load %arg1[%c35_79] : memref<42xf32, #tpu.memory_space<smem>>
    %473 = vector.broadcast %472 : f32 to vector<8x16xf32>
    %474 = arith.mulf %473, %467 : vector<8x16xf32>
    %475 = arith.addf %466, %474 : vector<8x16xf32>
    %476 = vector.extract_strided_slice %342 {offsets = [4, 1], sizes = [8, 16], strides = [1, 1]} : vector<12x22xf32> to vector<8x16xf32>
    %c15_80 = arith.constant 15 : index
    %477 = memref.load %arg1[%c15_80] : memref<42xf32, #tpu.memory_space<smem>>
    %478 = vector.broadcast %477 : f32 to vector<8x16xf32>
    %479 = arith.mulf %478, %476 : vector<8x16xf32>
    %480 = arith.addf %471, %479 : vector<8x16xf32>
    %c36_81 = arith.constant 36 : index
    %481 = memref.load %arg1[%c36_81] : memref<42xf32, #tpu.memory_space<smem>>
    %482 = vector.broadcast %481 : f32 to vector<8x16xf32>
    %483 = arith.mulf %482, %476 : vector<8x16xf32>
    %484 = arith.addf %475, %483 : vector<8x16xf32>
    %485 = vector.extract_strided_slice %342 {offsets = [4, 2], sizes = [8, 16], strides = [1, 1]} : vector<12x22xf32> to vector<8x16xf32>
    %c16_82 = arith.constant 16 : index
    %486 = memref.load %arg1[%c16_82] : memref<42xf32, #tpu.memory_space<smem>>
    %487 = vector.broadcast %486 : f32 to vector<8x16xf32>
    %488 = arith.mulf %487, %485 : vector<8x16xf32>
    %489 = arith.addf %480, %488 : vector<8x16xf32>
    %c37_83 = arith.constant 37 : index
    %490 = memref.load %arg1[%c37_83] : memref<42xf32, #tpu.memory_space<smem>>
    %491 = vector.broadcast %490 : f32 to vector<8x16xf32>
    %492 = arith.mulf %491, %485 : vector<8x16xf32>
    %493 = arith.addf %484, %492 : vector<8x16xf32>
    %494 = vector.extract_strided_slice %342 {offsets = [4, 3], sizes = [8, 16], strides = [1, 1]} : vector<12x22xf32> to vector<8x16xf32>
    %c17_84 = arith.constant 17 : index
    %495 = memref.load %arg1[%c17_84] : memref<42xf32, #tpu.memory_space<smem>>
    %496 = vector.broadcast %495 : f32 to vector<8x16xf32>
    %497 = arith.mulf %496, %494 : vector<8x16xf32>
    %498 = arith.addf %489, %497 : vector<8x16xf32>
    %c38_85 = arith.constant 38 : index
    %499 = memref.load %arg1[%c38_85] : memref<42xf32, #tpu.memory_space<smem>>
    %500 = vector.broadcast %499 : f32 to vector<8x16xf32>
    %501 = arith.mulf %500, %494 : vector<8x16xf32>
    %502 = arith.addf %493, %501 : vector<8x16xf32>
    %503 = vector.extract_strided_slice %342 {offsets = [4, 4], sizes = [8, 16], strides = [1, 1]} : vector<12x22xf32> to vector<8x16xf32>
    %c18_86 = arith.constant 18 : index
    %504 = memref.load %arg1[%c18_86] : memref<42xf32, #tpu.memory_space<smem>>
    %505 = vector.broadcast %504 : f32 to vector<8x16xf32>
    %506 = arith.mulf %505, %503 : vector<8x16xf32>
    %507 = arith.addf %498, %506 : vector<8x16xf32>
    %c39_87 = arith.constant 39 : index
    %508 = memref.load %arg1[%c39_87] : memref<42xf32, #tpu.memory_space<smem>>
    %509 = vector.broadcast %508 : f32 to vector<8x16xf32>
    %510 = arith.mulf %509, %503 : vector<8x16xf32>
    %511 = arith.addf %502, %510 : vector<8x16xf32>
    %512 = vector.extract_strided_slice %342 {offsets = [4, 5], sizes = [8, 16], strides = [1, 1]} : vector<12x22xf32> to vector<8x16xf32>
    %c19_88 = arith.constant 19 : index
    %513 = memref.load %arg1[%c19_88] : memref<42xf32, #tpu.memory_space<smem>>
    %514 = vector.broadcast %513 : f32 to vector<8x16xf32>
    %515 = arith.mulf %514, %512 : vector<8x16xf32>
    %516 = arith.addf %507, %515 : vector<8x16xf32>
    %c40_89 = arith.constant 40 : index
    %517 = memref.load %arg1[%c40_89] : memref<42xf32, #tpu.memory_space<smem>>
    %518 = vector.broadcast %517 : f32 to vector<8x16xf32>
    %519 = arith.mulf %518, %512 : vector<8x16xf32>
    %520 = arith.addf %511, %519 : vector<8x16xf32>
    %521 = vector.extract_strided_slice %342 {offsets = [4, 6], sizes = [8, 16], strides = [1, 1]} : vector<12x22xf32> to vector<8x16xf32>
    %c20_90 = arith.constant 20 : index
    %522 = memref.load %arg1[%c20_90] : memref<42xf32, #tpu.memory_space<smem>>
    %523 = vector.broadcast %522 : f32 to vector<8x16xf32>
    %524 = arith.mulf %523, %521 : vector<8x16xf32>
    %525 = arith.addf %516, %524 : vector<8x16xf32>
    %c41_91 = arith.constant 41 : index
    %526 = memref.load %arg1[%c41_91] : memref<42xf32, #tpu.memory_space<smem>>
    %527 = vector.broadcast %526 : f32 to vector<8x16xf32>
    %528 = arith.mulf %527, %521 : vector<8x16xf32>
    %529 = arith.addf %520, %528 : vector<8x16xf32>
    %c0_92 = arith.constant 0 : index
    %530 = memref.load %arg2[%c0_92] : memref<2xf32, #tpu.memory_space<smem>>
    %531 = vector.broadcast %530 : f32 to vector<8x16xf32>
    %532 = arith.addf %525, %531 : vector<8x16xf32>
    %533 = vector.shape_cast %532 : vector<8x16xf32> to vector<1x8x16xf32>
    %cst_93 = arith.constant dense<0.000000e+00> : vector<1xf32>
    %534 = vector.multi_reduction <add>, %533, %cst_93 [1, 2] : vector<1x8x16xf32> to vector<1xf32>
    %535 = vector.shape_cast %534 : vector<1xf32> to vector<1x1x1xf32>
    %536 = vector.extract %535[0, 0, 0] : f32 from vector<1x1x1xf32>
    %cst_94 = arith.constant 1.280000e+02 : f32
    %537 = arith.divf %536, %cst_94 : f32
    %538 = vector.broadcast %537 : f32 to vector<8x16xf32>
    %539 = arith.subf %532, %538 : vector<8x16xf32>
    %540 = arith.mulf %539, %539 : vector<8x16xf32>
    %541 = vector.shape_cast %540 : vector<8x16xf32> to vector<1x8x16xf32>
    %cst_95 = arith.constant dense<0.000000e+00> : vector<1xf32>
    %542 = vector.multi_reduction <add>, %541, %cst_95 [1, 2] : vector<1x8x16xf32> to vector<1xf32>
    %543 = vector.shape_cast %542 : vector<1xf32> to vector<1x1x1xf32>
    %544 = vector.extract %543[0, 0, 0] : f32 from vector<1x1x1xf32>
    %cst_96 = arith.constant 1.280000e+02 : f32
    %545 = arith.divf %544, %cst_96 : f32
    %546 = vector.broadcast %537 : f32 to vector<8x16xf32>
    %547 = arith.subf %532, %546 : vector<8x16xf32>
    %cst_97 = arith.constant 9.99999974E-6 : f32
    %548 = arith.addf %545, %cst_97 : f32
    %549 = math.rsqrt %548 : f32
    %550 = vector.broadcast %549 : f32 to vector<8x16xf32>
    %551 = arith.mulf %547, %550 : vector<8x16xf32>
    %c0_98 = arith.constant 0 : index
    %552 = memref.load %arg3[%c0_98] : memref<2xf32, #tpu.memory_space<smem>>
    %553 = vector.broadcast %552 : f32 to vector<8x16xf32>
    %554 = arith.mulf %553, %551 : vector<8x16xf32>
    %c0_99 = arith.constant 0 : index
    %555 = memref.load %arg4[%c0_99] : memref<2xf32, #tpu.memory_space<smem>>
    %556 = vector.broadcast %555 : f32 to vector<8x16xf32>
    %557 = arith.addf %554, %556 : vector<8x16xf32>
    %558 = arith.negf %557 : vector<8x16xf32>
    %559 = math.exp %558 : vector<8x16xf32>
    %cst_100 = arith.constant 1.000000e+00 : f32
    %560 = vector.broadcast %cst_100 : f32 to vector<8x16xf32>
    %561 = arith.addf %560, %559 : vector<8x16xf32>
    %562 = arith.divf %560, %561 : vector<8x16xf32>
    %563 = tpu.concatenate %562, %0 in 1 : vector<8x16xf32>, vector<8x112xf32> -> vector<8x128xf32>
    %c16_i32_101 = arith.constant 16 : i32
    %564 = tpu.dynamic_rotate %563 by %c16_i32_101 dim 1 : vector<8x128xf32>, i32 -> vector<8x128xf32>
    %565 = arith.addf %563, %564 : vector<8x128xf32>
    %c32_i32_102 = arith.constant 32 : i32
    %566 = tpu.dynamic_rotate %565 by %c32_i32_102 dim 1 : vector<8x128xf32>, i32 -> vector<8x128xf32>
    %567 = arith.addf %565, %566 : vector<8x128xf32>
    %c64_i32_103 = arith.constant 64 : i32
    %568 = tpu.dynamic_rotate %567 by %c64_i32_103 dim 1 : vector<8x128xf32>, i32 -> vector<8x128xf32>
    %569 = arith.addf %567, %568 : vector<8x128xf32>
    %570 = arith.mulf %569, %333 : vector<8x128xf32>
    %571 = vector.extract_strided_slice %570 {offsets = [0, 0], sizes = [2, 128], strides = [1, 1]} : vector<8x128xf32> to vector<2x128xf32>
    %572 = arith.truncf %571 : vector<2x128xf32> to vector<2x128xbf16>
    %c0_104 = arith.constant 0 : index
    %c0_105 = arith.constant 0 : index
    %573 = vector.load %arg5[%c0_104, %c0_105] : memref<1024x512xbf16, #tpu.memory_space<vmem>>, vector<128x512xbf16>
    %cst_106 = arith.constant dense<0.000000e+00> : vector<2x512xf32>
    %574 = tpu.matmul %572, %573, %cst_106 {dimension_numbers = #tpu.dot_dimension_numbers<[1], [0], [0], [1], [0, 0, 1, 1], [], []>} : vector<2x128xbf16>, vector<128x512xbf16>, vector<2x512xf32> -> vector<2x512xf32>
    %575 = vector.extract_strided_slice %570 {offsets = [2, 0], sizes = [2, 128], strides = [1, 1]} : vector<8x128xf32> to vector<2x128xf32>
    %576 = arith.truncf %575 : vector<2x128xf32> to vector<2x128xbf16>
    %c128_107 = arith.constant 128 : index
    %c0_108 = arith.constant 0 : index
    %577 = vector.load %arg5[%c128_107, %c0_108] : memref<1024x512xbf16, #tpu.memory_space<vmem>>, vector<128x512xbf16>
    %cst_109 = arith.constant dense<0.000000e+00> : vector<2x512xf32>
    %578 = tpu.matmul %576, %577, %cst_109 {dimension_numbers = #tpu.dot_dimension_numbers<[1], [0], [0], [1], [0, 0, 1, 1], [], []>} : vector<2x128xbf16>, vector<128x512xbf16>, vector<2x512xf32> -> vector<2x512xf32>
    %579 = arith.addf %574, %578 : vector<2x512xf32>
    %580 = vector.extract_strided_slice %570 {offsets = [4, 0], sizes = [2, 128], strides = [1, 1]} : vector<8x128xf32> to vector<2x128xf32>
    %581 = arith.truncf %580 : vector<2x128xf32> to vector<2x128xbf16>
    %c256_110 = arith.constant 256 : index
    %c0_111 = arith.constant 0 : index
    %582 = vector.load %arg5[%c256_110, %c0_111] : memref<1024x512xbf16, #tpu.memory_space<vmem>>, vector<128x512xbf16>
    %cst_112 = arith.constant dense<0.000000e+00> : vector<2x512xf32>
    %583 = tpu.matmul %581, %582, %cst_112 {dimension_numbers = #tpu.dot_dimension_numbers<[1], [0], [0], [1], [0, 0, 1, 1], [], []>} : vector<2x128xbf16>, vector<128x512xbf16>, vector<2x512xf32> -> vector<2x512xf32>
    %584 = arith.addf %579, %583 : vector<2x512xf32>
    %585 = vector.extract_strided_slice %570 {offsets = [6, 0], sizes = [2, 128], strides = [1, 1]} : vector<8x128xf32> to vector<2x128xf32>
    %586 = arith.truncf %585 : vector<2x128xf32> to vector<2x128xbf16>
    %c384_113 = arith.constant 384 : index
    %c0_114 = arith.constant 0 : index
    %587 = vector.load %arg5[%c384_113, %c0_114] : memref<1024x512xbf16, #tpu.memory_space<vmem>>, vector<128x512xbf16>
    %cst_115 = arith.constant dense<0.000000e+00> : vector<2x512xf32>
    %588 = tpu.matmul %586, %587, %cst_115 {dimension_numbers = #tpu.dot_dimension_numbers<[1], [0], [0], [1], [0, 0, 1, 1], [], []>} : vector<2x128xbf16>, vector<128x512xbf16>, vector<2x512xf32> -> vector<2x512xf32>
    %589 = arith.addf %584, %588 : vector<2x512xf32>
    %c1_116 = arith.constant 1 : index
    %590 = memref.load %arg2[%c1_116] : memref<2xf32, #tpu.memory_space<smem>>
    %591 = vector.broadcast %590 : f32 to vector<8x16xf32>
    %592 = arith.addf %529, %591 : vector<8x16xf32>
    %593 = vector.shape_cast %592 : vector<8x16xf32> to vector<1x8x16xf32>
    %cst_117 = arith.constant dense<0.000000e+00> : vector<1xf32>
    %594 = vector.multi_reduction <add>, %593, %cst_117 [1, 2] : vector<1x8x16xf32> to vector<1xf32>
    %595 = vector.shape_cast %594 : vector<1xf32> to vector<1x1x1xf32>
    %596 = vector.extract %595[0, 0, 0] : f32 from vector<1x1x1xf32>
    %cst_118 = arith.constant 1.280000e+02 : f32
    %597 = arith.divf %596, %cst_118 : f32
    %598 = vector.broadcast %597 : f32 to vector<8x16xf32>
    %599 = arith.subf %592, %598 : vector<8x16xf32>
    %600 = arith.mulf %599, %599 : vector<8x16xf32>
    %601 = vector.shape_cast %600 : vector<8x16xf32> to vector<1x8x16xf32>
    %cst_119 = arith.constant dense<0.000000e+00> : vector<1xf32>
    %602 = vector.multi_reduction <add>, %601, %cst_119 [1, 2] : vector<1x8x16xf32> to vector<1xf32>
    %603 = vector.shape_cast %602 : vector<1xf32> to vector<1x1x1xf32>
    %604 = vector.extract %603[0, 0, 0] : f32 from vector<1x1x1xf32>
    %cst_120 = arith.constant 1.280000e+02 : f32
    %605 = arith.divf %604, %cst_120 : f32
    %606 = vector.broadcast %597 : f32 to vector<8x16xf32>
    %607 = arith.subf %592, %606 : vector<8x16xf32>
    %cst_121 = arith.constant 9.99999974E-6 : f32
    %608 = arith.addf %605, %cst_121 : f32
    %609 = math.rsqrt %608 : f32
    %610 = vector.broadcast %609 : f32 to vector<8x16xf32>
    %611 = arith.mulf %607, %610 : vector<8x16xf32>
    %c1_122 = arith.constant 1 : index
    %612 = memref.load %arg3[%c1_122] : memref<2xf32, #tpu.memory_space<smem>>
    %613 = vector.broadcast %612 : f32 to vector<8x16xf32>
    %614 = arith.mulf %613, %611 : vector<8x16xf32>
    %c1_123 = arith.constant 1 : index
    %615 = memref.load %arg4[%c1_123] : memref<2xf32, #tpu.memory_space<smem>>
    %616 = vector.broadcast %615 : f32 to vector<8x16xf32>
    %617 = arith.addf %614, %616 : vector<8x16xf32>
    %618 = arith.negf %617 : vector<8x16xf32>
    %619 = math.exp %618 : vector<8x16xf32>
    %cst_124 = arith.constant 1.000000e+00 : f32
    %620 = vector.broadcast %cst_124 : f32 to vector<8x16xf32>
    %621 = arith.addf %620, %619 : vector<8x16xf32>
    %622 = arith.divf %620, %621 : vector<8x16xf32>
    %623 = tpu.concatenate %622, %0 in 1 : vector<8x16xf32>, vector<8x112xf32> -> vector<8x128xf32>
    %c16_i32_125 = arith.constant 16 : i32
    %624 = tpu.dynamic_rotate %623 by %c16_i32_125 dim 1 : vector<8x128xf32>, i32 -> vector<8x128xf32>
    %625 = arith.addf %623, %624 : vector<8x128xf32>
    %c32_i32_126 = arith.constant 32 : i32
    %626 = tpu.dynamic_rotate %625 by %c32_i32_126 dim 1 : vector<8x128xf32>, i32 -> vector<8x128xf32>
    %627 = arith.addf %625, %626 : vector<8x128xf32>
    %c64_i32_127 = arith.constant 64 : i32
    %628 = tpu.dynamic_rotate %627 by %c64_i32_127 dim 1 : vector<8x128xf32>, i32 -> vector<8x128xf32>
    %629 = arith.addf %627, %628 : vector<8x128xf32>
    %630 = arith.mulf %629, %333 : vector<8x128xf32>
    %631 = vector.extract_strided_slice %630 {offsets = [0, 0], sizes = [2, 128], strides = [1, 1]} : vector<8x128xf32> to vector<2x128xf32>
    %632 = arith.truncf %631 : vector<2x128xf32> to vector<2x128xbf16>
    %c512_128 = arith.constant 512 : index
    %c0_129 = arith.constant 0 : index
    %633 = vector.load %arg5[%c512_128, %c0_129] : memref<1024x512xbf16, #tpu.memory_space<vmem>>, vector<128x512xbf16>
    %cst_130 = arith.constant dense<0.000000e+00> : vector<2x512xf32>
    %634 = tpu.matmul %632, %633, %cst_130 {dimension_numbers = #tpu.dot_dimension_numbers<[1], [0], [0], [1], [0, 0, 1, 1], [], []>} : vector<2x128xbf16>, vector<128x512xbf16>, vector<2x512xf32> -> vector<2x512xf32>
    %635 = arith.addf %589, %634 : vector<2x512xf32>
    %636 = vector.extract_strided_slice %630 {offsets = [2, 0], sizes = [2, 128], strides = [1, 1]} : vector<8x128xf32> to vector<2x128xf32>
    %637 = arith.truncf %636 : vector<2x128xf32> to vector<2x128xbf16>
    %c640_131 = arith.constant 640 : index
    %c0_132 = arith.constant 0 : index
    %638 = vector.load %arg5[%c640_131, %c0_132] : memref<1024x512xbf16, #tpu.memory_space<vmem>>, vector<128x512xbf16>
    %cst_133 = arith.constant dense<0.000000e+00> : vector<2x512xf32>
    %639 = tpu.matmul %637, %638, %cst_133 {dimension_numbers = #tpu.dot_dimension_numbers<[1], [0], [0], [1], [0, 0, 1, 1], [], []>} : vector<2x128xbf16>, vector<128x512xbf16>, vector<2x512xf32> -> vector<2x512xf32>
    %640 = arith.addf %635, %639 : vector<2x512xf32>
    %641 = vector.extract_strided_slice %630 {offsets = [4, 0], sizes = [2, 128], strides = [1, 1]} : vector<8x128xf32> to vector<2x128xf32>
    %642 = arith.truncf %641 : vector<2x128xf32> to vector<2x128xbf16>
    %c768_134 = arith.constant 768 : index
    %c0_135 = arith.constant 0 : index
    %643 = vector.load %arg5[%c768_134, %c0_135] : memref<1024x512xbf16, #tpu.memory_space<vmem>>, vector<128x512xbf16>
    %cst_136 = arith.constant dense<0.000000e+00> : vector<2x512xf32>
    %644 = tpu.matmul %642, %643, %cst_136 {dimension_numbers = #tpu.dot_dimension_numbers<[1], [0], [0], [1], [0, 0, 1, 1], [], []>} : vector<2x128xbf16>, vector<128x512xbf16>, vector<2x512xf32> -> vector<2x512xf32>
    %645 = arith.addf %640, %644 : vector<2x512xf32>
    %646 = vector.extract_strided_slice %630 {offsets = [6, 0], sizes = [2, 128], strides = [1, 1]} : vector<8x128xf32> to vector<2x128xf32>
    %647 = arith.truncf %646 : vector<2x128xf32> to vector<2x128xbf16>
    %c896_137 = arith.constant 896 : index
    %c0_138 = arith.constant 0 : index
    %648 = vector.load %arg5[%c896_137, %c0_138] : memref<1024x512xbf16, #tpu.memory_space<vmem>>, vector<128x512xbf16>
    %cst_139 = arith.constant dense<0.000000e+00> : vector<2x512xf32>
    %649 = tpu.matmul %647, %648, %cst_139 {dimension_numbers = #tpu.dot_dimension_numbers<[1], [0], [0], [1], [0, 0, 1, 1], [], []>} : vector<2x128xbf16>, vector<128x512xbf16>, vector<2x512xf32> -> vector<2x512xf32>
    %650 = arith.addf %645, %649 : vector<2x512xf32>
    %c0_140 = arith.constant 0 : index
    %c0_141 = arith.constant 0 : index
    %651 = vector.load %arg6[%c0_140, %c0_141] : memref<1x512xf32, #tpu.memory_space<vmem>>, vector<1x512xf32>
    %652 = vector.broadcast %651 : vector<1x512xf32> to vector<2x512xf32>
    %653 = arith.addf %650, %652 : vector<2x512xf32>
    %c0_142 = arith.constant 0 : index
    %c0_143 = arith.constant 0 : index
    %654 = vector.load %arg7[%c0_142, %c0_143] : memref<2x512xf32, #tpu.memory_space<vmem>>, vector<2x512xf32>
    tpu.vector_store %arg7[%c0_142, %c0_143], %653 {strides = array<i32>} : memref<2x512xf32, #tpu.memory_space<vmem>>, vector<2x512xf32>,
    return
  }
}

</mosaic_0001>

<llo_original>
// kernel: _forward.1
$region0: #{_forward.1}
  #allocation0 [shape = 'u32[]', space=smem, size = 0x4, offset = 0x4, fixed_abs, tag = 'smem constant byte address 0x4 - core index']
  #allocation1 [shape = 'u32[144,128]{1,0:T(1,128)}', space=vmem, size = 0x12000, scoped, tag = 'internal scratch']
  %s0 = inlined_call_operand.vmem [shape: f32[2,512], index: 0, kind: input, shape index: {}]
  %s1 = inlined_call_operand.vmem [shape: f32[42], index: 1, kind: input, shape index: {}]
  %s2 = inlined_call_operand.vmem [shape: f32[2], index: 2, kind: input, shape index: {}]
  %s3 = inlined_call_operand.vmem [shape: f32[2], index: 3, kind: input, shape index: {}]
  %s4 = inlined_call_operand.vmem [shape: f32[2], index: 4, kind: input, shape index: {}]
  %s5 = inlined_call_operand.hbm [shape: bf16[1024,512], index: 5, kind: input, shape index: {}]
  %s6 = inlined_call_operand.vmem [shape: f32[1,512], index: 6, kind: input, shape index: {}]
  %s7 = inlined_call_operand.vmem [shape: f32[2,512], index: 7, kind: output, shape index: {}]
  %s8 = sld [smem:[#allocation0]]
  $region58: #{_forward.1} parent=0
    _
  %s10 = ssub.s32 1, %s8
  %s11 = scalar_select 0, %s10, %s8
  $region1: #{_forward.1} parent=0
    #allocation2 [shape = 'u8[512]{0}', space=smem, size = 0x200, scoped, tag = 'input window, operand 1, single buffered']
    #allocation3 [shape = 's32[1]{0}', space=sflag, size = 0x4, scoped, tag = 'scoped memory for _forward.1']
    #allocation4 [shape = 's32[1]{0}', space=sflag, size = 0x4, scoped, tag = 'scoped memory for _forward.1']
    #allocation5 [shape = 'u8[512]{0}', space=smem, size = 0x200, scoped, tag = 'input window, operand 2, single buffered']
    #allocation6 [shape = 's32[1]{0}', space=sflag, size = 0x4, scoped, tag = 'scoped memory for _forward.1']
    #allocation7 [shape = 'u8[512]{0}', space=smem, size = 0x200, scoped, tag = 'input window, operand 3, single buffered']
    #allocation8 [shape = 'u8[512]{0}', space=smem, size = 0x200, scoped, tag = 'input window, operand 4, single buffered']
    #allocation9 [shape = 's32[1]{0}', space=sflag, size = 0x4, scoped, tag = 'scoped memory for _forward.1']
    #allocation10 [shape = 'u8[1048576]{0}', space=vmem, size = 0x100000, scoped, tag = 'input window, operand 5, single buffered']
    %12 = vsyncpa [#allocation4], 0
    %13 = vsyncpa [#allocation6], 0
    %14 = vsyncpa [#allocation9], 0
    %15 = vsyncpa [#allocation3], 0
    // Predicated region
    $region2: #{_forward.1} parent=1 // pred_check
      _
    $region3: #{_forward.1} parent=1 // pred_check_branch
      %17 = sbr.rel (0) target = $region5
    $region4: #{_forward.1} parent=1 // pred_region
      _
    $region5: #{_forward.1} parent=1 // pred_fallthru
      _
    // Predicated region
    $region6: #{_forward.1} parent=1 // pred_check
      _
    $region7: #{_forward.1} parent=1 // pred_check_branch
      %19 = sbr.rel (0) target = $region9
    $region8: #{_forward.1} parent=1 // pred_region
      %s21 = ssub.s32 16, 16
      %22 = vsyncadd [#allocation4], %s21
      %s24 = sshll.u32 %s1, 4
      %s25 = int_to_ptr.vmem [resolvable:$true] %s24
      %27 = dma.vmem_to_smem %s25, 16, [#allocation2], [#allocation4]
    $region9: #{_forward.1} parent=1 // pred_fallthru
      _
    // Predicated region
    $region10: #{_forward.1} parent=1 // pred_check
      _
    $region11: #{_forward.1} parent=1 // pred_check_branch
      %29 = sbr.rel (0) target = $region13
    $region12: #{_forward.1} parent=1 // pred_region
      %s31 = ssub.s32 16, 16
      %32 = vsyncadd [#allocation6], %s31
      %s34 = sshll.u32 %s2, 4
      %s35 = int_to_ptr.vmem [resolvable:$true] %s34
      %37 = dma.vmem_to_smem %s35, 16, [#allocation5], [#allocation6]
    $region13: #{_forward.1} parent=1 // pred_fallthru
      _
    // Predicated region
    $region14: #{_forward.1} parent=1 // pred_check
      _
    $region15: #{_forward.1} parent=1 // pred_check_branch
      %39 = sbr.rel (0) target = $region17
    $region16: #{_forward.1} parent=1 // pred_region
      %s41 = ssub.s32 16, 16
      %42 = vsyncadd [#allocation6], %s41
      %s44 = sshll.u32 %s3, 4
      %s45 = int_to_ptr.vmem [resolvable:$true] %s44
      %47 = dma.vmem_to_smem %s45, 16, [#allocation7], [#allocation6]
    $region17: #{_forward.1} parent=1 // pred_fallthru
      _
    // Predicated region
    $region18: #{_forward.1} parent=1 // pred_check
      _
    $region19: #{_forward.1} parent=1 // pred_check_branch
      %49 = sbr.rel (0) target = $region21
    $region20: #{_forward.1} parent=1 // pred_region
      %s51 = ssub.s32 16, 16
      %52 = vsyncadd [#allocation9], %s51
      %s54 = sshll.u32 %s4, 4
      %s55 = int_to_ptr.vmem [resolvable:$true] %s54
      %57 = dma.vmem_to_smem %s55, 16, [#allocation8], [#allocation9]
    $region21: #{_forward.1} parent=1 // pred_fallthru
      _
    // Predicated region
    $region22: #{_forward.1} parent=1 // pred_check
      _
    $region23: #{_forward.1} parent=1 // pred_check_branch
      %59 = sbr.rel (0) target = $region25
    $region24: #{_forward.1} parent=1 // pred_region
      %s61 = ssub.s32 32768, 32768
      %62 = vsyncadd [#allocation3], %s61
      %s63 = sshll.u32 [#allocation10], 4
      %s64 = int_to_ptr.vmem [resolvable:$true] %s63
      %69 = dma.hbm_to_vmem [thread:$0]  %s5, 32768, %s64, [#allocation3], 256, 256, 16
    $region25: #{_forward.1} parent=1 // pred_fallthru
      _
    // Predicated region
    $region26: #{_forward.1} parent=1 // pred_check
      _
    $region27: #{_forward.1} parent=1 // pred_check_branch
      %71 = sbr.rel (0) target = $region29
    $region28: #{_forward.1} parent=1 // pred_region
      _
    $region29: #{_forward.1} parent=1 // pred_fallthru
      _
    // Predicated region
    $region30: #{_forward.1} parent=1 // pred_check
      _
    $region31: #{_forward.1} parent=1 // pred_check_branch
      %73 = sbr.rel (0) target = $region33
    $region32: #{_forward.1} parent=1 // pred_region
      %74 = dma.done [#allocation4], 16
    $region33: #{_forward.1} parent=1 // pred_fallthru
      _
    // Predicated region
    $region34: #{_forward.1} parent=1 // pred_check
      _
    $region35: #{_forward.1} parent=1 // pred_check_branch
      %76 = sbr.rel (0) target = $region37
    $region36: #{_forward.1} parent=1 // pred_region
      %77 = dma.done [#allocation6], 16
    $region37: #{_forward.1} parent=1 // pred_fallthru
      _
    // Predicated region
    $region38: #{_forward.1} parent=1 // pred_check
      _
    $region39: #{_forward.1} parent=1 // pred_check_branch
      %79 = sbr.rel (0) target = $region41
    $region40: #{_forward.1} parent=1 // pred_region
      %80 = dma.done [#allocation6], 16
    $region41: #{_forward.1} parent=1 // pred_fallthru
      _
    // Predicated region
    $region42: #{_forward.1} parent=1 // pred_check
      _
    $region43: #{_forward.1} parent=1 // pred_check_branch
      %82 = sbr.rel (0) target = $region45
    $region44: #{_forward.1} parent=1 // pred_region
      %83 = dma.done [#allocation9], 16
    $region45: #{_forward.1} parent=1 // pred_fallthru
      _
    // Predicated region
    $region46: #{_forward.1} parent=1 // pred_check
      _
    $region47: #{_forward.1} parent=1 // pred_check_branch
      %85 = sbr.rel (0) target = $region49
    $region48: #{_forward.1} parent=1 // pred_region
      %86 = dma.done [#allocation3], 32768
    $region49: #{_forward.1} parent=1 // pred_fallthru
      _
    %87 = sfence
    %v89 = vld [vmem:[%s0] sm:$0xff]
    %v91 = vcombine.low %v89, %v89
    %v93 = vunpack.c.l.s4 1983009808
    %v94 = vunpack.c.0.s8 %v93
    %v95 = vlaneseq
    %v96 = vshrl.u32 %v95, 7
    %v97 = vsub.s32 %v94, %v96
    %v98 = vrot.slane %v91, %v97
    %v100 = vunpack.c.l.s4 1983009808
    %v101 = vunpack.c.0.s8 %v100
    %v102 = vlaneseq
    %v103 = vshrl.u32 %v102, 7
    %v104 = vsub.s32 %v101, %v103
    %v105 = vrot.slane %v89, %v104
    %v106 = vcombine.high %v98, %v98
    %v108 = vcombine.high %v89, %v89
    %v110 = vunpack.c.l.s4 1983009808
    %v111 = vunpack.c.0.s8 %v110
    %v112 = vlaneseq
    %v113 = vshrl.u32 %v112, 7
    %v114 = vsub.s32 %v111, %v113
    %v115 = vrot.slane %v108, %v114
    %v116 = vcombine.low %v115, %v115
    %vm119 = vcmask 1041408
    %v120 = vsel %vm119, %v89, %v106
    %vm121 = vcmask 1043456
    %v122 = vsel %vm121, %v120, %v116
    %vm123 = vcmask 1045504
    %v124 = vsel %vm123, %v122, %v105
    %125 = vrot.lane.b32.xlu0 %v124, 16
    %v126 = vpop.permute.xlu0 %125
    %v127 = vmax.f32 %v124, %v126
    %128 = vrot.lane.b32.xlu0 %v127, 32
    %v129 = vpop.permute.xlu0 %128
    %v130 = vmax.f32 %v127, %v129
    %131 = vrot.lane.b32.xlu0 %v130, 64
    %v132 = vpop.permute.xlu0 %131
    %v133 = vmax.f32 %v130, %v132
    %135 = vrot.lane.b32.xlu0 %v133, 3
    %v136 = vpop.permute.xlu0 %135
    %vm138 = vcmask 23552
    %v139 = vsel %vm138, 0.0, %v136
    %vm140 = vcmask 154624
    %v141 = vsel %vm140, %v139, 0.0
    %v143 = vrot.slane %v141, 6
    %v145 = vsel %vm119, 0.0, %v143
    %v146 = vsel %vm119, %v143, 0.0
    %s147 = sld [smem:[#allocation2]]
    %v148 = vstv %s147
    %v149 = vmul.f32 %v148, %v145
    %s150 = sld [smem:[#allocation2 + $0x15]]
    %v151 = vstv %s150
    %v152 = vmul.f32 %v151, %v145
    %s153 = sld [smem:[#allocation2 + $0x1]]
    %v154 = vstv %s153
    %v155 = vmul.f32 %v154, %v145
    %157 = vrot.lane.b32.xlu0 %v155, 127
    %v158 = vpop.permute.xlu0 %157
    %v160 = vadd.f32 %v149, %v158
    %s161 = sld [smem:[#allocation2 + $0x16]]
    %v162 = vstv %s161
    %v163 = vmul.f32 %v162, %v145
    %165 = vrot.lane.b32.xlu0 %v163, 127
    %v166 = vpop.permute.xlu0 %165
    %v168 = vadd.f32 %v152, %v166
    %s169 = sld [smem:[#allocation2 + $0x2]]
    %v170 = vstv %s169
    %v171 = vmul.f32 %v170, %v145
    %173 = vrot.lane.b32.xlu0 %v171, 126
    %v174 = vpop.permute.xlu0 %173
    %v176 = vadd.f32 %v160, %v174
    %s177 = sld [smem:[#allocation2 + $0x17]]
    %v178 = vstv %s177
    %v179 = vmul.f32 %v178, %v145
    %181 = vrot.lane.b32.xlu0 %v179, 126
    %v182 = vpop.permute.xlu0 %181
    %v184 = vadd.f32 %v168, %v182
    %s185 = sld [smem:[#allocation2 + $0x3]]
    %v186 = vstv %s185
    %v187 = vmul.f32 %v186, %v145
    %189 = vrot.lane.b32.xlu0 %v187, 125
    %v190 = vpop.permute.xlu0 %189
    %v192 = vadd.f32 %v176, %v190
    %s193 = sld [smem:[#allocation2 + $0x18]]
    %v194 = vstv %s193
    %v195 = vmul.f32 %v194, %v145
    %197 = vrot.lane.b32.xlu0 %v195, 125
    %v198 = vpop.permute.xlu0 %197
    %v200 = vadd.f32 %v184, %v198
    %s201 = sld [smem:[#allocation2 + $0x4]]
    %v202 = vstv %s201
    %v203 = vmul.f32 %v202, %v145
    %205 = vrot.lane.b32.xlu0 %v203, 124
    %v206 = vpop.permute.xlu0 %205
    %v208 = vadd.f32 %v192, %v206
    %s209 = sld [smem:[#allocation2 + $0x19]]
    %v210 = vstv %s209
    %v211 = vmul.f32 %v210, %v145
    %213 = vrot.lane.b32.xlu0 %v211, 124
    %v214 = vpop.permute.xlu0 %213
    %v216 = vadd.f32 %v200, %v214
    %s217 = sld [smem:[#allocation2 + $0x5]]
    %v218 = vstv %s217
    %v219 = vmul.f32 %v218, %v145
    %221 = vrot.lane.b32.xlu0 %v219, 123
    %v222 = vpop.permute.xlu0 %221
    %v224 = vadd.f32 %v208, %v222
    %s225 = sld [smem:[#allocation2 + $0x1a]]
    %v226 = vstv %s225
    %v227 = vmul.f32 %v226, %v145
    %229 = vrot.lane.b32.xlu0 %v227, 123
    %v230 = vpop.permute.xlu0 %229
    %v232 = vadd.f32 %v216, %v230
    %s233 = sld [smem:[#allocation2 + $0x6]]
    %v234 = vstv %s233
    %v235 = vmul.f32 %v234, %v145
    %237 = vrot.lane.b32.xlu0 %v235, 122
    %v238 = vpop.permute.xlu0 %237
    %v240 = vadd.f32 %v224, %v238
    %s241 = sld [smem:[#allocation2 + $0x1b]]
    %v242 = vstv %s241
    %v243 = vmul.f32 %v242, %v145
    %245 = vrot.lane.b32.xlu0 %v243, 122
    %v246 = vpop.permute.xlu0 %245
    %v248 = vadd.f32 %v232, %v246
    %s249 = sld [smem:[#allocation2 + $0x7]]
    %v250 = vstv %s249
    %v251 = vmul.f32 %v250, %v145
    %v252 = vmul.f32 %v250, %v146
    %v255 = vrot.slane %v251, 2
    %v256 = vrot.slane %v252, 2
    %v257 = vsel %vm123, %v255, %v256
    %v259 = vadd.f32 %v240, %v257
    %s260 = sld [smem:[#allocation2 + $0x1c]]
    %v261 = vstv %s260
    %v262 = vmul.f32 %v261, %v145
    %v263 = vmul.f32 %v261, %v146
    %v266 = vrot.slane %v262, 2
    %v267 = vrot.slane %v263, 2
    %v268 = vsel %vm123, %v266, %v267
    %v270 = vadd.f32 %v248, %v268
    %s271 = sld [smem:[#allocation2 + $0x8]]
    %v272 = vstv %s271
    %v273 = vmul.f32 %v272, %v145
    %v274 = vmul.f32 %v272, %v146
    %v277 = vrot.slane %v273, 2
    %v278 = vrot.slane %v274, 2
    %v279 = vsel %vm123, %v277, %v278
    %280 = vrot.lane.b32.xlu0 %v279, 127
    %v281 = vpop.permute.xlu0 %280
    %v283 = vadd.f32 %v259, %v281
    %s284 = sld [smem:[#allocation2 + $0x1d]]
    %v285 = vstv %s284
    %v286 = vmul.f32 %v285, %v145
    %v287 = vmul.f32 %v285, %v146
    %v290 = vrot.slane %v286, 2
    %v291 = vrot.slane %v287, 2
    %v292 = vsel %vm123, %v290, %v291
    %293 = vrot.lane.b32.xlu0 %v292, 127
    %v294 = vpop.permute.xlu0 %293
    %v296 = vadd.f32 %v270, %v294
    %s297 = sld [smem:[#allocation2 + $0x9]]
    %v298 = vstv %s297
    %v299 = vmul.f32 %v298, %v145
    %v300 = vmul.f32 %v298, %v146
    %v303 = vrot.slane %v299, 2
    %v304 = vrot.slane %v300, 2
    %v305 = vsel %vm123, %v303, %v304
    %306 = vrot.lane.b32.xlu0 %v305, 126
    %v307 = vpop.permute.xlu0 %306
    %v309 = vadd.f32 %v283, %v307
    %s310 = sld [smem:[#allocation2 + $0x1e]]
    %v311 = vstv %s310
    %v312 = vmul.f32 %v311, %v145
    %v313 = vmul.f32 %v311, %v146
    %v316 = vrot.slane %v312, 2
    %v317 = vrot.slane %v313, 2
    %v318 = vsel %vm123, %v316, %v317
    %319 = vrot.lane.b32.xlu0 %v318, 126
    %v320 = vpop.permute.xlu0 %319
    %v322 = vadd.f32 %v296, %v320
    %s323 = sld [smem:[#allocation2 + $0xa]]
    %v324 = vstv %s323
    %v325 = vmul.f32 %v324, %v145
    %v326 = vmul.f32 %v324, %v146
    %v329 = vrot.slane %v325, 2
    %v330 = vrot.slane %v326, 2
    %v331 = vsel %vm123, %v329, %v330
    %332 = vrot.lane.b32.xlu0 %v331, 125
    %v333 = vpop.permute.xlu0 %332
    %v335 = vadd.f32 %v309, %v333
    %s336 = sld [smem:[#allocation2 + $0x1f]]
    %v337 = vstv %s336
    %v338 = vmul.f32 %v337, %v145
    %v339 = vmul.f32 %v337, %v146
    %v342 = vrot.slane %v338, 2
    %v343 = vrot.slane %v339, 2
    %v344 = vsel %vm123, %v342, %v343
    %345 = vrot.lane.b32.xlu0 %v344, 125
    %v346 = vpop.permute.xlu0 %345
    %v348 = vadd.f32 %v322, %v346
    %s349 = sld [smem:[#allocation2 + $0xb]]
    %v350 = vstv %s349
    %v351 = vmul.f32 %v350, %v145
    %v352 = vmul.f32 %v350, %v146
    %v355 = vrot.slane %v351, 2
    %v356 = vrot.slane %v352, 2
    %v357 = vsel %vm123, %v355, %v356
    %358 = vrot.lane.b32.xlu0 %v357, 124
    %v359 = vpop.permute.xlu0 %358
    %v361 = vadd.f32 %v335, %v359
    %s362 = sld [smem:[#allocation2 + $0x20]]
    %v363 = vstv %s362
    %v364 = vmul.f32 %v363, %v145
    %v365 = vmul.f32 %v363, %v146
    %v368 = vrot.slane %v364, 2
    %v369 = vrot.slane %v365, 2
    %v370 = vsel %vm123, %v368, %v369
    %371 = vrot.lane.b32.xlu0 %v370, 124
    %v372 = vpop.permute.xlu0 %371
    %v374 = vadd.f32 %v348, %v372
    %s375 = sld [smem:[#allocation2 + $0xc]]
    %v376 = vstv %s375
    %v377 = vmul.f32 %v376, %v145
    %v378 = vmul.f32 %v376, %v146
    %v381 = vrot.slane %v377, 2
    %v382 = vrot.slane %v378, 2
    %v383 = vsel %vm123, %v381, %v382
    %384 = vrot.lane.b32.xlu0 %v383, 123
    %v385 = vpop.permute.xlu0 %384
    %v387 = vadd.f32 %v361, %v385
    %s388 = sld [smem:[#allocation2 + $0x21]]
    %v389 = vstv %s388
    %v390 = vmul.f32 %v389, %v145
    %v391 = vmul.f32 %v389, %v146
    %v394 = vrot.slane %v390, 2
    %v395 = vrot.slane %v391, 2
    %v396 = vsel %vm123, %v394, %v395
    %397 = vrot.lane.b32.xlu0 %v396, 123
    %v398 = vpop.permute.xlu0 %397
    %v400 = vadd.f32 %v374, %v398
    %s401 = sld [smem:[#allocation2 + $0xd]]
    %v402 = vstv %s401
    %v403 = vmul.f32 %v402, %v145
    %v404 = vmul.f32 %v402, %v146
    %v407 = vrot.slane %v403, 2
    %v408 = vrot.slane %v404, 2
    %v409 = vsel %vm123, %v407, %v408
    %410 = vrot.lane.b32.xlu0 %v409, 122
    %v411 = vpop.permute.xlu0 %410
    %v413 = vadd.f32 %v387, %v411
    %s414 = sld [smem:[#allocation2 + $0x22]]
    %v415 = vstv %s414
    %v416 = vmul.f32 %v415, %v145
    %v417 = vmul.f32 %v415, %v146
    %v420 = vrot.slane %v416, 2
    %v421 = vrot.slane %v417, 2
    %v422 = vsel %vm123, %v420, %v421
    %423 = vrot.lane.b32.xlu0 %v422, 122
    %v424 = vpop.permute.xlu0 %423
    %v426 = vadd.f32 %v400, %v424
    %s427 = sld [smem:[#allocation2 + $0xe]]
    %v428 = vstv %s427
    %v429 = vmul.f32 %v428, %v145
    %v430 = vmul.f32 %v428, %v146
    %v433 = vrot.slane %v429, 4
    %v434 = vrot.slane %v430, 4
    %v435 = vsel %vm121, %v433, %v434
    %v437 = vadd.f32 %v413, %v435
    %s438 = sld [smem:[#allocation2 + $0x23]]
    %v439 = vstv %s438
    %v440 = vmul.f32 %v439, %v145
    %v441 = vmul.f32 %v439, %v146
    %v444 = vrot.slane %v440, 4
    %v445 = vrot.slane %v441, 4
    %v446 = vsel %vm121, %v444, %v445
    %v448 = vadd.f32 %v426, %v446
    %s449 = sld [smem:[#allocation2 + $0xf]]
    %v450 = vstv %s449
    %v451 = vmul.f32 %v450, %v145
    %v452 = vmul.f32 %v450, %v146
    %v455 = vrot.slane %v451, 4
    %v456 = vrot.slane %v452, 4
    %v457 = vsel %vm121, %v455, %v456
    %458 = vrot.lane.b32.xlu0 %v457, 127
    %v459 = vpop.permute.xlu0 %458
    %v461 = vadd.f32 %v437, %v459
    %s462 = sld [smem:[#allocation2 + $0x24]]
    %v463 = vstv %s462
    %v464 = vmul.f32 %v463, %v145
    %v465 = vmul.f32 %v463, %v146
    %v468 = vrot.slane %v464, 4
    %v469 = vrot.slane %v465, 4
    %v470 = vsel %vm121, %v468, %v469
    %471 = vrot.lane.b32.xlu0 %v470, 127
    %v472 = vpop.permute.xlu0 %471
    %v474 = vadd.f32 %v448, %v472
    %s475 = sld [smem:[#allocation2 + $0x10]]
    %v476 = vstv %s475
    %v477 = vmul.f32 %v476, %v145
    %v478 = vmul.f32 %v476, %v146
    %v481 = vrot.slane %v477, 4
    %v482 = vrot.slane %v478, 4
    %v483 = vsel %vm121, %v481, %v482
    %484 = vrot.lane.b32.xlu0 %v483, 126
    %v485 = vpop.permute.xlu0 %484
    %v487 = vadd.f32 %v461, %v485
    %s488 = sld [smem:[#allocation2 + $0x25]]
    %v489 = vstv %s488
    %v490 = vmul.f32 %v489, %v145
    %v491 = vmul.f32 %v489, %v146
    %v494 = vrot.slane %v490, 4
    %v495 = vrot.slane %v491, 4
    %v496 = vsel %vm121, %v494, %v495
    %497 = vrot.lane.b32.xlu0 %v496, 126
    %v498 = vpop.permute.xlu0 %497
    %v500 = vadd.f32 %v474, %v498
    %s501 = sld [smem:[#allocation2 + $0x11]]
    %v502 = vstv %s501
    %v503 = vmul.f32 %v502, %v145
    %v504 = vmul.f32 %v502, %v146
    %v507 = vrot.slane %v503, 4
    %v508 = vrot.slane %v504, 4
    %v509 = vsel %vm121, %v507, %v508
    %510 = vrot.lane.b32.xlu0 %v509, 125
    %v511 = vpop.permute.xlu0 %510
    %v513 = vadd.f32 %v487, %v511
    %s514 = sld [smem:[#allocation2 + $0x26]]
    %v515 = vstv %s514
    %v516 = vmul.f32 %v515, %v145
    %v517 = vmul.f32 %v515, %v146
    %v520 = vrot.slane %v516, 4
    %v521 = vrot.slane %v517, 4
    %v522 = vsel %vm121, %v520, %v521
    %523 = vrot.lane.b32.xlu0 %v522, 125
    %v524 = vpop.permute.xlu0 %523
    %v526 = vadd.f32 %v500, %v524
    %s527 = sld [smem:[#allocation2 + $0x12]]
    %v528 = vstv %s527
    %v529 = vmul.f32 %v528, %v145
    %v530 = vmul.f32 %v528, %v146
    %v533 = vrot.slane %v529, 4
    %v534 = vrot.slane %v530, 4
    %v535 = vsel %vm121, %v533, %v534
    %536 = vrot.lane.b32.xlu0 %v535, 124
    %v537 = vpop.permute.xlu0 %536
    %v539 = vadd.f32 %v513, %v537
    %s540 = sld [smem:[#allocation2 + $0x27]]
    %v541 = vstv %s540
    %v542 = vmul.f32 %v541, %v145
    %v543 = vmul.f32 %v541, %v146
    %v546 = vrot.slane %v542, 4
    %v547 = vrot.slane %v543, 4
    %v548 = vsel %vm121, %v546, %v547
    %549 = vrot.lane.b32.xlu0 %v548, 124
    %v550 = vpop.permute.xlu0 %549
    %v552 = vadd.f32 %v526, %v550
    %s553 = sld [smem:[#allocation2 + $0x13]]
    %v554 = vstv %s553
    %v555 = vmul.f32 %v554, %v145
    %v556 = vmul.f32 %v554, %v146
    %v559 = vrot.slane %v555, 4
    %v560 = vrot.slane %v556, 4
    %v561 = vsel %vm121, %v559, %v560
    %562 = vrot.lane.b32.xlu0 %v561, 123
    %v563 = vpop.permute.xlu0 %562
    %v565 = vadd.f32 %v539, %v563
    %s566 = sld [smem:[#allocation2 + $0x28]]
    %v567 = vstv %s566
    %v568 = vmul.f32 %v567, %v145
    %v569 = vmul.f32 %v567, %v146
    %v572 = vrot.slane %v568, 4
    %v573 = vrot.slane %v569, 4
    %v574 = vsel %vm121, %v572, %v573
    %575 = vrot.lane.b32.xlu0 %v574, 123
    %v576 = vpop.permute.xlu0 %575
    %v578 = vadd.f32 %v552, %v576
    %s579 = sld [smem:[#allocation2 + $0x14]]
    %v580 = vstv %s579
    %v581 = vmul.f32 %v580, %v145
    %v582 = vmul.f32 %v580, %v146
    %v585 = vrot.slane %v581, 4
    %v586 = vrot.slane %v582, 4
    %v587 = vsel %vm121, %v585, %v586
    %588 = vrot.lane.b32.xlu0 %v587, 122
    %v589 = vpop.permute.xlu0 %588
    %v591 = vadd.f32 %v565, %v589
    %s592 = sld [smem:[#allocation2 + $0x29]]
    %v593 = vstv %s592
    %v594 = vmul.f32 %v593, %v145
    %v595 = vmul.f32 %v593, %v146
    %v598 = vrot.slane %v594, 4
    %v599 = vrot.slane %v595, 4
    %v600 = vsel %vm121, %v598, %v599
    %601 = vrot.lane.b32.xlu0 %v600, 122
    %v602 = vpop.permute.xlu0 %601
    %v604 = vadd.f32 %v578, %v602
    %s605 = sld [smem:[#allocation5]]
    %v606 = vstv %s605
    %v607 = vadd.f32 %v591, %v606
    %vm608 = vcmask 130048
    %v609 = vsel %vm608, %v607, 0.0
    %610 = vadd.xlane.f32.xlu0 %v609
    %v611 = vpop.xlane.xlu0 %610
    %v612 = vrot.slane %v611, 4
    %v613 = vadd.f32 %v611, %v612
    %v614 = vrot.slane %v613, 2
    %v615 = vadd.f32 %v613, %v614
    %v616 = vrot.slane %v615, 1
    %v617 = vadd.f32 %v615, %v616
    %s618 = vtos %v617
    %v619 = vrcp.pop 128.0
    %s620 = vtos %v619
    %s621 = smul.f32 %s618, %s620
    %v622 = vstv %s621
    %v623 = vsub.f32 %v607, %v622
    %v624 = vmul.f32 %v623, %v623
    %v625 = vsel %vm608, %v624, 0.0
    %626 = vadd.xlane.f32.xlu0 %v625
    %v627 = vpop.xlane.xlu0 %626
    %v628 = vrot.slane %v627, 4
    %v629 = vadd.f32 %v627, %v628
    %v630 = vrot.slane %v629, 2
    %v631 = vadd.f32 %v629, %v630
    %v632 = vrot.slane %v631, 1
    %v633 = vadd.f32 %v631, %v632
    %s634 = vtos %v633
    %v635 = vrcp.pop 128.0
    %s636 = vtos %v635
    %s637 = smul.f32 %s634, %s636
    %s638 = sadd.f32 %s637, 1e-05
    %v639 = vstv %s638
    %v640 = vrsqrt.pop %v639
    %s641 = vtos %v640
    %v642 = vstv %s641
    %v643 = vmul.f32 %v623, %v642
    %s644 = sld [smem:[#allocation7]]
    %v645 = vstv %s644
    %v646 = vmul.f32 %v645, %v643
    %s647 = sld [smem:[#allocation8]]
    %v648 = vstv %s647
    %v649 = vadd.f32 %v646, %v648
    %v650 = vxor.u32 %v649, 2147483648
    %v651 = vmul.f32 %v650, 1.442695
    %v652 = vpow.pop %v651
    %v653 = vadd.f32 %v652, 1.0
    %v654 = vrcp.pop %v653
    %v655 = vmul.f32 1.0, %v654
    %v656 = vsel %vm608, %v655, 0.0
    %657 = vrot.lane.b32.xlu0 %v656, 16
    %v658 = vpop.permute.xlu0 %657
    %v659 = vadd.f32 %v656, %v658
    %660 = vrot.lane.b32.xlu0 %v659, 32
    %v661 = vpop.permute.xlu0 %660
    %v662 = vadd.f32 %v659, %v661
    %663 = vrot.lane.b32.xlu0 %v662, 64
    %v664 = vpop.permute.xlu0 %663
    %v665 = vadd.f32 %v662, %v664
    %v666 = vmul.f32 %v665, %v124
    %v667 = vpack.c.bf16 %v666, %v666
    %v668 = vld [vmem:[#allocation10] sm:$0xff]
    %v669 = vld [vmem:[#allocation10 + $0x8] sm:$0xff]
    %v670 = vld [vmem:[#allocation10 + $0x10] sm:$0xff]
    %v671 = vld [vmem:[#allocation10 + $0x18] sm:$0xff]
    %v672 = vld [vmem:[#allocation10 + $0x20] sm:$0xff]
    %v673 = vld [vmem:[#allocation10 + $0x28] sm:$0xff]
    %v674 = vld [vmem:[#allocation10 + $0x30] sm:$0xff]
    %v675 = vld [vmem:[#allocation10 + $0x38] sm:$0xff]
    %v676 = vld [vmem:[#allocation10 + $0x40] sm:$0xff]
    %v677 = vld [vmem:[#allocation10 + $0x48] sm:$0xff]
    %v678 = vld [vmem:[#allocation10 + $0x50] sm:$0xff]
    %v679 = vld [vmem:[#allocation10 + $0x58] sm:$0xff]
    %v680 = vld [vmem:[#allocation10 + $0x60] sm:$0xff]
    %v681 = vld [vmem:[#allocation10 + $0x68] sm:$0xff]
    %v682 = vld [vmem:[#allocation10 + $0x70] sm:$0xff]
    %v683 = vld [vmem:[#allocation10 + $0x78] sm:$0xff]
    %v684 = vld [vmem:[#allocation10 + $0x80] sm:$0xff]
    %v685 = vld [vmem:[#allocation10 + $0x88] sm:$0xff]
    %v686 = vld [vmem:[#allocation10 + $0x90] sm:$0xff]
    %v687 = vld [vmem:[#allocation10 + $0x98] sm:$0xff]
    %v688 = vld [vmem:[#allocation10 + $0xa0] sm:$0xff]
    %v689 = vld [vmem:[#allocation10 + $0xa8] sm:$0xff]
    %v690 = vld [vmem:[#allocation10 + $0xb0] sm:$0xff]
    %v691 = vld [vmem:[#allocation10 + $0xb8] sm:$0xff]
    %v692 = vld [vmem:[#allocation10 + $0xc0] sm:$0xff]
    %v693 = vld [vmem:[#allocation10 + $0xc8] sm:$0xff]
    %v694 = vld [vmem:[#allocation10 + $0xd0] sm:$0xff]
    %v695 = vld [vmem:[#allocation10 + $0xd8] sm:$0xff]
    %v696 = vld [vmem:[#allocation10 + $0xe0] sm:$0xff]
    %v697 = vld [vmem:[#allocation10 + $0xe8] sm:$0xff]
    %v698 = vld [vmem:[#allocation10 + $0xf0] sm:$0xff]
    %v699 = vld [vmem:[#allocation10 + $0xf8] sm:$0xff]
    %v700 = vld [vmem:[#allocation10 + $0x100] sm:$0xff]
    %v701 = vld [vmem:[#allocation10 + $0x108] sm:$0xff]
    %v702 = vld [vmem:[#allocation10 + $0x110] sm:$0xff]
    %v703 = vld [vmem:[#allocation10 + $0x118] sm:$0xff]
    %v704 = vld [vmem:[#allocation10 + $0x120] sm:$0xff]
    %v705 = vld [vmem:[#allocation10 + $0x128] sm:$0xff]
    %v706 = vld [vmem:[#allocation10 + $0x130] sm:$0xff]
    %v707 = vld [vmem:[#allocation10 + $0x138] sm:$0xff]
    %v708 = vld [vmem:[#allocation10 + $0x140] sm:$0xff]
    %v709 = vld [vmem:[#allocation10 + $0x148] sm:$0xff]
    %v710 = vld [vmem:[#allocation10 + $0x150] sm:$0xff]
    %v711 = vld [vmem:[#allocation10 + $0x158] sm:$0xff]
    %v712 = vld [vmem:[#allocation10 + $0x160] sm:$0xff]
    %v713 = vld [vmem:[#allocation10 + $0x168] sm:$0xff]
    %v714 = vld [vmem:[#allocation10 + $0x170] sm:$0xff]
    %v715 = vld [vmem:[#allocation10 + $0x178] sm:$0xff]
    %v716 = vld [vmem:[#allocation10 + $0x180] sm:$0xff]
    %v717 = vld [vmem:[#allocation10 + $0x188] sm:$0xff]
    %v718 = vld [vmem:[#allocation10 + $0x190] sm:$0xff]
    %v719 = vld [vmem:[#allocation10 + $0x198] sm:$0xff]
    %v720 = vld [vmem:[#allocation10 + $0x1a0] sm:$0xff]
    %v721 = vld [vmem:[#allocation10 + $0x1a8] sm:$0xff]
    %v722 = vld [vmem:[#allocation10 + $0x1b0] sm:$0xff]
    %v723 = vld [vmem:[#allocation10 + $0x1b8] sm:$0xff]
    %v724 = vld [vmem:[#allocation10 + $0x1c0] sm:$0xff]
    %v725 = vld [vmem:[#allocation10 + $0x1c8] sm:$0xff]
    %v726 = vld [vmem:[#allocation10 + $0x1d0] sm:$0xff]
    %v727 = vld [vmem:[#allocation10 + $0x1d8] sm:$0xff]
    %v728 = vld [vmem:[#allocation10 + $0x1e0] sm:$0xff]
    %v729 = vld [vmem:[#allocation10 + $0x1e8] sm:$0xff]
    %v730 = vld [vmem:[#allocation10 + $0x1f0] sm:$0xff]
    %v731 = vld [vmem:[#allocation10 + $0x1f8] sm:$0xff]
    %v733 = vrot.slane %v667, 1
    %v767 = vunpack.c.l.b16 %v700
    %v768 = vunpack.c.h.b16 %v700
    %v769 = vunpack.c.l.b16 %v701
    %v770 = vunpack.c.h.b16 %v701
    %v771 = vunpack.c.l.b16 %v702
    %v772 = vunpack.c.h.b16 %v702
    %v773 = vunpack.c.l.b16 %v703
    %v774 = vunpack.c.h.b16 %v703
    %v775 = vunpack.c.l.b16 %v704
    %v776 = vunpack.c.h.b16 %v704
    %v777 = vunpack.c.l.b16 %v705
    %v778 = vunpack.c.h.b16 %v705
    %v779 = vunpack.c.l.b16 %v706
    %v780 = vunpack.c.h.b16 %v706
    %v781 = vunpack.c.l.b16 %v707
    %v782 = vunpack.c.h.b16 %v707
    %v783 = vunpack.c.l.b16 %v708
    %v784 = vunpack.c.h.b16 %v708
    %v785 = vunpack.c.l.b16 %v709
    %v786 = vunpack.c.h.b16 %v709
    %v787 = vunpack.c.l.b16 %v710
    %v788 = vunpack.c.h.b16 %v710
    %v789 = vunpack.c.l.b16 %v711
    %v790 = vunpack.c.h.b16 %v711
    %v791 = vunpack.c.l.b16 %v712
    %v792 = vunpack.c.h.b16 %v712
    %v793 = vunpack.c.l.b16 %v713
    %v794 = vunpack.c.h.b16 %v713
    %v795 = vunpack.c.l.b16 %v714
    %v796 = vunpack.c.h.b16 %v714
    %v797 = vunpack.c.l.b16 %v715
    %v798 = vunpack.c.h.b16 %v715
    %v799 = vunpack.c.l.b16 %v716
    %v800 = vunpack.c.h.b16 %v716
    %v801 = vunpack.c.l.b16 %v717
    %v802 = vunpack.c.h.b16 %v717
    %v803 = vunpack.c.l.b16 %v718
    %v804 = vunpack.c.h.b16 %v718
    %v805 = vunpack.c.l.b16 %v719
    %v806 = vunpack.c.h.b16 %v719
    %v807 = vunpack.c.l.b16 %v720
    %v808 = vunpack.c.h.b16 %v720
    %v809 = vunpack.c.l.b16 %v721
    %v810 = vunpack.c.h.b16 %v721
    %v811 = vunpack.c.l.b16 %v722
    %v812 = vunpack.c.h.b16 %v722
    %v813 = vunpack.c.l.b16 %v723
    %v814 = vunpack.c.h.b16 %v723
    %v815 = vunpack.c.l.b16 %v724
    %v816 = vunpack.c.h.b16 %v724
    %v817 = vunpack.c.l.b16 %v725
    %v818 = vunpack.c.h.b16 %v725
    %v819 = vunpack.c.l.b16 %v726
    %v820 = vunpack.c.h.b16 %v726
    %v821 = vunpack.c.l.b16 %v727
    %v822 = vunpack.c.h.b16 %v727
    %v823 = vunpack.c.l.b16 %v728
    %v824 = vunpack.c.h.b16 %v728
    %v825 = vunpack.c.l.b16 %v729
    %v826 = vunpack.c.h.b16 %v729
    %v827 = vunpack.c.l.b16 %v730
    %v828 = vunpack.c.h.b16 %v730
    %v829 = vunpack.c.l.b16 %v731
    %v830 = vunpack.c.h.b16 %v731
    %v831 = vpack.c.b16 %v771, %v767
    %v832 = vpack.c.b16 %v772, %v768
    %v833 = vpack.c.b16 %v773, %v769
    %v834 = vpack.c.b16 %v774, %v770
    %v835 = vpack.c.b16 %v779, %v775
    %v836 = vpack.c.b16 %v780, %v776
    %v837 = vpack.c.b16 %v781, %v777
    %v838 = vpack.c.b16 %v782, %v778
    %v839 = vpack.c.b16 %v787, %v783
    %v840 = vpack.c.b16 %v788, %v784
    %v841 = vpack.c.b16 %v789, %v785
    %v842 = vpack.c.b16 %v790, %v786
    %v843 = vpack.c.b16 %v795, %v791
    %v844 = vpack.c.b16 %v796, %v792
    %v845 = vpack.c.b16 %v797, %v793
    %v846 = vpack.c.b16 %v798, %v794
    %v847 = vpack.c.b16 %v803, %v799
    %v848 = vpack.c.b16 %v804, %v800
    %v849 = vpack.c.b16 %v805, %v801
    %v850 = vpack.c.b16 %v806, %v802
    %v851 = vpack.c.b16 %v811, %v807
    %v852 = vpack.c.b16 %v812, %v808
    %v853 = vpack.c.b16 %v813, %v809
    %v854 = vpack.c.b16 %v814, %v810
    %v855 = vpack.c.b16 %v819, %v815
    %v856 = vpack.c.b16 %v820, %v816
    %v857 = vpack.c.b16 %v821, %v817
    %v858 = vpack.c.b16 %v822, %v818
    %v859 = vpack.c.b16 %v827, %v823
    %v860 = vpack.c.b16 %v828, %v824
    %v861 = vpack.c.b16 %v829, %v825
    %v862 = vpack.c.b16 %v830, %v826
    %895 = vmatprep.subr.bf16.mxu0 %v832
    %896 = vmatpush1.bf16.msra.mxu0 %v831
    %897 = vmatprep.subr.bf16.mxu0 %v836
    %898 = vmatpush1.bf16.msra.mxu0 %v835
    %899 = vmatprep.subr.bf16.mxu0 %v840
    %900 = vmatpush1.bf16.msra.mxu0 %v839
    %901 = vmatprep.subr.bf16.mxu0 %v844
    %902 = vmatpush1.bf16.msra.mxu0 %v843
    %903 = vmatprep.subr.bf16.mxu0 %v848
    %904 = vmatpush1.bf16.msra.mxu0 %v847
    %905 = vmatprep.subr.bf16.mxu0 %v852
    %906 = vmatpush1.bf16.msra.mxu0 %v851
    %907 = vmatprep.subr.bf16.mxu0 %v856
    %908 = vmatpush1.bf16.msra.mxu0 %v855
    %909 = vmatprep.subr.bf16.mxu0 %v860
    %910 = vmatpush1.bf16.msra.mxu0 %v859
    %911 = vmatprep.subr.bf16.mxu0 0
    %912 = vmatpush1.bf16.msra.mxu0 0
    %913 = vmatprep.subr.bf16.mxu0 0
    %914 = vmatpush1.bf16.msra.mxu0 0
    %915 = vmatprep.subr.bf16.mxu0 0
    %916 = vmatpush1.bf16.msra.mxu0 0
    %917 = vmatprep.subr.bf16.mxu0 0
    %918 = vmatpush1.bf16.msra.mxu0 0
    %919 = vmatprep.subr.bf16.mxu0 0
    %920 = vmatpush1.bf16.msra.mxu0 0
    %921 = vmatprep.subr.bf16.mxu0 0
    %922 = vmatpush1.bf16.msra.mxu0 0
    %923 = vmatprep.subr.bf16.mxu0 0
    %924 = vmatpush1.bf16.msra.mxu0 0
    %925 = vmatprep.subr.bf16.mxu0 0
    %926 = vmatpush1.bf16.msra.mxu0 0
    %927 = vmatprep.mubr.bf16.mxu0 0
    %928 = vmatmul.mubr.bf16.gmra.mrb[0].mxu0 %v733
    %v929 = vpop.f32.mrb[0].mxu0
    %v930 = vadd.f32 0.0, %v929
    %v931 = vpop.f32.mrb[0].mxu0
    %v932 = vadd.f32 0.0, %v931
    %v933 = vpop.f32.mrb[0].mxu0
    %v934 = vpop.f32.mrb[0].mxu0
    %935 = vdwg.mxu0
    %936 = vmatprep.subr.bf16.mxu0 %v834
    %937 = vmatpush1.bf16.msra.mxu0 %v833
    %938 = vmatprep.subr.bf16.mxu0 %v838
    %939 = vmatpush1.bf16.msra.mxu0 %v837
    %940 = vmatprep.subr.bf16.mxu0 %v842
    %941 = vmatpush1.bf16.msra.mxu0 %v841
    %942 = vmatprep.subr.bf16.mxu0 %v846
    %943 = vmatpush1.bf16.msra.mxu0 %v845
    %944 = vmatprep.subr.bf16.mxu0 %v850
    %945 = vmatpush1.bf16.msra.mxu0 %v849
    %946 = vmatprep.subr.bf16.mxu0 %v854
    %947 = vmatpush1.bf16.msra.mxu0 %v853
    %948 = vmatprep.subr.bf16.mxu0 %v858
    %949 = vmatpush1.bf16.msra.mxu0 %v857
    %950 = vmatprep.subr.bf16.mxu0 %v862
    %951 = vmatpush1.bf16.msra.mxu0 %v861
    %952 = vmatprep.subr.bf16.mxu0 0
    %953 = vmatpush1.bf16.msra.mxu0 0
    %954 = vmatprep.subr.bf16.mxu0 0
    %955 = vmatpush1.bf16.msra.mxu0 0
    %956 = vmatprep.subr.bf16.mxu0 0
    %957 = vmatpush1.bf16.msra.mxu0 0
    %958 = vmatprep.subr.bf16.mxu0 0
    %959 = vmatpush1.bf16.msra.mxu0 0
    %960 = vmatprep.subr.bf16.mxu0 0
    %961 = vmatpush1.bf16.msra.mxu0 0
    %962 = vmatprep.subr.bf16.mxu0 0
    %963 = vmatpush1.bf16.msra.mxu0 0
    %964 = vmatprep.subr.bf16.mxu0 0
    %965 = vmatpush1.bf16.msra.mxu0 0
    %966 = vmatprep.subr.bf16.mxu0 0
    %967 = vmatpush1.bf16.msra.mxu0 0
    %968 = vmatprep.mubr.bf16.mxu0 0
    %969 = vmatmul.mubr.bf16.gmra.mrb[0].mxu0 %v733
    %v970 = vpop.f32.mrb[0].mxu0
    %v971 = vadd.f32 0.0, %v970
    %v972 = vpop.f32.mrb[0].mxu0
    %v973 = vadd.f32 0.0, %v972
    %v974 = vpop.f32.mrb[0].mxu0
    %v975 = vpop.f32.mrb[0].mxu0
    %976 = vdwg.mxu0
    %v1009 = vunpack.c.l.b16 %v668
    %v1010 = vunpack.c.h.b16 %v668
    %v1011 = vunpack.c.l.b16 %v669
    %v1012 = vunpack.c.h.b16 %v669
    %v1013 = vunpack.c.l.b16 %v670
    %v1014 = vunpack.c.h.b16 %v670
    %v1015 = vunpack.c.l.b16 %v671
    %v1016 = vunpack.c.h.b16 %v671
    %v1017 = vunpack.c.l.b16 %v672
    %v1018 = vunpack.c.h.b16 %v672
    %v1019 = vunpack.c.l.b16 %v673
    %v1020 = vunpack.c.h.b16 %v673
    %v1021 = vunpack.c.l.b16 %v674
    %v1022 = vunpack.c.h.b16 %v674
    %v1023 = vunpack.c.l.b16 %v675
    %v1024 = vunpack.c.h.b16 %v675
    %v1025 = vunpack.c.l.b16 %v676
    %v1026 = vunpack.c.h.b16 %v676
    %v1027 = vunpack.c.l.b16 %v677
    %v1028 = vunpack.c.h.b16 %v677
    %v1029 = vunpack.c.l.b16 %v678
    %v1030 = vunpack.c.h.b16 %v678
    %v1031 = vunpack.c.l.b16 %v679
    %v1032 = vunpack.c.h.b16 %v679
    %v1033 = vunpack.c.l.b16 %v680
    %v1034 = vunpack.c.h.b16 %v680
    %v1035 = vunpack.c.l.b16 %v681
    %v1036 = vunpack.c.h.b16 %v681
    %v1037 = vunpack.c.l.b16 %v682
    %v1038 = vunpack.c.h.b16 %v682
    %v1039 = vunpack.c.l.b16 %v683
    %v1040 = vunpack.c.h.b16 %v683
    %v1041 = vunpack.c.l.b16 %v684
    %v1042 = vunpack.c.h.b16 %v684
    %v1043 = vunpack.c.l.b16 %v685
    %v1044 = vunpack.c.h.b16 %v685
    %v1045 = vunpack.c.l.b16 %v686
    %v1046 = vunpack.c.h.b16 %v686
    %v1047 = vunpack.c.l.b16 %v687
    %v1048 = vunpack.c.h.b16 %v687
    %v1049 = vunpack.c.l.b16 %v688
    %v1050 = vunpack.c.h.b16 %v688
    %v1051 = vunpack.c.l.b16 %v689
    %v1052 = vunpack.c.h.b16 %v689
    %v1053 = vunpack.c.l.b16 %v690
    %v1054 = vunpack.c.h.b16 %v690
    %v1055 = vunpack.c.l.b16 %v691
    %v1056 = vunpack.c.h.b16 %v691
    %v1057 = vunpack.c.l.b16 %v692
    %v1058 = vunpack.c.h.b16 %v692
    %v1059 = vunpack.c.l.b16 %v693
    %v1060 = vunpack.c.h.b16 %v693
    %v1061 = vunpack.c.l.b16 %v694
    %v1062 = vunpack.c.h.b16 %v694
    %v1063 = vunpack.c.l.b16 %v695
    %v1064 = vunpack.c.h.b16 %v695
    %v1065 = vunpack.c.l.b16 %v696
    %v1066 = vunpack.c.h.b16 %v696
    %v1067 = vunpack.c.l.b16 %v697
    %v1068 = vunpack.c.h.b16 %v697
    %v1069 = vunpack.c.l.b16 %v698
    %v1070 = vunpack.c.h.b16 %v698
    %v1071 = vunpack.c.l.b16 %v699
    %v1072 = vunpack.c.h.b16 %v699
    %v1073 = vpack.c.b16 %v1013, %v1009
    %v1074 = vpack.c.b16 %v1014, %v1010
    %v1075 = vpack.c.b16 %v1015, %v1011
    %v1076 = vpack.c.b16 %v1016, %v1012
    %v1077 = vpack.c.b16 %v1021, %v1017
    %v1078 = vpack.c.b16 %v1022, %v1018
    %v1079 = vpack.c.b16 %v1023, %v1019
    %v1080 = vpack.c.b16 %v1024, %v1020
    %v1081 = vpack.c.b16 %v1029, %v1025
    %v1082 = vpack.c.b16 %v1030, %v1026
    %v1083 = vpack.c.b16 %v1031, %v1027
    %v1084 = vpack.c.b16 %v1032, %v1028
    %v1085 = vpack.c.b16 %v1037, %v1033
    %v1086 = vpack.c.b16 %v1038, %v1034
    %v1087 = vpack.c.b16 %v1039, %v1035
    %v1088 = vpack.c.b16 %v1040, %v1036
    %v1089 = vpack.c.b16 %v1045, %v1041
    %v1090 = vpack.c.b16 %v1046, %v1042
    %v1091 = vpack.c.b16 %v1047, %v1043
    %v1092 = vpack.c.b16 %v1048, %v1044
    %v1093 = vpack.c.b16 %v1053, %v1049
    %v1094 = vpack.c.b16 %v1054, %v1050
    %v1095 = vpack.c.b16 %v1055, %v1051
    %v1096 = vpack.c.b16 %v1056, %v1052
    %v1097 = vpack.c.b16 %v1061, %v1057
    %v1098 = vpack.c.b16 %v1062, %v1058
    %v1099 = vpack.c.b16 %v1063, %v1059
    %v1100 = vpack.c.b16 %v1064, %v1060
    %v1101 = vpack.c.b16 %v1069, %v1065
    %v1102 = vpack.c.b16 %v1070, %v1066
    %v1103 = vpack.c.b16 %v1071, %v1067
    %v1104 = vpack.c.b16 %v1072, %v1068
    %1137 = vmatprep.subr.bf16.mxu0 %v1074
    %1138 = vmatpush1.bf16.msra.mxu0 %v1073
    %1139 = vmatprep.subr.bf16.mxu0 %v1078
    %1140 = vmatpush1.bf16.msra.mxu0 %v1077
    %1141 = vmatprep.subr.bf16.mxu0 %v1082
    %1142 = vmatpush1.bf16.msra.mxu0 %v1081
    %1143 = vmatprep.subr.bf16.mxu0 %v1086
    %1144 = vmatpush1.bf16.msra.mxu0 %v1085
    %1145 = vmatprep.subr.bf16.mxu0 %v1090
    %1146 = vmatpush1.bf16.msra.mxu0 %v1089
    %1147 = vmatprep.subr.bf16.mxu0 %v1094
    %1148 = vmatpush1.bf16.msra.mxu0 %v1093
    %1149 = vmatprep.subr.bf16.mxu0 %v1098
    %1150 = vmatpush1.bf16.msra.mxu0 %v1097
    %1151 = vmatprep.subr.bf16.mxu0 %v1102
    %1152 = vmatpush1.bf16.msra.mxu0 %v1101
    %1153 = vmatprep.subr.bf16.mxu0 0
    %1154 = vmatpush1.bf16.msra.mxu0 0
    %1155 = vmatprep.subr.bf16.mxu0 0
    %1156 = vmatpush1.bf16.msra.mxu0 0
    %1157 = vmatprep.subr.bf16.mxu0 0
    %1158 = vmatpush1.bf16.msra.mxu0 0
    %1159 = vmatprep.subr.bf16.mxu0 0
    %1160 = vmatpush1.bf16.msra.mxu0 0
    %1161 = vmatprep.subr.bf16.mxu0 0
    %1162 = vmatpush1.bf16.msra.mxu0 0
    %1163 = vmatprep.subr.bf16.mxu0 0
    %1164 = vmatpush1.bf16.msra.mxu0 0
    %1165 = vmatprep.subr.bf16.mxu0 0
    %1166 = vmatpush1.bf16.msra.mxu0 0
    %1167 = vmatprep.subr.bf16.mxu0 0
    %1168 = vmatpush1.bf16.msra.mxu0 0
    %1169 = vmatprep.mubr.bf16.mxu0 0
    %1170 = vmatmul.mubr.bf16.gmra.mrb[0].mxu0 %v667
    %v1171 = vpop.f32.mrb[0].mxu0
    %v1172 = vadd.f32 %v930, %v1171
    %v1173 = vpop.f32.mrb[0].mxu0
    %v1174 = vadd.f32 %v932, %v1173
    %v1175 = vpop.f32.mrb[0].mxu0
    %v1176 = vpop.f32.mrb[0].mxu0
    %1177 = vdwg.mxu0
    %1178 = vmatprep.subr.bf16.mxu0 %v1076
    %1179 = vmatpush1.bf16.msra.mxu0 %v1075
    %1180 = vmatprep.subr.bf16.mxu0 %v1080
    %1181 = vmatpush1.bf16.msra.mxu0 %v1079
    %1182 = vmatprep.subr.bf16.mxu0 %v1084
    %1183 = vmatpush1.bf16.msra.mxu0 %v1083
    %1184 = vmatprep.subr.bf16.mxu0 %v1088
    %1185 = vmatpush1.bf16.msra.mxu0 %v1087
    %1186 = vmatprep.subr.bf16.mxu0 %v1092
    %1187 = vmatpush1.bf16.msra.mxu0 %v1091
    %1188 = vmatprep.subr.bf16.mxu0 %v1096
    %1189 = vmatpush1.bf16.msra.mxu0 %v1095
    %1190 = vmatprep.subr.bf16.mxu0 %v1100
    %1191 = vmatpush1.bf16.msra.mxu0 %v1099
    %1192 = vmatprep.subr.bf16.mxu0 %v1104
    %1193 = vmatpush1.bf16.msra.mxu0 %v1103
    %1194 = vmatprep.subr.bf16.mxu0 0
    %1195 = vmatpush1.bf16.msra.mxu0 0
    %1196 = vmatprep.subr.bf16.mxu0 0
    %1197 = vmatpush1.bf16.msra.mxu0 0
    %1198 = vmatprep.subr.bf16.mxu0 0
    %1199 = vmatpush1.bf16.msra.mxu0 0
    %1200 = vmatprep.subr.bf16.mxu0 0
    %1201 = vmatpush1.bf16.msra.mxu0 0
    %1202 = vmatprep.subr.bf16.mxu0 0
    %1203 = vmatpush1.bf16.msra.mxu0 0
    %1204 = vmatprep.subr.bf16.mxu0 0
    %1205 = vmatpush1.bf16.msra.mxu0 0
    %1206 = vmatprep.subr.bf16.mxu0 0
    %1207 = vmatpush1.bf16.msra.mxu0 0
    %1208 = vmatprep.subr.bf16.mxu0 0
    %1209 = vmatpush1.bf16.msra.mxu0 0
    %1210 = vmatprep.mubr.bf16.mxu0 0
    %1211 = vmatmul.mubr.bf16.gmra.mrb[0].mxu0 %v667
    %v1212 = vpop.f32.mrb[0].mxu0
    %v1213 = vadd.f32 %v971, %v1212
    %v1214 = vpop.f32.mrb[0].mxu0
    %v1215 = vadd.f32 %v973, %v1214
    %v1216 = vpop.f32.mrb[0].mxu0
    %v1217 = vpop.f32.mrb[0].mxu0
    %1218 = vdwg.mxu0
    %v1219 = vld [vmem:[#allocation10 + $0x200] sm:$0xff]
    %v1220 = vld [vmem:[#allocation10 + $0x208] sm:$0xff]
    %v1221 = vld [vmem:[#allocation10 + $0x210] sm:$0xff]
    %v1222 = vld [vmem:[#allocation10 + $0x218] sm:$0xff]
    %v1223 = vld [vmem:[#allocation10 + $0x220] sm:$0xff]
    %v1224 = vld [vmem:[#allocation10 + $0x228] sm:$0xff]
    %v1225 = vld [vmem:[#allocation10 + $0x230] sm:$0xff]
    %v1226 = vld [vmem:[#allocation10 + $0x238] sm:$0xff]
    %v1227 = vld [vmem:[#allocation10 + $0x240] sm:$0xff]
    %v1228 = vld [vmem:[#allocation10 + $0x248] sm:$0xff]
    %v1229 = vld [vmem:[#allocation10 + $0x250] sm:$0xff]
    %v1230 = vld [vmem:[#allocation10 + $0x258] sm:$0xff]
    %v1231 = vld [vmem:[#allocation10 + $0x260] sm:$0xff]
    %v1232 = vld [vmem:[#allocation10 + $0x268] sm:$0xff]
    %v1233 = vld [vmem:[#allocation10 + $0x270] sm:$0xff]
    %v1234 = vld [vmem:[#allocation10 + $0x278] sm:$0xff]
    %v1235 = vld [vmem:[#allocation10 + $0x280] sm:$0xff]
    %v1236 = vld [vmem:[#allocation10 + $0x288] sm:$0xff]
    %v1237 = vld [vmem:[#allocation10 + $0x290] sm:$0xff]
    %v1238 = vld [vmem:[#allocation10 + $0x298] sm:$0xff]
    %v1239 = vld [vmem:[#allocation10 + $0x2a0] sm:$0xff]
    %v1240 = vld [vmem:[#allocation10 + $0x2a8] sm:$0xff]
    %v1241 = vld [vmem:[#allocation10 + $0x2b0] sm:$0xff]
    %v1242 = vld [vmem:[#allocation10 + $0x2b8] sm:$0xff]
    %v1243 = vld [vmem:[#allocation10 + $0x2c0] sm:$0xff]
    %v1244 = vld [vmem:[#allocation10 + $0x2c8] sm:$0xff]
    %v1245 = vld [vmem:[#allocation10 + $0x2d0] sm:$0xff]
    %v1246 = vld [vmem:[#allocation10 + $0x2d8] sm:$0xff]
    %v1247 = vld [vmem:[#allocation10 + $0x2e0] sm:$0xff]
    %v1248 = vld [vmem:[#allocation10 + $0x2e8] sm:$0xff]
    %v1249 = vld [vmem:[#allocation10 + $0x2f0] sm:$0xff]
    %v1250 = vld [vmem:[#allocation10 + $0x2f8] sm:$0xff]
    %v1251 = vrot.slane %v667, 2
    %v1285 = vunpack.c.l.b16 %v1219
    %v1286 = vunpack.c.h.b16 %v1219
    %v1287 = vunpack.c.l.b16 %v1220
    %v1288 = vunpack.c.h.b16 %v1220
    %v1289 = vunpack.c.l.b16 %v1221
    %v1290 = vunpack.c.h.b16 %v1221
    %v1291 = vunpack.c.l.b16 %v1222
    %v1292 = vunpack.c.h.b16 %v1222
    %v1293 = vunpack.c.l.b16 %v1223
    %v1294 = vunpack.c.h.b16 %v1223
    %v1295 = vunpack.c.l.b16 %v1224
    %v1296 = vunpack.c.h.b16 %v1224
    %v1297 = vunpack.c.l.b16 %v1225
    %v1298 = vunpack.c.h.b16 %v1225
    %v1299 = vunpack.c.l.b16 %v1226
    %v1300 = vunpack.c.h.b16 %v1226
    %v1301 = vunpack.c.l.b16 %v1227
    %v1302 = vunpack.c.h.b16 %v1227
    %v1303 = vunpack.c.l.b16 %v1228
    %v1304 = vunpack.c.h.b16 %v1228
    %v1305 = vunpack.c.l.b16 %v1229
    %v1306 = vunpack.c.h.b16 %v1229
    %v1307 = vunpack.c.l.b16 %v1230
    %v1308 = vunpack.c.h.b16 %v1230
    %v1309 = vunpack.c.l.b16 %v1231
    %v1310 = vunpack.c.h.b16 %v1231
    %v1311 = vunpack.c.l.b16 %v1232
    %v1312 = vunpack.c.h.b16 %v1232
    %v1313 = vunpack.c.l.b16 %v1233
    %v1314 = vunpack.c.h.b16 %v1233
    %v1315 = vunpack.c.l.b16 %v1234
    %v1316 = vunpack.c.h.b16 %v1234
    %v1317 = vunpack.c.l.b16 %v1235
    %v1318 = vunpack.c.h.b16 %v1235
    %v1319 = vunpack.c.l.b16 %v1236
    %v1320 = vunpack.c.h.b16 %v1236
    %v1321 = vunpack.c.l.b16 %v1237
    %v1322 = vunpack.c.h.b16 %v1237
    %v1323 = vunpack.c.l.b16 %v1238
    %v1324 = vunpack.c.h.b16 %v1238
    %v1325 = vunpack.c.l.b16 %v1239
    %v1326 = vunpack.c.h.b16 %v1239
    %v1327 = vunpack.c.l.b16 %v1240
    %v1328 = vunpack.c.h.b16 %v1240
    %v1329 = vunpack.c.l.b16 %v1241
    %v1330 = vunpack.c.h.b16 %v1241
    %v1331 = vunpack.c.l.b16 %v1242
    %v1332 = vunpack.c.h.b16 %v1242
    %v1333 = vunpack.c.l.b16 %v1243
    %v1334 = vunpack.c.h.b16 %v1243
    %v1335 = vunpack.c.l.b16 %v1244
    %v1336 = vunpack.c.h.b16 %v1244
    %v1337 = vunpack.c.l.b16 %v1245
    %v1338 = vunpack.c.h.b16 %v1245
    %v1339 = vunpack.c.l.b16 %v1246
    %v1340 = vunpack.c.h.b16 %v1246
    %v1341 = vunpack.c.l.b16 %v1247
    %v1342 = vunpack.c.h.b16 %v1247
    %v1343 = vunpack.c.l.b16 %v1248
    %v1344 = vunpack.c.h.b16 %v1248
    %v1345 = vunpack.c.l.b16 %v1249
    %v1346 = vunpack.c.h.b16 %v1249
    %v1347 = vunpack.c.l.b16 %v1250
    %v1348 = vunpack.c.h.b16 %v1250
    %v1349 = vpack.c.b16 %v1289, %v1285
    %v1350 = vpack.c.b16 %v1290, %v1286
    %v1351 = vpack.c.b16 %v1291, %v1287
    %v1352 = vpack.c.b16 %v1292, %v1288
    %v1353 = vpack.c.b16 %v1297, %v1293
    %v1354 = vpack.c.b16 %v1298, %v1294
    %v1355 = vpack.c.b16 %v1299, %v1295
    %v1356 = vpack.c.b16 %v1300, %v1296
    %v1357 = vpack.c.b16 %v1305, %v1301
    %v1358 = vpack.c.b16 %v1306, %v1302
    %v1359 = vpack.c.b16 %v1307, %v1303
    %v1360 = vpack.c.b16 %v1308, %v1304
    %v1361 = vpack.c.b16 %v1313, %v1309
    %v1362 = vpack.c.b16 %v1314, %v1310
    %v1363 = vpack.c.b16 %v1315, %v1311
    %v1364 = vpack.c.b16 %v1316, %v1312
    %v1365 = vpack.c.b16 %v1321, %v1317
    %v1366 = vpack.c.b16 %v1322, %v1318
    %v1367 = vpack.c.b16 %v1323, %v1319
    %v1368 = vpack.c.b16 %v1324, %v1320
    %v1369 = vpack.c.b16 %v1329, %v1325
    %v1370 = vpack.c.b16 %v1330, %v1326
    %v1371 = vpack.c.b16 %v1331, %v1327
    %v1372 = vpack.c.b16 %v1332, %v1328
    %v1373 = vpack.c.b16 %v1337, %v1333
    %v1374 = vpack.c.b16 %v1338, %v1334
    %v1375 = vpack.c.b16 %v1339, %v1335
    %v1376 = vpack.c.b16 %v1340, %v1336
    %v1377 = vpack.c.b16 %v1345, %v1341
    %v1378 = vpack.c.b16 %v1346, %v1342
    %v1379 = vpack.c.b16 %v1347, %v1343
    %v1380 = vpack.c.b16 %v1348, %v1344
    %1413 = vmatprep.subr.bf16.mxu0 %v1350
    %1414 = vmatpush1.bf16.msra.mxu0 %v1349
    %1415 = vmatprep.subr.bf16.mxu0 %v1354
    %1416 = vmatpush1.bf16.msra.mxu0 %v1353
    %1417 = vmatprep.subr.bf16.mxu0 %v1358
    %1418 = vmatpush1.bf16.msra.mxu0 %v1357
    %1419 = vmatprep.subr.bf16.mxu0 %v1362
    %1420 = vmatpush1.bf16.msra.mxu0 %v1361
    %1421 = vmatprep.subr.bf16.mxu0 %v1366
    %1422 = vmatpush1.bf16.msra.mxu0 %v1365
    %1423 = vmatprep.subr.bf16.mxu0 %v1370
    %1424 = vmatpush1.bf16.msra.mxu0 %v1369
    %1425 = vmatprep.subr.bf16.mxu0 %v1374
    %1426 = vmatpush1.bf16.msra.mxu0 %v1373
    %1427 = vmatprep.subr.bf16.mxu0 %v1378
    %1428 = vmatpush1.bf16.msra.mxu0 %v1377
    %1429 = vmatprep.subr.bf16.mxu0 0
    %1430 = vmatpush1.bf16.msra.mxu0 0
    %1431 = vmatprep.subr.bf16.mxu0 0
    %1432 = vmatpush1.bf16.msra.mxu0 0
    %1433 = vmatprep.subr.bf16.mxu0 0
    %1434 = vmatpush1.bf16.msra.mxu0 0
    %1435 = vmatprep.subr.bf16.mxu0 0
    %1436 = vmatpush1.bf16.msra.mxu0 0
    %1437 = vmatprep.subr.bf16.mxu0 0
    %1438 = vmatpush1.bf16.msra.mxu0 0
    %1439 = vmatprep.subr.bf16.mxu0 0
    %1440 = vmatpush1.bf16.msra.mxu0 0
    %1441 = vmatprep.subr.bf16.mxu0 0
    %1442 = vmatpush1.bf16.msra.mxu0 0
    %1443 = vmatprep.subr.bf16.mxu0 0
    %1444 = vmatpush1.bf16.msra.mxu0 0
    %1445 = vmatprep.mubr.bf16.mxu0 0
    %1446 = vmatmul.mubr.bf16.gmra.mrb[0].mxu0 %v1251
    %v1447 = vpop.f32.mrb[0].mxu0
    %v1448 = vadd.f32 0.0, %v1447
    %v1449 = vpop.f32.mrb[0].mxu0
    %v1450 = vadd.f32 0.0, %v1449
    %v1451 = vpop.f32.mrb[0].mxu0
    %v1452 = vpop.f32.mrb[0].mxu0
    %1453 = vdwg.mxu0
    %1454 = vmatprep.subr.bf16.mxu0 %v1352
    %1455 = vmatpush1.bf16.msra.mxu0 %v1351
    %1456 = vmatprep.subr.bf16.mxu0 %v1356
    %1457 = vmatpush1.bf16.msra.mxu0 %v1355
    %1458 = vmatprep.subr.bf16.mxu0 %v1360
    %1459 = vmatpush1.bf16.msra.mxu0 %v1359
    %1460 = vmatprep.subr.bf16.mxu0 %v1364
    %1461 = vmatpush1.bf16.msra.mxu0 %v1363
    %1462 = vmatprep.subr.bf16.mxu0 %v1368
    %1463 = vmatpush1.bf16.msra.mxu0 %v1367
    %1464 = vmatprep.subr.bf16.mxu0 %v1372
    %1465 = vmatpush1.bf16.msra.mxu0 %v1371
    %1466 = vmatprep.subr.bf16.mxu0 %v1376
    %1467 = vmatpush1.bf16.msra.mxu0 %v1375
    %1468 = vmatprep.subr.bf16.mxu0 %v1380
    %1469 = vmatpush1.bf16.msra.mxu0 %v1379
    %1470 = vmatprep.subr.bf16.mxu0 0
    %1471 = vmatpush1.bf16.msra.mxu0 0
    %1472 = vmatprep.subr.bf16.mxu0 0
    %1473 = vmatpush1.bf16.msra.mxu0 0
    %1474 = vmatprep.subr.bf16.mxu0 0
    %1475 = vmatpush1.bf16.msra.mxu0 0
    %1476 = vmatprep.subr.bf16.mxu0 0
    %1477 = vmatpush1.bf16.msra.mxu0 0
    %1478 = vmatprep.subr.bf16.mxu0 0
    %1479 = vmatpush1.bf16.msra.mxu0 0
    %1480 = vmatprep.subr.bf16.mxu0 0
    %1481 = vmatpush1.bf16.msra.mxu0 0
    %1482 = vmatprep.subr.bf16.mxu0 0
    %1483 = vmatpush1.bf16.msra.mxu0 0
    %1484 = vmatprep.subr.bf16.mxu0 0
    %1485 = vmatpush1.bf16.msra.mxu0 0
    %1486 = vmatprep.mubr.bf16.mxu0 0
    %1487 = vmatmul.mubr.bf16.gmra.mrb[0].mxu0 %v1251
    %v1488 = vpop.f32.mrb[0].mxu0
    %v1489 = vadd.f32 0.0, %v1488
    %v1490 = vpop.f32.mrb[0].mxu0
    %v1491 = vadd.f32 0.0, %v1490
    %v1492 = vpop.f32.mrb[0].mxu0
    %v1493 = vpop.f32.mrb[0].mxu0
    %1494 = vdwg.mxu0
    %v1495 = vadd.f32 %v1172, %v1448
    %v1496 = vadd.f32 %v1174, %v1450
    %v1497 = vadd.f32 %v1213, %v1489
    %v1498 = vadd.f32 %v1215, %v1491
    %v1499 = vld [vmem:[#allocation10 + $0x300] sm:$0xff]
    %v1500 = vld [vmem:[#allocation10 + $0x308] sm:$0xff]
    %v1501 = vld [vmem:[#allocation10 + $0x310] sm:$0xff]
    %v1502 = vld [vmem:[#allocation10 + $0x318] sm:$0xff]
    %v1503 = vld [vmem:[#allocation10 + $0x320] sm:$0xff]
    %v1504 = vld [vmem:[#allocation10 + $0x328] sm:$0xff]
    %v1505 = vld [vmem:[#allocation10 + $0x330] sm:$0xff]
    %v1506 = vld [vmem:[#allocation10 + $0x338] sm:$0xff]
    %v1507 = vld [vmem:[#allocation10 + $0x340] sm:$0xff]
    %v1508 = vld [vmem:[#allocation10 + $0x348] sm:$0xff]
    %v1509 = vld [vmem:[#allocation10 + $0x350] sm:$0xff]
    %v1510 = vld [vmem:[#allocation10 + $0x358] sm:$0xff]
    %v1511 = vld [vmem:[#allocation10 + $0x360] sm:$0xff]
    %v1512 = vld [vmem:[#allocation10 + $0x368] sm:$0xff]
    %v1513 = vld [vmem:[#allocation10 + $0x370] sm:$0xff]
    %v1514 = vld [vmem:[#allocation10 + $0x378] sm:$0xff]
    %v1515 = vld [vmem:[#allocation10 + $0x380] sm:$0xff]
    %v1516 = vld [vmem:[#allocation10 + $0x388] sm:$0xff]
    %v1517 = vld [vmem:[#allocation10 + $0x390] sm:$0xff]
    %v1518 = vld [vmem:[#allocation10 + $0x398] sm:$0xff]
    %v1519 = vld [vmem:[#allocation10 + $0x3a0] sm:$0xff]
    %v1520 = vld [vmem:[#allocation10 + $0x3a8] sm:$0xff]
    %v1521 = vld [vmem:[#allocation10 + $0x3b0] sm:$0xff]
    %v1522 = vld [vmem:[#allocation10 + $0x3b8] sm:$0xff]
    %v1523 = vld [vmem:[#allocation10 + $0x3c0] sm:$0xff]
    %v1524 = vld [vmem:[#allocation10 + $0x3c8] sm:$0xff]
    %v1525 = vld [vmem:[#allocation10 + $0x3d0] sm:$0xff]
    %v1526 = vld [vmem:[#allocation10 + $0x3d8] sm:$0xff]
    %v1527 = vld [vmem:[#allocation10 + $0x3e0] sm:$0xff]
    %v1528 = vld [vmem:[#allocation10 + $0x3e8] sm:$0xff]
    %v1529 = vld [vmem:[#allocation10 + $0x3f0] sm:$0xff]
    %v1530 = vld [vmem:[#allocation10 + $0x3f8] sm:$0xff]
    %v1531 = vrot.slane %v667, 3
    %v1565 = vunpack.c.l.b16 %v1499
    %v1566 = vunpack.c.h.b16 %v1499
    %v1567 = vunpack.c.l.b16 %v1500
    %v1568 = vunpack.c.h.b16 %v1500
    %v1569 = vunpack.c.l.b16 %v1501
    %v1570 = vunpack.c.h.b16 %v1501
    %v1571 = vunpack.c.l.b16 %v1502
    %v1572 = vunpack.c.h.b16 %v1502
    %v1573 = vunpack.c.l.b16 %v1503
    %v1574 = vunpack.c.h.b16 %v1503
    %v1575 = vunpack.c.l.b16 %v1504
    %v1576 = vunpack.c.h.b16 %v1504
    %v1577 = vunpack.c.l.b16 %v1505
    %v1578 = vunpack.c.h.b16 %v1505
    %v1579 = vunpack.c.l.b16 %v1506
    %v1580 = vunpack.c.h.b16 %v1506
    %v1581 = vunpack.c.l.b16 %v1507
    %v1582 = vunpack.c.h.b16 %v1507
    %v1583 = vunpack.c.l.b16 %v1508
    %v1584 = vunpack.c.h.b16 %v1508
    %v1585 = vunpack.c.l.b16 %v1509
    %v1586 = vunpack.c.h.b16 %v1509
    %v1587 = vunpack.c.l.b16 %v1510
    %v1588 = vunpack.c.h.b16 %v1510
    %v1589 = vunpack.c.l.b16 %v1511
    %v1590 = vunpack.c.h.b16 %v1511
    %v1591 = vunpack.c.l.b16 %v1512
    %v1592 = vunpack.c.h.b16 %v1512
    %v1593 = vunpack.c.l.b16 %v1513
    %v1594 = vunpack.c.h.b16 %v1513
    %v1595 = vunpack.c.l.b16 %v1514
    %v1596 = vunpack.c.h.b16 %v1514
    %v1597 = vunpack.c.l.b16 %v1515
    %v1598 = vunpack.c.h.b16 %v1515
    %v1599 = vunpack.c.l.b16 %v1516
    %v1600 = vunpack.c.h.b16 %v1516
    %v1601 = vunpack.c.l.b16 %v1517
    %v1602 = vunpack.c.h.b16 %v1517
    %v1603 = vunpack.c.l.b16 %v1518
    %v1604 = vunpack.c.h.b16 %v1518
    %v1605 = vunpack.c.l.b16 %v1519
    %v1606 = vunpack.c.h.b16 %v1519
    %v1607 = vunpack.c.l.b16 %v1520
    %v1608 = vunpack.c.h.b16 %v1520
    %v1609 = vunpack.c.l.b16 %v1521
    %v1610 = vunpack.c.h.b16 %v1521
    %v1611 = vunpack.c.l.b16 %v1522
    %v1612 = vunpack.c.h.b16 %v1522
    %v1613 = vunpack.c.l.b16 %v1523
    %v1614 = vunpack.c.h.b16 %v1523
    %v1615 = vunpack.c.l.b16 %v1524
    %v1616 = vunpack.c.h.b16 %v1524
    %v1617 = vunpack.c.l.b16 %v1525
    %v1618 = vunpack.c.h.b16 %v1525
    %v1619 = vunpack.c.l.b16 %v1526
    %v1620 = vunpack.c.h.b16 %v1526
    %v1621 = vunpack.c.l.b16 %v1527
    %v1622 = vunpack.c.h.b16 %v1527
    %v1623 = vunpack.c.l.b16 %v1528
    %v1624 = vunpack.c.h.b16 %v1528
    %v1625 = vunpack.c.l.b16 %v1529
    %v1626 = vunpack.c.h.b16 %v1529
    %v1627 = vunpack.c.l.b16 %v1530
    %v1628 = vunpack.c.h.b16 %v1530
    %v1629 = vpack.c.b16 %v1569, %v1565
    %v1630 = vpack.c.b16 %v1570, %v1566
    %v1631 = vpack.c.b16 %v1571, %v1567
    %v1632 = vpack.c.b16 %v1572, %v1568
    %v1633 = vpack.c.b16 %v1577, %v1573
    %v1634 = vpack.c.b16 %v1578, %v1574
    %v1635 = vpack.c.b16 %v1579, %v1575
    %v1636 = vpack.c.b16 %v1580, %v1576
    %v1637 = vpack.c.b16 %v1585, %v1581
    %v1638 = vpack.c.b16 %v1586, %v1582
    %v1639 = vpack.c.b16 %v1587, %v1583
    %v1640 = vpack.c.b16 %v1588, %v1584
    %v1641 = vpack.c.b16 %v1593, %v1589
    %v1642 = vpack.c.b16 %v1594, %v1590
    %v1643 = vpack.c.b16 %v1595, %v1591
    %v1644 = vpack.c.b16 %v1596, %v1592
    %v1645 = vpack.c.b16 %v1601, %v1597
    %v1646 = vpack.c.b16 %v1602, %v1598
    %v1647 = vpack.c.b16 %v1603, %v1599
    %v1648 = vpack.c.b16 %v1604, %v1600
    %v1649 = vpack.c.b16 %v1609, %v1605
    %v1650 = vpack.c.b16 %v1610, %v1606
    %v1651 = vpack.c.b16 %v1611, %v1607
    %v1652 = vpack.c.b16 %v1612, %v1608
    %v1653 = vpack.c.b16 %v1617, %v1613
    %v1654 = vpack.c.b16 %v1618, %v1614
    %v1655 = vpack.c.b16 %v1619, %v1615
    %v1656 = vpack.c.b16 %v1620, %v1616
    %v1657 = vpack.c.b16 %v1625, %v1621
    %v1658 = vpack.c.b16 %v1626, %v1622
    %v1659 = vpack.c.b16 %v1627, %v1623
    %v1660 = vpack.c.b16 %v1628, %v1624
    %1693 = vmatprep.subr.bf16.mxu0 %v1630
    %1694 = vmatpush1.bf16.msra.mxu0 %v1629
    %1695 = vmatprep.subr.bf16.mxu0 %v1634
    %1696 = vmatpush1.bf16.msra.mxu0 %v1633
    %1697 = vmatprep.subr.bf16.mxu0 %v1638
    %1698 = vmatpush1.bf16.msra.mxu0 %v1637
    %1699 = vmatprep.subr.bf16.mxu0 %v1642
    %1700 = vmatpush1.bf16.msra.mxu0 %v1641
    %1701 = vmatprep.subr.bf16.mxu0 %v1646
    %1702 = vmatpush1.bf16.msra.mxu0 %v1645
    %1703 = vmatprep.subr.bf16.mxu0 %v1650
    %1704 = vmatpush1.bf16.msra.mxu0 %v1649
    %1705 = vmatprep.subr.bf16.mxu0 %v1654
    %1706 = vmatpush1.bf16.msra.mxu0 %v1653
    %1707 = vmatprep.subr.bf16.mxu0 %v1658
    %1708 = vmatpush1.bf16.msra.mxu0 %v1657
    %1709 = vmatprep.subr.bf16.mxu0 0
    %1710 = vmatpush1.bf16.msra.mxu0 0
    %1711 = vmatprep.subr.bf16.mxu0 0
    %1712 = vmatpush1.bf16.msra.mxu0 0
    %1713 = vmatprep.subr.bf16.mxu0 0
    %1714 = vmatpush1.bf16.msra.mxu0 0
    %1715 = vmatprep.subr.bf16.mxu0 0
    %1716 = vmatpush1.bf16.msra.mxu0 0
    %1717 = vmatprep.subr.bf16.mxu0 0
    %1718 = vmatpush1.bf16.msra.mxu0 0
    %1719 = vmatprep.subr.bf16.mxu0 0
    %1720 = vmatpush1.bf16.msra.mxu0 0
    %1721 = vmatprep.subr.bf16.mxu0 0
    %1722 = vmatpush1.bf16.msra.mxu0 0
    %1723 = vmatprep.subr.bf16.mxu0 0
    %1724 = vmatpush1.bf16.msra.mxu0 0
    %1725 = vmatprep.mubr.bf16.mxu0 0
    %1726 = vmatmul.mubr.bf16.gmra.mrb[0].mxu0 %v1531
    %v1727 = vpop.f32.mrb[0].mxu0
    %v1728 = vadd.f32 0.0, %v1727
    %v1729 = vpop.f32.mrb[0].mxu0
    %v1730 = vadd.f32 0.0, %v1729
    %v1731 = vpop.f32.mrb[0].mxu0
    %v1732 = vpop.f32.mrb[0].mxu0
    %1733 = vdwg.mxu0
    %1734 = vmatprep.subr.bf16.mxu0 %v1632
    %1735 = vmatpush1.bf16.msra.mxu0 %v1631
    %1736 = vmatprep.subr.bf16.mxu0 %v1636
    %1737 = vmatpush1.bf16.msra.mxu0 %v1635
    %1738 = vmatprep.subr.bf16.mxu0 %v1640
    %1739 = vmatpush1.bf16.msra.mxu0 %v1639
    %1740 = vmatprep.subr.bf16.mxu0 %v1644
    %1741 = vmatpush1.bf16.msra.mxu0 %v1643
    %1742 = vmatprep.subr.bf16.mxu0 %v1648
    %1743 = vmatpush1.bf16.msra.mxu0 %v1647
    %1744 = vmatprep.subr.bf16.mxu0 %v1652
    %1745 = vmatpush1.bf16.msra.mxu0 %v1651
    %1746 = vmatprep.subr.bf16.mxu0 %v1656
    %1747 = vmatpush1.bf16.msra.mxu0 %v1655
    %1748 = vmatprep.subr.bf16.mxu0 %v1660
    %1749 = vmatpush1.bf16.msra.mxu0 %v1659
    %1750 = vmatprep.subr.bf16.mxu0 0
    %1751 = vmatpush1.bf16.msra.mxu0 0
    %1752 = vmatprep.subr.bf16.mxu0 0
    %1753 = vmatpush1.bf16.msra.mxu0 0
    %1754 = vmatprep.subr.bf16.mxu0 0
    %1755 = vmatpush1.bf16.msra.mxu0 0
    %1756 = vmatprep.subr.bf16.mxu0 0
    %1757 = vmatpush1.bf16.msra.mxu0 0
    %1758 = vmatprep.subr.bf16.mxu0 0
    %1759 = vmatpush1.bf16.msra.mxu0 0
    %1760 = vmatprep.subr.bf16.mxu0 0
    %1761 = vmatpush1.bf16.msra.mxu0 0
    %1762 = vmatprep.subr.bf16.mxu0 0
    %1763 = vmatpush1.bf16.msra.mxu0 0
    %1764 = vmatprep.subr.bf16.mxu0 0
    %1765 = vmatpush1.bf16.msra.mxu0 0
    %1766 = vmatprep.mubr.bf16.mxu0 0
    %1767 = vmatmul.mubr.bf16.gmra.mrb[0].mxu0 %v1531
    %v1768 = vpop.f32.mrb[0].mxu0
    %v1769 = vadd.f32 0.0, %v1768
    %v1770 = vpop.f32.mrb[0].mxu0
    %v1771 = vadd.f32 0.0, %v1770
    %v1772 = vpop.f32.mrb[0].mxu0
    %v1773 = vpop.f32.mrb[0].mxu0
    %1774 = vdwg.mxu0
    %v1775 = vadd.f32 %v1495, %v1728
    %v1776 = vadd.f32 %v1496, %v1730
    %v1777 = vadd.f32 %v1497, %v1769
    %v1778 = vadd.f32 %v1498, %v1771
    %s1779 = sld [smem:[#allocation5 + $0x1]]
    %v1780 = vstv %s1779
    %v1781 = vadd.f32 %v604, %v1780
    %v1782 = vsel %vm608, %v1781, 0.0
    %1783 = vadd.xlane.f32.xlu0 %v1782
    %v1784 = vpop.xlane.xlu0 %1783
    %v1785 = vrot.slane %v1784, 4
    %v1786 = vadd.f32 %v1784, %v1785
    %v1787 = vrot.slane %v1786, 2
    %v1788 = vadd.f32 %v1786, %v1787
    %v1789 = vrot.slane %v1788, 1
    %v1790 = vadd.f32 %v1788, %v1789
    %s1791 = vtos %v1790
    %v1792 = vrcp.pop 128.0
    %s1793 = vtos %v1792
    %s1794 = smul.f32 %s1791, %s1793
    %v1795 = vstv %s1794
    %v1796 = vsub.f32 %v1781, %v1795
    %v1797 = vmul.f32 %v1796, %v1796
    %v1798 = vsel %vm608, %v1797, 0.0
    %1799 = vadd.xlane.f32.xlu0 %v1798
    %v1800 = vpop.xlane.xlu0 %1799
    %v1801 = vrot.slane %v1800, 4
    %v1802 = vadd.f32 %v1800, %v1801
    %v1803 = vrot.slane %v1802, 2
    %v1804 = vadd.f32 %v1802, %v1803
    %v1805 = vrot.slane %v1804, 1
    %v1806 = vadd.f32 %v1804, %v1805
    %s1807 = vtos %v1806
    %v1808 = vrcp.pop 128.0
    %s1809 = vtos %v1808
    %s1810 = smul.f32 %s1807, %s1809
    %s1811 = sadd.f32 %s1810, 1e-05
    %v1812 = vstv %s1811
    %v1813 = vrsqrt.pop %v1812
    %s1814 = vtos %v1813
    %v1815 = vstv %s1814
    %v1816 = vmul.f32 %v1796, %v1815
    %s1817 = sld [smem:[#allocation7 + $0x1]]
    %v1818 = vstv %s1817
    %v1819 = vmul.f32 %v1818, %v1816
    %s1820 = sld [smem:[#allocation8 + $0x1]]
    %v1821 = vstv %s1820
    %v1822 = vadd.f32 %v1819, %v1821
    %v1823 = vxor.u32 %v1822, 2147483648
    %v1824 = vmul.f32 %v1823, 1.442695
    %v1825 = vpow.pop %v1824
    %v1826 = vadd.f32 %v1825, 1.0
    %v1827 = vrcp.pop %v1826
    %v1828 = vmul.f32 1.0, %v1827
    %v1829 = vsel %vm608, %v1828, 0.0
    %1830 = vrot.lane.b32.xlu0 %v1829, 16
    %v1831 = vpop.permute.xlu0 %1830
    %v1832 = vadd.f32 %v1829, %v1831
    %1833 = vrot.lane.b32.xlu0 %v1832, 32
    %v1834 = vpop.permute.xlu0 %1833
    %v1835 = vadd.f32 %v1832, %v1834
    %1836 = vrot.lane.b32.xlu0 %v1835, 64
    %v1837 = vpop.permute.xlu0 %1836
    %v1838 = vadd.f32 %v1835, %v1837
    %v1839 = vmul.f32 %v1838, %v124
    %v1840 = vpack.c.bf16 %v1839, %v1839
    %v1841 = vld [vmem:[#allocation10 + $0x400] sm:$0xff]
    %v1842 = vld [vmem:[#allocation10 + $0x408] sm:$0xff]
    %v1843 = vld [vmem:[#allocation10 + $0x410] sm:$0xff]
    %v1844 = vld [vmem:[#allocation10 + $0x418] sm:$0xff]
    %v1845 = vld [vmem:[#allocation10 + $0x420] sm:$0xff]
    %v1846 = vld [vmem:[#allocation10 + $0x428] sm:$0xff]
    %v1847 = vld [vmem:[#allocation10 + $0x430] sm:$0xff]
    %v1848 = vld [vmem:[#allocation10 + $0x438] sm:$0xff]
    %v1849 = vld [vmem:[#allocation10 + $0x440] sm:$0xff]
    %v1850 = vld [vmem:[#allocation10 + $0x448] sm:$0xff]
    %v1851 = vld [vmem:[#allocation10 + $0x450] sm:$0xff]
    %v1852 = vld [vmem:[#allocation10 + $0x458] sm:$0xff]
    %v1853 = vld [vmem:[#allocation10 + $0x460] sm:$0xff]
    %v1854 = vld [vmem:[#allocation10 + $0x468] sm:$0xff]
    %v1855 = vld [vmem:[#allocation10 + $0x470] sm:$0xff]
    %v1856 = vld [vmem:[#allocation10 + $0x478] sm:$0xff]
    %v1857 = vld [vmem:[#allocation10 + $0x480] sm:$0xff]
    %v1858 = vld [vmem:[#allocation10 + $0x488] sm:$0xff]
    %v1859 = vld [vmem:[#allocation10 + $0x490] sm:$0xff]
    %v1860 = vld [vmem:[#allocation10 + $0x498] sm:$0xff]
    %v1861 = vld [vmem:[#allocation10 + $0x4a0] sm:$0xff]
    %v1862 = vld [vmem:[#allocation10 + $0x4a8] sm:$0xff]
    %v1863 = vld [vmem:[#allocation10 + $0x4b0] sm:$0xff]
    %v1864 = vld [vmem:[#allocation10 + $0x4b8] sm:$0xff]
    %v1865 = vld [vmem:[#allocation10 + $0x4c0] sm:$0xff]
    %v1866 = vld [vmem:[#allocation10 + $0x4c8] sm:$0xff]
    %v1867 = vld [vmem:[#allocation10 + $0x4d0] sm:$0xff]
    %v1868 = vld [vmem:[#allocation10 + $0x4d8] sm:$0xff]
    %v1869 = vld [vmem:[#allocation10 + $0x4e0] sm:$0xff]
    %v1870 = vld [vmem:[#allocation10 + $0x4e8] sm:$0xff]
    %v1871 = vld [vmem:[#allocation10 + $0x4f0] sm:$0xff]
    %v1872 = vld [vmem:[#allocation10 + $0x4f8] sm:$0xff]
    %v1905 = vunpack.c.l.b16 %v1841
    %v1906 = vunpack.c.h.b16 %v1841
    %v1907 = vunpack.c.l.b16 %v1842
    %v1908 = vunpack.c.h.b16 %v1842
    %v1909 = vunpack.c.l.b16 %v1843
    %v1910 = vunpack.c.h.b16 %v1843
    %v1911 = vunpack.c.l.b16 %v1844
    %v1912 = vunpack.c.h.b16 %v1844
    %v1913 = vunpack.c.l.b16 %v1845
    %v1914 = vunpack.c.h.b16 %v1845
    %v1915 = vunpack.c.l.b16 %v1846
    %v1916 = vunpack.c.h.b16 %v1846
    %v1917 = vunpack.c.l.b16 %v1847
    %v1918 = vunpack.c.h.b16 %v1847
    %v1919 = vunpack.c.l.b16 %v1848
    %v1920 = vunpack.c.h.b16 %v1848
    %v1921 = vunpack.c.l.b16 %v1849
    %v1922 = vunpack.c.h.b16 %v1849
    %v1923 = vunpack.c.l.b16 %v1850
    %v1924 = vunpack.c.h.b16 %v1850
    %v1925 = vunpack.c.l.b16 %v1851
    %v1926 = vunpack.c.h.b16 %v1851
    %v1927 = vunpack.c.l.b16 %v1852
    %v1928 = vunpack.c.h.b16 %v1852
    %v1929 = vunpack.c.l.b16 %v1853
    %v1930 = vunpack.c.h.b16 %v1853
    %v1931 = vunpack.c.l.b16 %v1854
    %v1932 = vunpack.c.h.b16 %v1854
    %v1933 = vunpack.c.l.b16 %v1855
    %v1934 = vunpack.c.h.b16 %v1855
    %v1935 = vunpack.c.l.b16 %v1856
    %v1936 = vunpack.c.h.b16 %v1856
    %v1937 = vunpack.c.l.b16 %v1857
    %v1938 = vunpack.c.h.b16 %v1857
    %v1939 = vunpack.c.l.b16 %v1858
    %v1940 = vunpack.c.h.b16 %v1858
    %v1941 = vunpack.c.l.b16 %v1859
    %v1942 = vunpack.c.h.b16 %v1859
    %v1943 = vunpack.c.l.b16 %v1860
    %v1944 = vunpack.c.h.b16 %v1860
    %v1945 = vunpack.c.l.b16 %v1861
    %v1946 = vunpack.c.h.b16 %v1861
    %v1947 = vunpack.c.l.b16 %v1862
    %v1948 = vunpack.c.h.b16 %v1862
    %v1949 = vunpack.c.l.b16 %v1863
    %v1950 = vunpack.c.h.b16 %v1863
    %v1951 = vunpack.c.l.b16 %v1864
    %v1952 = vunpack.c.h.b16 %v1864
    %v1953 = vunpack.c.l.b16 %v1865
    %v1954 = vunpack.c.h.b16 %v1865
    %v1955 = vunpack.c.l.b16 %v1866
    %v1956 = vunpack.c.h.b16 %v1866
    %v1957 = vunpack.c.l.b16 %v1867
    %v1958 = vunpack.c.h.b16 %v1867
    %v1959 = vunpack.c.l.b16 %v1868
    %v1960 = vunpack.c.h.b16 %v1868
    %v1961 = vunpack.c.l.b16 %v1869
    %v1962 = vunpack.c.h.b16 %v1869
    %v1963 = vunpack.c.l.b16 %v1870
    %v1964 = vunpack.c.h.b16 %v1870
    %v1965 = vunpack.c.l.b16 %v1871
    %v1966 = vunpack.c.h.b16 %v1871
    %v1967 = vunpack.c.l.b16 %v1872
    %v1968 = vunpack.c.h.b16 %v1872
    %v1969 = vpack.c.b16 %v1909, %v1905
    %v1970 = vpack.c.b16 %v1910, %v1906
    %v1971 = vpack.c.b16 %v1911, %v1907
    %v1972 = vpack.c.b16 %v1912, %v1908
    %v1973 = vpack.c.b16 %v1917, %v1913
    %v1974 = vpack.c.b16 %v1918, %v1914
    %v1975 = vpack.c.b16 %v1919, %v1915
    %v1976 = vpack.c.b16 %v1920, %v1916
    %v1977 = vpack.c.b16 %v1925, %v1921
    %v1978 = vpack.c.b16 %v1926, %v1922
    %v1979 = vpack.c.b16 %v1927, %v1923
    %v1980 = vpack.c.b16 %v1928, %v1924
    %v1981 = vpack.c.b16 %v1933, %v1929
    %v1982 = vpack.c.b16 %v1934, %v1930
    %v1983 = vpack.c.b16 %v1935, %v1931
    %v1984 = vpack.c.b16 %v1936, %v1932
    %v1985 = vpack.c.b16 %v1941, %v1937
    %v1986 = vpack.c.b16 %v1942, %v1938
    %v1987 = vpack.c.b16 %v1943, %v1939
    %v1988 = vpack.c.b16 %v1944, %v1940
    %v1989 = vpack.c.b16 %v1949, %v1945
    %v1990 = vpack.c.b16 %v1950, %v1946
    %v1991 = vpack.c.b16 %v1951, %v1947
    %v1992 = vpack.c.b16 %v1952, %v1948
    %v1993 = vpack.c.b16 %v1957, %v1953
    %v1994 = vpack.c.b16 %v1958, %v1954
    %v1995 = vpack.c.b16 %v1959, %v1955
    %v1996 = vpack.c.b16 %v1960, %v1956
    %v1997 = vpack.c.b16 %v1965, %v1961
    %v1998 = vpack.c.b16 %v1966, %v1962
    %v1999 = vpack.c.b16 %v1967, %v1963
    %v2000 = vpack.c.b16 %v1968, %v1964
    %2033 = vmatprep.subr.bf16.mxu0 %v1970
    %2034 = vmatpush1.bf16.msra.mxu0 %v1969
    %2035 = vmatprep.subr.bf16.mxu0 %v1974
    %2036 = vmatpush1.bf16.msra.mxu0 %v1973
    %2037 = vmatprep.subr.bf16.mxu0 %v1978
    %2038 = vmatpush1.bf16.msra.mxu0 %v1977
    %2039 = vmatprep.subr.bf16.mxu0 %v1982
    %2040 = vmatpush1.bf16.msra.mxu0 %v1981
    %2041 = vmatprep.subr.bf16.mxu0 %v1986
    %2042 = vmatpush1.bf16.msra.mxu0 %v1985
    %2043 = vmatprep.subr.bf16.mxu0 %v1990
    %2044 = vmatpush1.bf16.msra.mxu0 %v1989
    %2045 = vmatprep.subr.bf16.mxu0 %v1994
    %2046 = vmatpush1.bf16.msra.mxu0 %v1993
    %2047 = vmatprep.subr.bf16.mxu0 %v1998
    %2048 = vmatpush1.bf16.msra.mxu0 %v1997
    %2049 = vmatprep.subr.bf16.mxu0 0
    %2050 = vmatpush1.bf16.msra.mxu0 0
    %2051 = vmatprep.subr.bf16.mxu0 0
    %2052 = vmatpush1.bf16.msra.mxu0 0
    %2053 = vmatprep.subr.bf16.mxu0 0
    %2054 = vmatpush1.bf16.msra.mxu0 0
    %2055 = vmatprep.subr.bf16.mxu0 0
    %2056 = vmatpush1.bf16.msra.mxu0 0
    %2057 = vmatprep.subr.bf16.mxu0 0
    %2058 = vmatpush1.bf16.msra.mxu0 0
    %2059 = vmatprep.subr.bf16.mxu0 0
    %2060 = vmatpush1.bf16.msra.mxu0 0
    %2061 = vmatprep.subr.bf16.mxu0 0
    %2062 = vmatpush1.bf16.msra.mxu0 0
    %2063 = vmatprep.subr.bf16.mxu0 0
    %2064 = vmatpush1.bf16.msra.mxu0 0
    %2065 = vmatprep.mubr.bf16.mxu0 0
    %2066 = vmatmul.mubr.bf16.gmra.mrb[0].mxu0 %v1840
    %v2067 = vpop.f32.mrb[0].mxu0
    %v2068 = vadd.f32 0.0, %v2067
    %v2069 = vpop.f32.mrb[0].mxu0
    %v2070 = vadd.f32 0.0, %v2069
    %v2071 = vpop.f32.mrb[0].mxu0
    %v2072 = vpop.f32.mrb[0].mxu0
    %2073 = vdwg.mxu0
    %2074 = vmatprep.subr.bf16.mxu0 %v1972
    %2075 = vmatpush1.bf16.msra.mxu0 %v1971
    %2076 = vmatprep.subr.bf16.mxu0 %v1976
    %2077 = vmatpush1.bf16.msra.mxu0 %v1975
    %2078 = vmatprep.subr.bf16.mxu0 %v1980
    %2079 = vmatpush1.bf16.msra.mxu0 %v1979
    %2080 = vmatprep.subr.bf16.mxu0 %v1984
    %2081 = vmatpush1.bf16.msra.mxu0 %v1983
    %2082 = vmatprep.subr.bf16.mxu0 %v1988
    %2083 = vmatpush1.bf16.msra.mxu0 %v1987
    %2084 = vmatprep.subr.bf16.mxu0 %v1992
    %2085 = vmatpush1.bf16.msra.mxu0 %v1991
    %2086 = vmatprep.subr.bf16.mxu0 %v1996
    %2087 = vmatpush1.bf16.msra.mxu0 %v1995
    %2088 = vmatprep.subr.bf16.mxu0 %v2000
    %2089 = vmatpush1.bf16.msra.mxu0 %v1999
    %2090 = vmatprep.subr.bf16.mxu0 0
    %2091 = vmatpush1.bf16.msra.mxu0 0
    %2092 = vmatprep.subr.bf16.mxu0 0
    %2093 = vmatpush1.bf16.msra.mxu0 0
    %2094 = vmatprep.subr.bf16.mxu0 0
    %2095 = vmatpush1.bf16.msra.mxu0 0
    %2096 = vmatprep.subr.bf16.mxu0 0
    %2097 = vmatpush1.bf16.msra.mxu0 0
    %2098 = vmatprep.subr.bf16.mxu0 0
    %2099 = vmatpush1.bf16.msra.mxu0 0
    %2100 = vmatprep.subr.bf16.mxu0 0
    %2101 = vmatpush1.bf16.msra.mxu0 0
    %2102 = vmatprep.subr.bf16.mxu0 0
    %2103 = vmatpush1.bf16.msra.mxu0 0
    %2104 = vmatprep.subr.bf16.mxu0 0
    %2105 = vmatpush1.bf16.msra.mxu0 0
    %2106 = vmatprep.mubr.bf16.mxu0 0
    %2107 = vmatmul.mubr.bf16.gmra.mrb[0].mxu0 %v1840
    %v2108 = vpop.f32.mrb[0].mxu0
    %v2109 = vadd.f32 0.0, %v2108
    %v2110 = vpop.f32.mrb[0].mxu0
    %v2111 = vadd.f32 0.0, %v2110
    %v2112 = vpop.f32.mrb[0].mxu0
    %v2113 = vpop.f32.mrb[0].mxu0
    %2114 = vdwg.mxu0
    %v2115 = vadd.f32 %v1775, %v2068
    %v2116 = vadd.f32 %v1776, %v2070
    %v2117 = vadd.f32 %v1777, %v2109
    %v2118 = vadd.f32 %v1778, %v2111
    %v2119 = vld [vmem:[#allocation10 + $0x500] sm:$0xff]
    %v2120 = vld [vmem:[#allocation10 + $0x508] sm:$0xff]
    %v2121 = vld [vmem:[#allocation10 + $0x510] sm:$0xff]
    %v2122 = vld [vmem:[#allocation10 + $0x518] sm:$0xff]
    %v2123 = vld [vmem:[#allocation10 + $0x520] sm:$0xff]
    %v2124 = vld [vmem:[#allocation10 + $0x528] sm:$0xff]
    %v2125 = vld [vmem:[#allocation10 + $0x530] sm:$0xff]
    %v2126 = vld [vmem:[#allocation10 + $0x538] sm:$0xff]
    %v2127 = vld [vmem:[#allocation10 + $0x540] sm:$0xff]
    %v2128 = vld [vmem:[#allocation10 + $0x548] sm:$0xff]
    %v2129 = vld [vmem:[#allocation10 + $0x550] sm:$0xff]
    %v2130 = vld [vmem:[#allocation10 + $0x558] sm:$0xff]
    %v2131 = vld [vmem:[#allocation10 + $0x560] sm:$0xff]
    %v2132 = vld [vmem:[#allocation10 + $0x568] sm:$0xff]
    %v2133 = vld [vmem:[#allocation10 + $0x570] sm:$0xff]
    %v2134 = vld [vmem:[#allocation10 + $0x578] sm:$0xff]
    %v2135 = vld [vmem:[#allocation10 + $0x580] sm:$0xff]
    %v2136 = vld [vmem:[#allocation10 + $0x588] sm:$0xff]
    %v2137 = vld [vmem:[#allocation10 + $0x590] sm:$0xff]
    %v2138 = vld [vmem:[#allocation10 + $0x598] sm:$0xff]
    %v2139 = vld [vmem:[#allocation10 + $0x5a0] sm:$0xff]
    %v2140 = vld [vmem:[#allocation10 + $0x5a8] sm:$0xff]
    %v2141 = vld [vmem:[#allocation10 + $0x5b0] sm:$0xff]
    %v2142 = vld [vmem:[#allocation10 + $0x5b8] sm:$0xff]
    %v2143 = vld [vmem:[#allocation10 + $0x5c0] sm:$0xff]
    %v2144 = vld [vmem:[#allocation10 + $0x5c8] sm:$0xff]
    %v2145 = vld [vmem:[#allocation10 + $0x5d0] sm:$0xff]
    %v2146 = vld [vmem:[#allocation10 + $0x5d8] sm:$0xff]
    %v2147 = vld [vmem:[#allocation10 + $0x5e0] sm:$0xff]
    %v2148 = vld [vmem:[#allocation10 + $0x5e8] sm:$0xff]
    %v2149 = vld [vmem:[#allocation10 + $0x5f0] sm:$0xff]
    %v2150 = vld [vmem:[#allocation10 + $0x5f8] sm:$0xff]
    %v2152 = vrot.slane %v1840, 1
    %v2186 = vunpack.c.l.b16 %v2119
    %v2187 = vunpack.c.h.b16 %v2119
    %v2188 = vunpack.c.l.b16 %v2120
    %v2189 = vunpack.c.h.b16 %v2120
    %v2190 = vunpack.c.l.b16 %v2121
    %v2191 = vunpack.c.h.b16 %v2121
    %v2192 = vunpack.c.l.b16 %v2122
    %v2193 = vunpack.c.h.b16 %v2122
    %v2194 = vunpack.c.l.b16 %v2123
    %v2195 = vunpack.c.h.b16 %v2123
    %v2196 = vunpack.c.l.b16 %v2124
    %v2197 = vunpack.c.h.b16 %v2124
    %v2198 = vunpack.c.l.b16 %v2125
    %v2199 = vunpack.c.h.b16 %v2125
    %v2200 = vunpack.c.l.b16 %v2126
    %v2201 = vunpack.c.h.b16 %v2126
    %v2202 = vunpack.c.l.b16 %v2127
    %v2203 = vunpack.c.h.b16 %v2127
    %v2204 = vunpack.c.l.b16 %v2128
    %v2205 = vunpack.c.h.b16 %v2128
    %v2206 = vunpack.c.l.b16 %v2129
    %v2207 = vunpack.c.h.b16 %v2129
    %v2208 = vunpack.c.l.b16 %v2130
    %v2209 = vunpack.c.h.b16 %v2130
    %v2210 = vunpack.c.l.b16 %v2131
    %v2211 = vunpack.c.h.b16 %v2131
    %v2212 = vunpack.c.l.b16 %v2132
    %v2213 = vunpack.c.h.b16 %v2132
    %v2214 = vunpack.c.l.b16 %v2133
    %v2215 = vunpack.c.h.b16 %v2133
    %v2216 = vunpack.c.l.b16 %v2134
    %v2217 = vunpack.c.h.b16 %v2134
    %v2218 = vunpack.c.l.b16 %v2135
    %v2219 = vunpack.c.h.b16 %v2135
    %v2220 = vunpack.c.l.b16 %v2136
    %v2221 = vunpack.c.h.b16 %v2136
    %v2222 = vunpack.c.l.b16 %v2137
    %v2223 = vunpack.c.h.b16 %v2137
    %v2224 = vunpack.c.l.b16 %v2138
    %v2225 = vunpack.c.h.b16 %v2138
    %v2226 = vunpack.c.l.b16 %v2139
    %v2227 = vunpack.c.h.b16 %v2139
    %v2228 = vunpack.c.l.b16 %v2140
    %v2229 = vunpack.c.h.b16 %v2140
    %v2230 = vunpack.c.l.b16 %v2141
    %v2231 = vunpack.c.h.b16 %v2141
    %v2232 = vunpack.c.l.b16 %v2142
    %v2233 = vunpack.c.h.b16 %v2142
    %v2234 = vunpack.c.l.b16 %v2143
    %v2235 = vunpack.c.h.b16 %v2143
    %v2236 = vunpack.c.l.b16 %v2144
    %v2237 = vunpack.c.h.b16 %v2144
    %v2238 = vunpack.c.l.b16 %v2145
    %v2239 = vunpack.c.h.b16 %v2145
    %v2240 = vunpack.c.l.b16 %v2146
    %v2241 = vunpack.c.h.b16 %v2146
    %v2242 = vunpack.c.l.b16 %v2147
    %v2243 = vunpack.c.h.b16 %v2147
    %v2244 = vunpack.c.l.b16 %v2148
    %v2245 = vunpack.c.h.b16 %v2148
    %v2246 = vunpack.c.l.b16 %v2149
    %v2247 = vunpack.c.h.b16 %v2149
    %v2248 = vunpack.c.l.b16 %v2150
    %v2249 = vunpack.c.h.b16 %v2150
    %v2250 = vpack.c.b16 %v2190, %v2186
    %v2251 = vpack.c.b16 %v2191, %v2187
    %v2252 = vpack.c.b16 %v2192, %v2188
    %v2253 = vpack.c.b16 %v2193, %v2189
    %v2254 = vpack.c.b16 %v2198, %v2194
    %v2255 = vpack.c.b16 %v2199, %v2195
    %v2256 = vpack.c.b16 %v2200, %v2196
    %v2257 = vpack.c.b16 %v2201, %v2197
    %v2258 = vpack.c.b16 %v2206, %v2202
    %v2259 = vpack.c.b16 %v2207, %v2203
    %v2260 = vpack.c.b16 %v2208, %v2204
    %v2261 = vpack.c.b16 %v2209, %v2205
    %v2262 = vpack.c.b16 %v2214, %v2210
    %v2263 = vpack.c.b16 %v2215, %v2211
    %v2264 = vpack.c.b16 %v2216, %v2212
    %v2265 = vpack.c.b16 %v2217, %v2213
    %v2266 = vpack.c.b16 %v2222, %v2218
    %v2267 = vpack.c.b16 %v2223, %v2219
    %v2268 = vpack.c.b16 %v2224, %v2220
    %v2269 = vpack.c.b16 %v2225, %v2221
    %v2270 = vpack.c.b16 %v2230, %v2226
    %v2271 = vpack.c.b16 %v2231, %v2227
    %v2272 = vpack.c.b16 %v2232, %v2228
    %v2273 = vpack.c.b16 %v2233, %v2229
    %v2274 = vpack.c.b16 %v2238, %v2234
    %v2275 = vpack.c.b16 %v2239, %v2235
    %v2276 = vpack.c.b16 %v2240, %v2236
    %v2277 = vpack.c.b16 %v2241, %v2237
    %v2278 = vpack.c.b16 %v2246, %v2242
    %v2279 = vpack.c.b16 %v2247, %v2243
    %v2280 = vpack.c.b16 %v2248, %v2244
    %v2281 = vpack.c.b16 %v2249, %v2245
    %2314 = vmatprep.subr.bf16.mxu0 %v2251
    %2315 = vmatpush1.bf16.msra.mxu0 %v2250
    %2316 = vmatprep.subr.bf16.mxu0 %v2255
    %2317 = vmatpush1.bf16.msra.mxu0 %v2254
    %2318 = vmatprep.subr.bf16.mxu0 %v2259
    %2319 = vmatpush1.bf16.msra.mxu0 %v2258
    %2320 = vmatprep.subr.bf16.mxu0 %v2263
    %2321 = vmatpush1.bf16.msra.mxu0 %v2262
    %2322 = vmatprep.subr.bf16.mxu0 %v2267
    %2323 = vmatpush1.bf16.msra.mxu0 %v2266
    %2324 = vmatprep.subr.bf16.mxu0 %v2271
    %2325 = vmatpush1.bf16.msra.mxu0 %v2270
    %2326 = vmatprep.subr.bf16.mxu0 %v2275
    %2327 = vmatpush1.bf16.msra.mxu0 %v2274
    %2328 = vmatprep.subr.bf16.mxu0 %v2279
    %2329 = vmatpush1.bf16.msra.mxu0 %v2278
    %2330 = vmatprep.subr.bf16.mxu0 0
    %2331 = vmatpush1.bf16.msra.mxu0 0
    %2332 = vmatprep.subr.bf16.mxu0 0
    %2333 = vmatpush1.bf16.msra.mxu0 0
    %2334 = vmatprep.subr.bf16.mxu0 0
    %2335 = vmatpush1.bf16.msra.mxu0 0
    %2336 = vmatprep.subr.bf16.mxu0 0
    %2337 = vmatpush1.bf16.msra.mxu0 0
    %2338 = vmatprep.subr.bf16.mxu0 0
    %2339 = vmatpush1.bf16.msra.mxu0 0
    %2340 = vmatprep.subr.bf16.mxu0 0
    %2341 = vmatpush1.bf16.msra.mxu0 0
    %2342 = vmatprep.subr.bf16.mxu0 0
    %2343 = vmatpush1.bf16.msra.mxu0 0
    %2344 = vmatprep.subr.bf16.mxu0 0
    %2345 = vmatpush1.bf16.msra.mxu0 0
    %2346 = vmatprep.mubr.bf16.mxu0 0
    %2347 = vmatmul.mubr.bf16.gmra.mrb[0].mxu0 %v2152
    %v2348 = vpop.f32.mrb[0].mxu0
    %v2349 = vadd.f32 0.0, %v2348
    %v2350 = vpop.f32.mrb[0].mxu0
    %v2351 = vadd.f32 0.0, %v2350
    %v2352 = vpop.f32.mrb[0].mxu0
    %v2353 = vpop.f32.mrb[0].mxu0
    %2354 = vdwg.mxu0
    %2355 = vmatprep.subr.bf16.mxu0 %v2253
    %2356 = vmatpush1.bf16.msra.mxu0 %v2252
    %2357 = vmatprep.subr.bf16.mxu0 %v2257
    %2358 = vmatpush1.bf16.msra.mxu0 %v2256
    %2359 = vmatprep.subr.bf16.mxu0 %v2261
    %2360 = vmatpush1.bf16.msra.mxu0 %v2260
    %2361 = vmatprep.subr.bf16.mxu0 %v2265
    %2362 = vmatpush1.bf16.msra.mxu0 %v2264
    %2363 = vmatprep.subr.bf16.mxu0 %v2269
    %2364 = vmatpush1.bf16.msra.mxu0 %v2268
    %2365 = vmatprep.subr.bf16.mxu0 %v2273
    %2366 = vmatpush1.bf16.msra.mxu0 %v2272
    %2367 = vmatprep.subr.bf16.mxu0 %v2277
    %2368 = vmatpush1.bf16.msra.mxu0 %v2276
    %2369 = vmatprep.subr.bf16.mxu0 %v2281
    %2370 = vmatpush1.bf16.msra.mxu0 %v2280
    %2371 = vmatprep.subr.bf16.mxu0 0
    %2372 = vmatpush1.bf16.msra.mxu0 0
    %2373 = vmatprep.subr.bf16.mxu0 0
    %2374 = vmatpush1.bf16.msra.mxu0 0
    %2375 = vmatprep.subr.bf16.mxu0 0
    %2376 = vmatpush1.bf16.msra.mxu0 0
    %2377 = vmatprep.subr.bf16.mxu0 0
    %2378 = vmatpush1.bf16.msra.mxu0 0
    %2379 = vmatprep.subr.bf16.mxu0 0
    %2380 = vmatpush1.bf16.msra.mxu0 0
    %2381 = vmatprep.subr.bf16.mxu0 0
    %2382 = vmatpush1.bf16.msra.mxu0 0
    %2383 = vmatprep.subr.bf16.mxu0 0
    %2384 = vmatpush1.bf16.msra.mxu0 0
    %2385 = vmatprep.subr.bf16.mxu0 0
    %2386 = vmatpush1.bf16.msra.mxu0 0
    %2387 = vmatprep.mubr.bf16.mxu0 0
    %2388 = vmatmul.mubr.bf16.gmra.mrb[0].mxu0 %v2152
    %v2389 = vpop.f32.mrb[0].mxu0
    %v2390 = vadd.f32 0.0, %v2389
    %v2391 = vpop.f32.mrb[0].mxu0
    %v2392 = vadd.f32 0.0, %v2391
    %v2393 = vpop.f32.mrb[0].mxu0
    %v2394 = vpop.f32.mrb[0].mxu0
    %2395 = vdwg.mxu0
    %v2396 = vadd.f32 %v2115, %v2349
    %v2397 = vadd.f32 %v2116, %v2351
    %v2398 = vadd.f32 %v2117, %v2390
    %v2399 = vadd.f32 %v2118, %v2392
    %v2400 = vld [vmem:[#allocation10 + $0x600] sm:$0xff]
    %v2401 = vld [vmem:[#allocation10 + $0x608] sm:$0xff]
    %v2402 = vld [vmem:[#allocation10 + $0x610] sm:$0xff]
    %v2403 = vld [vmem:[#allocation10 + $0x618] sm:$0xff]
    %v2404 = vld [vmem:[#allocation10 + $0x620] sm:$0xff]
    %v2405 = vld [vmem:[#allocation10 + $0x628] sm:$0xff]
    %v2406 = vld [vmem:[#allocation10 + $0x630] sm:$0xff]
    %v2407 = vld [vmem:[#allocation10 + $0x638] sm:$0xff]
    %v2408 = vld [vmem:[#allocation10 + $0x640] sm:$0xff]
    %v2409 = vld [vmem:[#allocation10 + $0x648] sm:$0xff]
    %v2410 = vld [vmem:[#allocation10 + $0x650] sm:$0xff]
    %v2411 = vld [vmem:[#allocation10 + $0x658] sm:$0xff]
    %v2412 = vld [vmem:[#allocation10 + $0x660] sm:$0xff]
    %v2413 = vld [vmem:[#allocation10 + $0x668] sm:$0xff]
    %v2414 = vld [vmem:[#allocation10 + $0x670] sm:$0xff]
    %v2415 = vld [vmem:[#allocation10 + $0x678] sm:$0xff]
    %v2416 = vld [vmem:[#allocation10 + $0x680] sm:$0xff]
    %v2417 = vld [vmem:[#allocation10 + $0x688] sm:$0xff]
    %v2418 = vld [vmem:[#allocation10 + $0x690] sm:$0xff]
    %v2419 = vld [vmem:[#allocation10 + $0x698] sm:$0xff]
    %v2420 = vld [vmem:[#allocation10 + $0x6a0] sm:$0xff]
    %v2421 = vld [vmem:[#allocation10 + $0x6a8] sm:$0xff]
    %v2422 = vld [vmem:[#allocation10 + $0x6b0] sm:$0xff]
    %v2423 = vld [vmem:[#allocation10 + $0x6b8] sm:$0xff]
    %v2424 = vld [vmem:[#allocation10 + $0x6c0] sm:$0xff]
    %v2425 = vld [vmem:[#allocation10 + $0x6c8] sm:$0xff]
    %v2426 = vld [vmem:[#allocation10 + $0x6d0] sm:$0xff]
    %v2427 = vld [vmem:[#allocation10 + $0x6d8] sm:$0xff]
    %v2428 = vld [vmem:[#allocation10 + $0x6e0] sm:$0xff]
    %v2429 = vld [vmem:[#allocation10 + $0x6e8] sm:$0xff]
    %v2430 = vld [vmem:[#allocation10 + $0x6f0] sm:$0xff]
    %v2431 = vld [vmem:[#allocation10 + $0x6f8] sm:$0xff]
    %v2432 = vrot.slane %v1840, 2
    %v2466 = vunpack.c.l.b16 %v2400
    %v2467 = vunpack.c.h.b16 %v2400
    %v2468 = vunpack.c.l.b16 %v2401
    %v2469 = vunpack.c.h.b16 %v2401
    %v2470 = vunpack.c.l.b16 %v2402
    %v2471 = vunpack.c.h.b16 %v2402
    %v2472 = vunpack.c.l.b16 %v2403
    %v2473 = vunpack.c.h.b16 %v2403
    %v2474 = vunpack.c.l.b16 %v2404
    %v2475 = vunpack.c.h.b16 %v2404
    %v2476 = vunpack.c.l.b16 %v2405
    %v2477 = vunpack.c.h.b16 %v2405
    %v2478 = vunpack.c.l.b16 %v2406
    %v2479 = vunpack.c.h.b16 %v2406
    %v2480 = vunpack.c.l.b16 %v2407
    %v2481 = vunpack.c.h.b16 %v2407
    %v2482 = vunpack.c.l.b16 %v2408
    %v2483 = vunpack.c.h.b16 %v2408
    %v2484 = vunpack.c.l.b16 %v2409
    %v2485 = vunpack.c.h.b16 %v2409
    %v2486 = vunpack.c.l.b16 %v2410
    %v2487 = vunpack.c.h.b16 %v2410
    %v2488 = vunpack.c.l.b16 %v2411
    %v2489 = vunpack.c.h.b16 %v2411
    %v2490 = vunpack.c.l.b16 %v2412
    %v2491 = vunpack.c.h.b16 %v2412
    %v2492 = vunpack.c.l.b16 %v2413
    %v2493 = vunpack.c.h.b16 %v2413
    %v2494 = vunpack.c.l.b16 %v2414
    %v2495 = vunpack.c.h.b16 %v2414
    %v2496 = vunpack.c.l.b16 %v2415
    %v2497 = vunpack.c.h.b16 %v2415
    %v2498 = vunpack.c.l.b16 %v2416
    %v2499 = vunpack.c.h.b16 %v2416
    %v2500 = vunpack.c.l.b16 %v2417
    %v2501 = vunpack.c.h.b16 %v2417
    %v2502 = vunpack.c.l.b16 %v2418
    %v2503 = vunpack.c.h.b16 %v2418
    %v2504 = vunpack.c.l.b16 %v2419
    %v2505 = vunpack.c.h.b16 %v2419
    %v2506 = vunpack.c.l.b16 %v2420
    %v2507 = vunpack.c.h.b16 %v2420
    %v2508 = vunpack.c.l.b16 %v2421
    %v2509 = vunpack.c.h.b16 %v2421
    %v2510 = vunpack.c.l.b16 %v2422
    %v2511 = vunpack.c.h.b16 %v2422
    %v2512 = vunpack.c.l.b16 %v2423
    %v2513 = vunpack.c.h.b16 %v2423
    %v2514 = vunpack.c.l.b16 %v2424
    %v2515 = vunpack.c.h.b16 %v2424
    %v2516 = vunpack.c.l.b16 %v2425
    %v2517 = vunpack.c.h.b16 %v2425
    %v2518 = vunpack.c.l.b16 %v2426
    %v2519 = vunpack.c.h.b16 %v2426
    %v2520 = vunpack.c.l.b16 %v2427
    %v2521 = vunpack.c.h.b16 %v2427
    %v2522 = vunpack.c.l.b16 %v2428
    %v2523 = vunpack.c.h.b16 %v2428
    %v2524 = vunpack.c.l.b16 %v2429
    %v2525 = vunpack.c.h.b16 %v2429
    %v2526 = vunpack.c.l.b16 %v2430
    %v2527 = vunpack.c.h.b16 %v2430
    %v2528 = vunpack.c.l.b16 %v2431
    %v2529 = vunpack.c.h.b16 %v2431
    %v2530 = vpack.c.b16 %v2470, %v2466
    %v2531 = vpack.c.b16 %v2471, %v2467
    %v2532 = vpack.c.b16 %v2472, %v2468
    %v2533 = vpack.c.b16 %v2473, %v2469
    %v2534 = vpack.c.b16 %v2478, %v2474
    %v2535 = vpack.c.b16 %v2479, %v2475
    %v2536 = vpack.c.b16 %v2480, %v2476
    %v2537 = vpack.c.b16 %v2481, %v2477
    %v2538 = vpack.c.b16 %v2486, %v2482
    %v2539 = vpack.c.b16 %v2487, %v2483
    %v2540 = vpack.c.b16 %v2488, %v2484
    %v2541 = vpack.c.b16 %v2489, %v2485
    %v2542 = vpack.c.b16 %v2494, %v2490
    %v2543 = vpack.c.b16 %v2495, %v2491
    %v2544 = vpack.c.b16 %v2496, %v2492
    %v2545 = vpack.c.b16 %v2497, %v2493
    %v2546 = vpack.c.b16 %v2502, %v2498
    %v2547 = vpack.c.b16 %v2503, %v2499
    %v2548 = vpack.c.b16 %v2504, %v2500
    %v2549 = vpack.c.b16 %v2505, %v2501
    %v2550 = vpack.c.b16 %v2510, %v2506
    %v2551 = vpack.c.b16 %v2511, %v2507
    %v2552 = vpack.c.b16 %v2512, %v2508
    %v2553 = vpack.c.b16 %v2513, %v2509
    %v2554 = vpack.c.b16 %v2518, %v2514
    %v2555 = vpack.c.b16 %v2519, %v2515
    %v2556 = vpack.c.b16 %v2520, %v2516
    %v2557 = vpack.c.b16 %v2521, %v2517
    %v2558 = vpack.c.b16 %v2526, %v2522
    %v2559 = vpack.c.b16 %v2527, %v2523
    %v2560 = vpack.c.b16 %v2528, %v2524
    %v2561 = vpack.c.b16 %v2529, %v2525
    %2594 = vmatprep.subr.bf16.mxu0 %v2531
    %2595 = vmatpush1.bf16.msra.mxu0 %v2530
    %2596 = vmatprep.subr.bf16.mxu0 %v2535
    %2597 = vmatpush1.bf16.msra.mxu0 %v2534
    %2598 = vmatprep.subr.bf16.mxu0 %v2539
    %2599 = vmatpush1.bf16.msra.mxu0 %v2538
    %2600 = vmatprep.subr.bf16.mxu0 %v2543
    %2601 = vmatpush1.bf16.msra.mxu0 %v2542
    %2602 = vmatprep.subr.bf16.mxu0 %v2547
    %2603 = vmatpush1.bf16.msra.mxu0 %v2546
    %2604 = vmatprep.subr.bf16.mxu0 %v2551
    %2605 = vmatpush1.bf16.msra.mxu0 %v2550
    %2606 = vmatprep.subr.bf16.mxu0 %v2555
    %2607 = vmatpush1.bf16.msra.mxu0 %v2554
    %2608 = vmatprep.subr.bf16.mxu0 %v2559
    %2609 = vmatpush1.bf16.msra.mxu0 %v2558
    %2610 = vmatprep.subr.bf16.mxu0 0
    %2611 = vmatpush1.bf16.msra.mxu0 0
    %2612 = vmatprep.subr.bf16.mxu0 0
    %2613 = vmatpush1.bf16.msra.mxu0 0
    %2614 = vmatprep.subr.bf16.mxu0 0
    %2615 = vmatpush1.bf16.msra.mxu0 0
    %2616 = vmatprep.subr.bf16.mxu0 0
    %2617 = vmatpush1.bf16.msra.mxu0 0
    %2618 = vmatprep.subr.bf16.mxu0 0
    %2619 = vmatpush1.bf16.msra.mxu0 0
    %2620 = vmatprep.subr.bf16.mxu0 0
    %2621 = vmatpush1.bf16.msra.mxu0 0
    %2622 = vmatprep.subr.bf16.mxu0 0
    %2623 = vmatpush1.bf16.msra.mxu0 0
    %2624 = vmatprep.subr.bf16.mxu0 0
    %2625 = vmatpush1.bf16.msra.mxu0 0
    %2626 = vmatprep.mubr.bf16.mxu0 0
    %2627 = vmatmul.mubr.bf16.gmra.mrb[0].mxu0 %v2432
    %v2628 = vpop.f32.mrb[0].mxu0
    %v2629 = vadd.f32 0.0, %v2628
    %v2630 = vpop.f32.mrb[0].mxu0
    %v2631 = vadd.f32 0.0, %v2630
    %v2632 = vpop.f32.mrb[0].mxu0
    %v2633 = vpop.f32.mrb[0].mxu0
    %2634 = vdwg.mxu0
    %2635 = vmatprep.subr.bf16.mxu0 %v2533
    %2636 = vmatpush1.bf16.msra.mxu0 %v2532
    %2637 = vmatprep.subr.bf16.mxu0 %v2537
    %2638 = vmatpush1.bf16.msra.mxu0 %v2536
    %2639 = vmatprep.subr.bf16.mxu0 %v2541
    %2640 = vmatpush1.bf16.msra.mxu0 %v2540
    %2641 = vmatprep.subr.bf16.mxu0 %v2545
    %2642 = vmatpush1.bf16.msra.mxu0 %v2544
    %2643 = vmatprep.subr.bf16.mxu0 %v2549
    %2644 = vmatpush1.bf16.msra.mxu0 %v2548
    %2645 = vmatprep.subr.bf16.mxu0 %v2553
    %2646 = vmatpush1.bf16.msra.mxu0 %v2552
    %2647 = vmatprep.subr.bf16.mxu0 %v2557
    %2648 = vmatpush1.bf16.msra.mxu0 %v2556
    %2649 = vmatprep.subr.bf16.mxu0 %v2561
    %2650 = vmatpush1.bf16.msra.mxu0 %v2560
    %2651 = vmatprep.subr.bf16.mxu0 0
    %2652 = vmatpush1.bf16.msra.mxu0 0
    %2653 = vmatprep.subr.bf16.mxu0 0
    %2654 = vmatpush1.bf16.msra.mxu0 0
    %2655 = vmatprep.subr.bf16.mxu0 0
    %2656 = vmatpush1.bf16.msra.mxu0 0
    %2657 = vmatprep.subr.bf16.mxu0 0
    %2658 = vmatpush1.bf16.msra.mxu0 0
    %2659 = vmatprep.subr.bf16.mxu0 0
    %2660 = vmatpush1.bf16.msra.mxu0 0
    %2661 = vmatprep.subr.bf16.mxu0 0
    %2662 = vmatpush1.bf16.msra.mxu0 0
    %2663 = vmatprep.subr.bf16.mxu0 0
    %2664 = vmatpush1.bf16.msra.mxu0 0
    %2665 = vmatprep.subr.bf16.mxu0 0
    %2666 = vmatpush1.bf16.msra.mxu0 0
    %2667 = vmatprep.mubr.bf16.mxu0 0
    %2668 = vmatmul.mubr.bf16.gmra.mrb[0].mxu0 %v2432
    %v2669 = vpop.f32.mrb[0].mxu0
    %v2670 = vadd.f32 0.0, %v2669
    %v2671 = vpop.f32.mrb[0].mxu0
    %v2672 = vadd.f32 0.0, %v2671
    %v2673 = vpop.f32.mrb[0].mxu0
    %v2674 = vpop.f32.mrb[0].mxu0
    %2675 = vdwg.mxu0
    %v2676 = vadd.f32 %v2396, %v2629
    %v2677 = vadd.f32 %v2397, %v2631
    %v2678 = vadd.f32 %v2398, %v2670
    %v2679 = vadd.f32 %v2399, %v2672
    %v2680 = vld [vmem:[#allocation10 + $0x700] sm:$0xff]
    %v2681 = vld [vmem:[#allocation10 + $0x708] sm:$0xff]
    %v2682 = vld [vmem:[#allocation10 + $0x710] sm:$0xff]
    %v2683 = vld [vmem:[#allocation10 + $0x718] sm:$0xff]
    %v2684 = vld [vmem:[#allocation10 + $0x720] sm:$0xff]
    %v2685 = vld [vmem:[#allocation10 + $0x728] sm:$0xff]
    %v2686 = vld [vmem:[#allocation10 + $0x730] sm:$0xff]
    %v2687 = vld [vmem:[#allocation10 + $0x738] sm:$0xff]
    %v2688 = vld [vmem:[#allocation10 + $0x740] sm:$0xff]
    %v2689 = vld [vmem:[#allocation10 + $0x748] sm:$0xff]
    %v2690 = vld [vmem:[#allocation10 + $0x750] sm:$0xff]
    %v2691 = vld [vmem:[#allocation10 + $0x758] sm:$0xff]
    %v2692 = vld [vmem:[#allocation10 + $0x760] sm:$0xff]
    %v2693 = vld [vmem:[#allocation10 + $0x768] sm:$0xff]
    %v2694 = vld [vmem:[#allocation10 + $0x770] sm:$0xff]
    %v2695 = vld [vmem:[#allocation10 + $0x778] sm:$0xff]
    %v2696 = vld [vmem:[#allocation10 + $0x780] sm:$0xff]
    %v2697 = vld [vmem:[#allocation10 + $0x788] sm:$0xff]
    %v2698 = vld [vmem:[#allocation10 + $0x790] sm:$0xff]
    %v2699 = vld [vmem:[#allocation10 + $0x798] sm:$0xff]
    %v2700 = vld [vmem:[#allocation10 + $0x7a0] sm:$0xff]
    %v2701 = vld [vmem:[#allocation10 + $0x7a8] sm:$0xff]
    %v2702 = vld [vmem:[#allocation10 + $0x7b0] sm:$0xff]
    %v2703 = vld [vmem:[#allocation10 + $0x7b8] sm:$0xff]
    %v2704 = vld [vmem:[#allocation10 + $0x7c0] sm:$0xff]
    %v2705 = vld [vmem:[#allocation10 + $0x7c8] sm:$0xff]
    %v2706 = vld [vmem:[#allocation10 + $0x7d0] sm:$0xff]
    %v2707 = vld [vmem:[#allocation10 + $0x7d8] sm:$0xff]
    %v2708 = vld [vmem:[#allocation10 + $0x7e0] sm:$0xff]
    %v2709 = vld [vmem:[#allocation10 + $0x7e8] sm:$0xff]
    %v2710 = vld [vmem:[#allocation10 + $0x7f0] sm:$0xff]
    %v2711 = vld [vmem:[#allocation10 + $0x7f8] sm:$0xff]
    %v2712 = vrot.slane %v1840, 3
    %v2746 = vunpack.c.l.b16 %v2680
    %v2747 = vunpack.c.h.b16 %v2680
    %v2748 = vunpack.c.l.b16 %v2681
    %v2749 = vunpack.c.h.b16 %v2681
    %v2750 = vunpack.c.l.b16 %v2682
    %v2751 = vunpack.c.h.b16 %v2682
    %v2752 = vunpack.c.l.b16 %v2683
    %v2753 = vunpack.c.h.b16 %v2683
    %v2754 = vunpack.c.l.b16 %v2684
    %v2755 = vunpack.c.h.b16 %v2684
    %v2756 = vunpack.c.l.b16 %v2685
    %v2757 = vunpack.c.h.b16 %v2685
    %v2758 = vunpack.c.l.b16 %v2686
    %v2759 = vunpack.c.h.b16 %v2686
    %v2760 = vunpack.c.l.b16 %v2687
    %v2761 = vunpack.c.h.b16 %v2687
    %v2762 = vunpack.c.l.b16 %v2688
    %v2763 = vunpack.c.h.b16 %v2688
    %v2764 = vunpack.c.l.b16 %v2689
    %v2765 = vunpack.c.h.b16 %v2689
    %v2766 = vunpack.c.l.b16 %v2690
    %v2767 = vunpack.c.h.b16 %v2690
    %v2768 = vunpack.c.l.b16 %v2691
    %v2769 = vunpack.c.h.b16 %v2691
    %v2770 = vunpack.c.l.b16 %v2692
    %v2771 = vunpack.c.h.b16 %v2692
    %v2772 = vunpack.c.l.b16 %v2693
    %v2773 = vunpack.c.h.b16 %v2693
    %v2774 = vunpack.c.l.b16 %v2694
    %v2775 = vunpack.c.h.b16 %v2694
    %v2776 = vunpack.c.l.b16 %v2695
    %v2777 = vunpack.c.h.b16 %v2695
    %v2778 = vunpack.c.l.b16 %v2696
    %v2779 = vunpack.c.h.b16 %v2696
    %v2780 = vunpack.c.l.b16 %v2697
    %v2781 = vunpack.c.h.b16 %v2697
    %v2782 = vunpack.c.l.b16 %v2698
    %v2783 = vunpack.c.h.b16 %v2698
    %v2784 = vunpack.c.l.b16 %v2699
    %v2785 = vunpack.c.h.b16 %v2699
    %v2786 = vunpack.c.l.b16 %v2700
    %v2787 = vunpack.c.h.b16 %v2700
    %v2788 = vunpack.c.l.b16 %v2701
    %v2789 = vunpack.c.h.b16 %v2701
    %v2790 = vunpack.c.l.b16 %v2702
    %v2791 = vunpack.c.h.b16 %v2702
    %v2792 = vunpack.c.l.b16 %v2703
    %v2793 = vunpack.c.h.b16 %v2703
    %v2794 = vunpack.c.l.b16 %v2704
    %v2795 = vunpack.c.h.b16 %v2704
    %v2796 = vunpack.c.l.b16 %v2705
    %v2797 = vunpack.c.h.b16 %v2705
    %v2798 = vunpack.c.l.b16 %v2706
    %v2799 = vunpack.c.h.b16 %v2706
    %v2800 = vunpack.c.l.b16 %v2707
    %v2801 = vunpack.c.h.b16 %v2707
    %v2802 = vunpack.c.l.b16 %v2708
    %v2803 = vunpack.c.h.b16 %v2708
    %v2804 = vunpack.c.l.b16 %v2709
    %v2805 = vunpack.c.h.b16 %v2709
    %v2806 = vunpack.c.l.b16 %v2710
    %v2807 = vunpack.c.h.b16 %v2710
    %v2808 = vunpack.c.l.b16 %v2711
    %v2809 = vunpack.c.h.b16 %v2711
    %v2810 = vpack.c.b16 %v2750, %v2746
    %v2811 = vpack.c.b16 %v2751, %v2747
    %v2812 = vpack.c.b16 %v2752, %v2748
    %v2813 = vpack.c.b16 %v2753, %v2749
    %v2814 = vpack.c.b16 %v2758, %v2754
    %v2815 = vpack.c.b16 %v2759, %v2755
    %v2816 = vpack.c.b16 %v2760, %v2756
    %v2817 = vpack.c.b16 %v2761, %v2757
    %v2818 = vpack.c.b16 %v2766, %v2762
    %v2819 = vpack.c.b16 %v2767, %v2763
    %v2820 = vpack.c.b16 %v2768, %v2764
    %v2821 = vpack.c.b16 %v2769, %v2765
    %v2822 = vpack.c.b16 %v2774, %v2770
    %v2823 = vpack.c.b16 %v2775, %v2771
    %v2824 = vpack.c.b16 %v2776, %v2772
    %v2825 = vpack.c.b16 %v2777, %v2773
    %v2826 = vpack.c.b16 %v2782, %v2778
    %v2827 = vpack.c.b16 %v2783, %v2779
    %v2828 = vpack.c.b16 %v2784, %v2780
    %v2829 = vpack.c.b16 %v2785, %v2781
    %v2830 = vpack.c.b16 %v2790, %v2786
    %v2831 = vpack.c.b16 %v2791, %v2787
    %v2832 = vpack.c.b16 %v2792, %v2788
    %v2833 = vpack.c.b16 %v2793, %v2789
    %v2834 = vpack.c.b16 %v2798, %v2794
    %v2835 = vpack.c.b16 %v2799, %v2795
    %v2836 = vpack.c.b16 %v2800, %v2796
    %v2837 = vpack.c.b16 %v2801, %v2797
    %v2838 = vpack.c.b16 %v2806, %v2802
    %v2839 = vpack.c.b16 %v2807, %v2803
    %v2840 = vpack.c.b16 %v2808, %v2804
    %v2841 = vpack.c.b16 %v2809, %v2805
    %2874 = vmatprep.subr.bf16.mxu0 %v2811
    %2875 = vmatpush1.bf16.msra.mxu0 %v2810
    %2876 = vmatprep.subr.bf16.mxu0 %v2815
    %2877 = vmatpush1.bf16.msra.mxu0 %v2814
    %2878 = vmatprep.subr.bf16.mxu0 %v2819
    %2879 = vmatpush1.bf16.msra.mxu0 %v2818
    %2880 = vmatprep.subr.bf16.mxu0 %v2823
    %2881 = vmatpush1.bf16.msra.mxu0 %v2822
    %2882 = vmatprep.subr.bf16.mxu0 %v2827
    %2883 = vmatpush1.bf16.msra.mxu0 %v2826
    %2884 = vmatprep.subr.bf16.mxu0 %v2831
    %2885 = vmatpush1.bf16.msra.mxu0 %v2830
    %2886 = vmatprep.subr.bf16.mxu0 %v2835
    %2887 = vmatpush1.bf16.msra.mxu0 %v2834
    %2888 = vmatprep.subr.bf16.mxu0 %v2839
    %2889 = vmatpush1.bf16.msra.mxu0 %v2838
    %2890 = vmatprep.subr.bf16.mxu0 0
    %2891 = vmatpush1.bf16.msra.mxu0 0
    %2892 = vmatprep.subr.bf16.mxu0 0
    %2893 = vmatpush1.bf16.msra.mxu0 0
    %2894 = vmatprep.subr.bf16.mxu0 0
    %2895 = vmatpush1.bf16.msra.mxu0 0
    %2896 = vmatprep.subr.bf16.mxu0 0
    %2897 = vmatpush1.bf16.msra.mxu0 0
    %2898 = vmatprep.subr.bf16.mxu0 0
    %2899 = vmatpush1.bf16.msra.mxu0 0
    %2900 = vmatprep.subr.bf16.mxu0 0
    %2901 = vmatpush1.bf16.msra.mxu0 0
    %2902 = vmatprep.subr.bf16.mxu0 0
    %2903 = vmatpush1.bf16.msra.mxu0 0
    %2904 = vmatprep.subr.bf16.mxu0 0
    %2905 = vmatpush1.bf16.msra.mxu0 0
    %2906 = vmatprep.mubr.bf16.mxu0 0
    %2907 = vmatmul.mubr.bf16.gmra.mrb[0].mxu0 %v2712
    %v2908 = vpop.f32.mrb[0].mxu0
    %v2909 = vadd.f32 0.0, %v2908
    %v2910 = vpop.f32.mrb[0].mxu0
    %v2911 = vadd.f32 0.0, %v2910
    %v2912 = vpop.f32.mrb[0].mxu0
    %v2913 = vpop.f32.mrb[0].mxu0
    %2914 = vdwg.mxu0
    %2915 = vmatprep.subr.bf16.mxu0 %v2813
    %2916 = vmatpush1.bf16.msra.mxu0 %v2812
    %2917 = vmatprep.subr.bf16.mxu0 %v2817
    %2918 = vmatpush1.bf16.msra.mxu0 %v2816
    %2919 = vmatprep.subr.bf16.mxu0 %v2821
    %2920 = vmatpush1.bf16.msra.mxu0 %v2820
    %2921 = vmatprep.subr.bf16.mxu0 %v2825
    %2922 = vmatpush1.bf16.msra.mxu0 %v2824
    %2923 = vmatprep.subr.bf16.mxu0 %v2829
    %2924 = vmatpush1.bf16.msra.mxu0 %v2828
    %2925 = vmatprep.subr.bf16.mxu0 %v2833
    %2926 = vmatpush1.bf16.msra.mxu0 %v2832
    %2927 = vmatprep.subr.bf16.mxu0 %v2837
    %2928 = vmatpush1.bf16.msra.mxu0 %v2836
    %2929 = vmatprep.subr.bf16.mxu0 %v2841
    %2930 = vmatpush1.bf16.msra.mxu0 %v2840
    %2931 = vmatprep.subr.bf16.mxu0 0
    %2932 = vmatpush1.bf16.msra.mxu0 0
    %2933 = vmatprep.subr.bf16.mxu0 0
    %2934 = vmatpush1.bf16.msra.mxu0 0
    %2935 = vmatprep.subr.bf16.mxu0 0
    %2936 = vmatpush1.bf16.msra.mxu0 0
    %2937 = vmatprep.subr.bf16.mxu0 0
    %2938 = vmatpush1.bf16.msra.mxu0 0
    %2939 = vmatprep.subr.bf16.mxu0 0
    %2940 = vmatpush1.bf16.msra.mxu0 0
    %2941 = vmatprep.subr.bf16.mxu0 0
    %2942 = vmatpush1.bf16.msra.mxu0 0
    %2943 = vmatprep.subr.bf16.mxu0 0
    %2944 = vmatpush1.bf16.msra.mxu0 0
    %2945 = vmatprep.subr.bf16.mxu0 0
    %2946 = vmatpush1.bf16.msra.mxu0 0
    %2947 = vmatprep.mubr.bf16.mxu0 0
    %2948 = vmatmul.mubr.bf16.gmra.mrb[0].mxu0 %v2712
    %v2949 = vpop.f32.mrb[0].mxu0
    %v2950 = vadd.f32 0.0, %v2949
    %v2951 = vpop.f32.mrb[0].mxu0
    %v2952 = vadd.f32 0.0, %v2951
    %v2953 = vpop.f32.mrb[0].mxu0
    %v2954 = vpop.f32.mrb[0].mxu0
    %2955 = vdwg.mxu0
    %v2956 = vadd.f32 %v2676, %v2909
    %v2957 = vadd.f32 %v2677, %v2911
    %v2958 = vadd.f32 %v2678, %v2950
    %v2959 = vadd.f32 %v2679, %v2952
    %v2960 = vld [vmem:[%s6] sm:$0xf]
    %v2962 = vlaneseq
    %v2963 = vshrl.u32 %v2962, 7
    %v2964 = vsub.s32 0, %v2963
    %v2965 = vrot.slane %v2960, %v2964
    %v2966 = vlaneseq
    %v2967 = vshrl.u32 %v2966, 7
    %v2968 = vsub.s32 1, %v2967
    %v2969 = vrot.slane %v2960, %v2968
    %v2970 = vlaneseq
    %v2971 = vshrl.u32 %v2970, 7
    %v2972 = vsub.s32 2, %v2971
    %v2973 = vrot.slane %v2960, %v2972
    %v2974 = vlaneseq
    %v2975 = vshrl.u32 %v2974, 7
    %v2976 = vsub.s32 3, %v2975
    %v2977 = vrot.slane %v2960, %v2976
    %v2982 = vadd.f32 %v2956, %v2965
    %v2983 = vadd.f32 %v2957, %v2969
    %v2984 = vadd.f32 %v2958, %v2973
    %v2985 = vadd.f32 %v2959, %v2977
    %v2987 = vrot.slane %v2983, 6
    %v2990 = vrot.slane %v2984, 4
    %v2993 = vrot.slane %v2985, 2
    %v2995 = vsel %vm119, %v2982, %v2987
    %v2996 = vsel %vm121, %v2995, %v2990
    %v2997 = vsel %vm123, %v2996, %v2993
    %2998 = vrot.lane.b32.xlu0 %v2997, 16
    %v2999 = vpop.permute.xlu0 %2998
    %v3000 = vmax.f32 %v2997, %v2999
    %3001 = vrot.lane.b32.xlu0 %v3000, 32
    %v3002 = vpop.permute.xlu0 %3001
    %v3003 = vmax.f32 %v3000, %v3002
    %3004 = vrot.lane.b32.xlu0 %v3003, 64
    %v3005 = vpop.permute.xlu0 %3004
    %v3006 = vmax.f32 %v3003, %v3005
    %3008 = vrot.lane.b32.xlu0 %v3006, 3
    %v3009 = vpop.permute.xlu0 %3008
    %v3011 = vsel %vm138, 0.0, %v3009
    %v3012 = vsel %vm140, %v3011, 0.0
    %v3014 = vrot.slane %v3012, 6
    %v3016 = vsel %vm119, 0.0, %v3014
    %v3017 = vsel %vm119, %v3014, 0.0
    %v3018 = vmul.f32 %v148, %v3016
    %v3019 = vmul.f32 %v151, %v3016
    %v3020 = vmul.f32 %v154, %v3016
    %3022 = vrot.lane.b32.xlu0 %v3020, 127
    %v3023 = vpop.permute.xlu0 %3022
    %v3025 = vadd.f32 %v3018, %v3023
    %v3026 = vmul.f32 %v162, %v3016
    %3028 = vrot.lane.b32.xlu0 %v3026, 127
    %v3029 = vpop.permute.xlu0 %3028
    %v3031 = vadd.f32 %v3019, %v3029
    %v3032 = vmul.f32 %v170, %v3016
    %3034 = vrot.lane.b32.xlu0 %v3032, 126
    %v3035 = vpop.permute.xlu0 %3034
    %v3037 = vadd.f32 %v3025, %v3035
    %v3038 = vmul.f32 %v178, %v3016
    %3040 = vrot.lane.b32.xlu0 %v3038, 126
    %v3041 = vpop.permute.xlu0 %3040
    %v3043 = vadd.f32 %v3031, %v3041
    %v3044 = vmul.f32 %v186, %v3016
    %3046 = vrot.lane.b32.xlu0 %v3044, 125
    %v3047 = vpop.permute.xlu0 %3046
    %v3049 = vadd.f32 %v3037, %v3047
    %v3050 = vmul.f32 %v194, %v3016
    %3052 = vrot.lane.b32.xlu0 %v3050, 125
    %v3053 = vpop.permute.xlu0 %3052
    %v3055 = vadd.f32 %v3043, %v3053
    %v3056 = vmul.f32 %v202, %v3016
    %3058 = vrot.lane.b32.xlu0 %v3056, 124
    %v3059 = vpop.permute.xlu0 %3058
    %v3061 = vadd.f32 %v3049, %v3059
    %v3062 = vmul.f32 %v210, %v3016
    %3064 = vrot.lane.b32.xlu0 %v3062, 124
    %v3065 = vpop.permute.xlu0 %3064
    %v3067 = vadd.f32 %v3055, %v3065
    %v3068 = vmul.f32 %v218, %v3016
    %3070 = vrot.lane.b32.xlu0 %v3068, 123
    %v3071 = vpop.permute.xlu0 %3070
    %v3073 = vadd.f32 %v3061, %v3071
    %v3074 = vmul.f32 %v226, %v3016
    %3076 = vrot.lane.b32.xlu0 %v3074, 123
    %v3077 = vpop.permute.xlu0 %3076
    %v3079 = vadd.f32 %v3067, %v3077
    %v3080 = vmul.f32 %v234, %v3016
    %3082 = vrot.lane.b32.xlu0 %v3080, 122
    %v3083 = vpop.permute.xlu0 %3082
    %v3085 = vadd.f32 %v3073, %v3083
    %v3086 = vmul.f32 %v242, %v3016
    %3088 = vrot.lane.b32.xlu0 %v3086, 122
    %v3089 = vpop.permute.xlu0 %3088
    %v3091 = vadd.f32 %v3079, %v3089
    %v3092 = vmul.f32 %v250, %v3016
    %v3093 = vmul.f32 %v250, %v3017
    %v3096 = vrot.slane %v3092, 2
    %v3097 = vrot.slane %v3093, 2
    %v3098 = vsel %vm123, %v3096, %v3097
    %v3100 = vadd.f32 %v3085, %v3098
    %v3101 = vmul.f32 %v261, %v3016
    %v3102 = vmul.f32 %v261, %v3017
    %v3105 = vrot.slane %v3101, 2
    %v3106 = vrot.slane %v3102, 2
    %v3107 = vsel %vm123, %v3105, %v3106
    %v3109 = vadd.f32 %v3091, %v3107
    %v3110 = vmul.f32 %v272, %v3016
    %v3111 = vmul.f32 %v272, %v3017
    %v3114 = vrot.slane %v3110, 2
    %v3115 = vrot.slane %v3111, 2
    %v3116 = vsel %vm123, %v3114, %v3115
    %3117 = vrot.lane.b32.xlu0 %v3116, 127
    %v3118 = vpop.permute.xlu0 %3117
    %v3120 = vadd.f32 %v3100, %v3118
    %v3121 = vmul.f32 %v285, %v3016
    %v3122 = vmul.f32 %v285, %v3017
    %v3125 = vrot.slane %v3121, 2
    %v3126 = vrot.slane %v3122, 2
    %v3127 = vsel %vm123, %v3125, %v3126
    %3128 = vrot.lane.b32.xlu0 %v3127, 127
    %v3129 = vpop.permute.xlu0 %3128
    %v3131 = vadd.f32 %v3109, %v3129
    %v3132 = vmul.f32 %v298, %v3016
    %v3133 = vmul.f32 %v298, %v3017
    %v3136 = vrot.slane %v3132, 2
    %v3137 = vrot.slane %v3133, 2
    %v3138 = vsel %vm123, %v3136, %v3137
    %3139 = vrot.lane.b32.xlu0 %v3138, 126
    %v3140 = vpop.permute.xlu0 %3139
    %v3142 = vadd.f32 %v3120, %v3140
    %v3143 = vmul.f32 %v311, %v3016
    %v3144 = vmul.f32 %v311, %v3017
    %v3147 = vrot.slane %v3143, 2
    %v3148 = vrot.slane %v3144, 2
    %v3149 = vsel %vm123, %v3147, %v3148
    %3150 = vrot.lane.b32.xlu0 %v3149, 126
    %v3151 = vpop.permute.xlu0 %3150
    %v3153 = vadd.f32 %v3131, %v3151
    %v3154 = vmul.f32 %v324, %v3016
    %v3155 = vmul.f32 %v324, %v3017
    %v3158 = vrot.slane %v3154, 2
    %v3159 = vrot.slane %v3155, 2
    %v3160 = vsel %vm123, %v3158, %v3159
    %3161 = vrot.lane.b32.xlu0 %v3160, 125
    %v3162 = vpop.permute.xlu0 %3161
    %v3164 = vadd.f32 %v3142, %v3162
    %v3165 = vmul.f32 %v337, %v3016
    %v3166 = vmul.f32 %v337, %v3017
    %v3169 = vrot.slane %v3165, 2
    %v3170 = vrot.slane %v3166, 2
    %v3171 = vsel %vm123, %v3169, %v3170
    %3172 = vrot.lane.b32.xlu0 %v3171, 125
    %v3173 = vpop.permute.xlu0 %3172
    %v3175 = vadd.f32 %v3153, %v3173
    %v3176 = vmul.f32 %v350, %v3016
    %v3177 = vmul.f32 %v350, %v3017
    %v3180 = vrot.slane %v3176, 2
    %v3181 = vrot.slane %v3177, 2
    %v3182 = vsel %vm123, %v3180, %v3181
    %3183 = vrot.lane.b32.xlu0 %v3182, 124
    %v3184 = vpop.permute.xlu0 %3183
    %v3186 = vadd.f32 %v3164, %v3184
    %v3187 = vmul.f32 %v363, %v3016
    %v3188 = vmul.f32 %v363, %v3017
    %v3191 = vrot.slane %v3187, 2
    %v3192 = vrot.slane %v3188, 2
    %v3193 = vsel %vm123, %v3191, %v3192
    %3194 = vrot.lane.b32.xlu0 %v3193, 124
    %v3195 = vpop.permute.xlu0 %3194
    %v3197 = vadd.f32 %v3175, %v3195
    %v3198 = vmul.f32 %v376, %v3016
    %v3199 = vmul.f32 %v376, %v3017
    %v3202 = vrot.slane %v3198, 2
    %v3203 = vrot.slane %v3199, 2
    %v3204 = vsel %vm123, %v3202, %v3203
    %3205 = vrot.lane.b32.xlu0 %v3204, 123
    %v3206 = vpop.permute.xlu0 %3205
    %v3208 = vadd.f32 %v3186, %v3206
    %v3209 = vmul.f32 %v389, %v3016
    %v3210 = vmul.f32 %v389, %v3017
    %v3213 = vrot.slane %v3209, 2
    %v3214 = vrot.slane %v3210, 2
    %v3215 = vsel %vm123, %v3213, %v3214
    %3216 = vrot.lane.b32.xlu0 %v3215, 123
    %v3217 = vpop.permute.xlu0 %3216
    %v3219 = vadd.f32 %v3197, %v3217
    %v3220 = vmul.f32 %v402, %v3016
    %v3221 = vmul.f32 %v402, %v3017
    %v3224 = vrot.slane %v3220, 2
    %v3225 = vrot.slane %v3221, 2
    %v3226 = vsel %vm123, %v3224, %v3225
    %3227 = vrot.lane.b32.xlu0 %v3226, 122
    %v3228 = vpop.permute.xlu0 %3227
    %v3230 = vadd.f32 %v3208, %v3228
    %v3231 = vmul.f32 %v415, %v3016
    %v3232 = vmul.f32 %v415, %v3017
    %v3235 = vrot.slane %v3231, 2
    %v3236 = vrot.slane %v3232, 2
    %v3237 = vsel %vm123, %v3235, %v3236
    %3238 = vrot.lane.b32.xlu0 %v3237, 122
    %v3239 = vpop.permute.xlu0 %3238
    %v3241 = vadd.f32 %v3219, %v3239
    %v3242 = vmul.f32 %v428, %v3016
    %v3243 = vmul.f32 %v428, %v3017
    %v3246 = vrot.slane %v3242, 4
    %v3247 = vrot.slane %v3243, 4
    %v3248 = vsel %vm121, %v3246, %v3247
    %v3250 = vadd.f32 %v3230, %v3248
    %v3251 = vmul.f32 %v439, %v3016
    %v3252 = vmul.f32 %v439, %v3017
    %v3255 = vrot.slane %v3251, 4
    %v3256 = vrot.slane %v3252, 4
    %v3257 = vsel %vm121, %v3255, %v3256
    %v3259 = vadd.f32 %v3241, %v3257
    %v3260 = vmul.f32 %v450, %v3016
    %v3261 = vmul.f32 %v450, %v3017
    %v3264 = vrot.slane %v3260, 4
    %v3265 = vrot.slane %v3261, 4
    %v3266 = vsel %vm121, %v3264, %v3265
    %3267 = vrot.lane.b32.xlu0 %v3266, 127
    %v3268 = vpop.permute.xlu0 %3267
    %v3270 = vadd.f32 %v3250, %v3268
    %v3271 = vmul.f32 %v463, %v3016
    %v3272 = vmul.f32 %v463, %v3017
    %v3275 = vrot.slane %v3271, 4
    %v3276 = vrot.slane %v3272, 4
    %v3277 = vsel %vm121, %v3275, %v3276
    %3278 = vrot.lane.b32.xlu0 %v3277, 127
    %v3279 = vpop.permute.xlu0 %3278
    %v3281 = vadd.f32 %v3259, %v3279
    %v3282 = vmul.f32 %v476, %v3016
    %v3283 = vmul.f32 %v476, %v3017
    %v3286 = vrot.slane %v3282, 4
    %v3287 = vrot.slane %v3283, 4
    %v3288 = vsel %vm121, %v3286, %v3287
    %3289 = vrot.lane.b32.xlu0 %v3288, 126
    %v3290 = vpop.permute.xlu0 %3289
    %v3292 = vadd.f32 %v3270, %v3290
    %v3293 = vmul.f32 %v489, %v3016
    %v3294 = vmul.f32 %v489, %v3017
    %v3297 = vrot.slane %v3293, 4
    %v3298 = vrot.slane %v3294, 4
    %v3299 = vsel %vm121, %v3297, %v3298
    %3300 = vrot.lane.b32.xlu0 %v3299, 126
    %v3301 = vpop.permute.xlu0 %3300
    %v3303 = vadd.f32 %v3281, %v3301
    %v3304 = vmul.f32 %v502, %v3016
    %v3305 = vmul.f32 %v502, %v3017
    %v3308 = vrot.slane %v3304, 4
    %v3309 = vrot.slane %v3305, 4
    %v3310 = vsel %vm121, %v3308, %v3309
    %3311 = vrot.lane.b32.xlu0 %v3310, 125
    %v3312 = vpop.permute.xlu0 %3311
    %v3314 = vadd.f32 %v3292, %v3312
    %v3315 = vmul.f32 %v515, %v3016
    %v3316 = vmul.f32 %v515, %v3017
    %v3319 = vrot.slane %v3315, 4
    %v3320 = vrot.slane %v3316, 4
    %v3321 = vsel %vm121, %v3319, %v3320
    %3322 = vrot.lane.b32.xlu0 %v3321, 125
    %v3323 = vpop.permute.xlu0 %3322
    %v3325 = vadd.f32 %v3303, %v3323
    %v3326 = vmul.f32 %v528, %v3016
    %v3327 = vmul.f32 %v528, %v3017
    %v3330 = vrot.slane %v3326, 4
    %v3331 = vrot.slane %v3327, 4
    %v3332 = vsel %vm121, %v3330, %v3331
    %3333 = vrot.lane.b32.xlu0 %v3332, 124
    %v3334 = vpop.permute.xlu0 %3333
    %v3336 = vadd.f32 %v3314, %v3334
    %v3337 = vmul.f32 %v541, %v3016
    %v3338 = vmul.f32 %v541, %v3017
    %v3341 = vrot.slane %v3337, 4
    %v3342 = vrot.slane %v3338, 4
    %v3343 = vsel %vm121, %v3341, %v3342
    %3344 = vrot.lane.b32.xlu0 %v3343, 124
    %v3345 = vpop.permute.xlu0 %3344
    %v3347 = vadd.f32 %v3325, %v3345
    %v3348 = vmul.f32 %v554, %v3016
    %v3349 = vmul.f32 %v554, %v3017
    %v3352 = vrot.slane %v3348, 4
    %v3353 = vrot.slane %v3349, 4
    %v3354 = vsel %vm121, %v3352, %v3353
    %3355 = vrot.lane.b32.xlu0 %v3354, 123
    %v3356 = vpop.permute.xlu0 %3355
    %v3358 = vadd.f32 %v3336, %v3356
    %v3359 = vmul.f32 %v567, %v3016
    %v3360 = vmul.f32 %v567, %v3017
    %v3363 = vrot.slane %v3359, 4
    %v3364 = vrot.slane %v3360, 4
    %v3365 = vsel %vm121, %v3363, %v3364
    %3366 = vrot.lane.b32.xlu0 %v3365, 123
    %v3367 = vpop.permute.xlu0 %3366
    %v3369 = vadd.f32 %v3347, %v3367
    %v3370 = vmul.f32 %v580, %v3016
    %v3371 = vmul.f32 %v580, %v3017
    %v3374 = vrot.slane %v3370, 4
    %v3375 = vrot.slane %v3371, 4
    %v3376 = vsel %vm121, %v3374, %v3375
    %3377 = vrot.lane.b32.xlu0 %v3376, 122
    %v3378 = vpop.permute.xlu0 %3377
    %v3380 = vadd.f32 %v3358, %v3378
    %v3381 = vmul.f32 %v593, %v3016
    %v3382 = vmul.f32 %v593, %v3017
    %v3385 = vrot.slane %v3381, 4
    %v3386 = vrot.slane %v3382, 4
    %v3387 = vsel %vm121, %v3385, %v3386
    %3388 = vrot.lane.b32.xlu0 %v3387, 122
    %v3389 = vpop.permute.xlu0 %3388
    %v3391 = vadd.f32 %v3369, %v3389
    %v3392 = vadd.f32 %v3380, %v606
    %v3393 = vsel %vm608, %v3392, 0.0
    %3394 = vadd.xlane.f32.xlu0 %v3393
    %v3395 = vpop.xlane.xlu0 %3394
    %v3396 = vrot.slane %v3395, 4
    %v3397 = vadd.f32 %v3395, %v3396
    %v3398 = vrot.slane %v3397, 2
    %v3399 = vadd.f32 %v3397, %v3398
    %v3400 = vrot.slane %v3399, 1
    %v3401 = vadd.f32 %v3399, %v3400
    %s3402 = vtos %v3401
    %v3403 = vrcp.pop 128.0
    %s3404 = vtos %v3403
    %s3405 = smul.f32 %s3402, %s3404
    %v3406 = vstv %s3405
    %v3407 = vsub.f32 %v3392, %v3406
    %v3408 = vmul.f32 %v3407, %v3407
    %v3409 = vsel %vm608, %v3408, 0.0
    %3410 = vadd.xlane.f32.xlu0 %v3409
    %v3411 = vpop.xlane.xlu0 %3410
    %v3412 = vrot.slane %v3411, 4
    %v3413 = vadd.f32 %v3411, %v3412
    %v3414 = vrot.slane %v3413, 2
    %v3415 = vadd.f32 %v3413, %v3414
    %v3416 = vrot.slane %v3415, 1
    %v3417 = vadd.f32 %v3415, %v3416
    %s3418 = vtos %v3417
    %v3419 = vrcp.pop 128.0
    %s3420 = vtos %v3419
    %s3421 = smul.f32 %s3418, %s3420
    %s3422 = sadd.f32 %s3421, 1e-05
    %v3423 = vstv %s3422
    %v3424 = vrsqrt.pop %v3423
    %s3425 = vtos %v3424
    %v3426 = vstv %s3425
    %v3427 = vmul.f32 %v3407, %v3426
    %v3428 = vmul.f32 %v645, %v3427
    %v3429 = vadd.f32 %v3428, %v648
    %v3430 = vxor.u32 %v3429, 2147483648
    %v3431 = vmul.f32 %v3430, 1.442695
    %v3432 = vpow.pop %v3431
    %v3433 = vadd.f32 %v3432, 1.0
    %v3434 = vrcp.pop %v3433
    %v3435 = vmul.f32 1.0, %v3434
    %v3436 = vsel %vm608, %v3435, 0.0
    %3437 = vrot.lane.b32.xlu0 %v3436, 16
    %v3438 = vpop.permute.xlu0 %3437
    %v3439 = vadd.f32 %v3436, %v3438
    %3440 = vrot.lane.b32.xlu0 %v3439, 32
    %v3441 = vpop.permute.xlu0 %3440
    %v3442 = vadd.f32 %v3439, %v3441
    %3443 = vrot.lane.b32.xlu0 %v3442, 64
    %v3444 = vpop.permute.xlu0 %3443
    %v3445 = vadd.f32 %v3442, %v3444
    %v3446 = vmul.f32 %v3445, %v2997
    %v3447 = vpack.c.bf16 %v3446, %v3446
    %v3449 = vrot.slane %v3447, 1
    %3451 = vmatprep.subr.bf16.mxu0 %v832
    %3452 = vmatpush1.bf16.msra.mxu0 %v831
    %3453 = vmatprep.subr.bf16.mxu0 %v836
    %3454 = vmatpush1.bf16.msra.mxu0 %v835
    %3455 = vmatprep.subr.bf16.mxu0 %v840
    %3456 = vmatpush1.bf16.msra.mxu0 %v839
    %3457 = vmatprep.subr.bf16.mxu0 %v844
    %3458 = vmatpush1.bf16.msra.mxu0 %v843
    %3459 = vmatprep.subr.bf16.mxu0 %v848
    %3460 = vmatpush1.bf16.msra.mxu0 %v847
    %3461 = vmatprep.subr.bf16.mxu0 %v852
    %3462 = vmatpush1.bf16.msra.mxu0 %v851
    %3463 = vmatprep.subr.bf16.mxu0 %v856
    %3464 = vmatpush1.bf16.msra.mxu0 %v855
    %3465 = vmatprep.subr.bf16.mxu0 %v860
    %3466 = vmatpush1.bf16.msra.mxu0 %v859
    %3467 = vmatprep.subr.bf16.mxu0 0
    %3468 = vmatpush1.bf16.msra.mxu0 0
    %3469 = vmatprep.subr.bf16.mxu0 0
    %3470 = vmatpush1.bf16.msra.mxu0 0
    %3471 = vmatprep.subr.bf16.mxu0 0
    %3472 = vmatpush1.bf16.msra.mxu0 0
    %3473 = vmatprep.subr.bf16.mxu0 0
    %3474 = vmatpush1.bf16.msra.mxu0 0
    %3475 = vmatprep.subr.bf16.mxu0 0
    %3476 = vmatpush1.bf16.msra.mxu0 0
    %3477 = vmatprep.subr.bf16.mxu0 0
    %3478 = vmatpush1.bf16.msra.mxu0 0
    %3479 = vmatprep.subr.bf16.mxu0 0
    %3480 = vmatpush1.bf16.msra.mxu0 0
    %3481 = vmatprep.subr.bf16.mxu0 0
    %3482 = vmatpush1.bf16.msra.mxu0 0
    %3483 = vmatprep.mubr.bf16.mxu0 0
    %3484 = vmatmul.mubr.bf16.gmra.mrb[0].mxu0 %v3449
    %v3485 = vpop.f32.mrb[0].mxu0
    %v3486 = vadd.f32 0.0, %v3485
    %v3487 = vpop.f32.mrb[0].mxu0
    %v3488 = vadd.f32 0.0, %v3487
    %v3489 = vpop.f32.mrb[0].mxu0
    %v3490 = vpop.f32.mrb[0].mxu0
    %3491 = vdwg.mxu0
    %3492 = vmatprep.subr.bf16.mxu0 %v834
    %3493 = vmatpush1.bf16.msra.mxu0 %v833
    %3494 = vmatprep.subr.bf16.mxu0 %v838
    %3495 = vmatpush1.bf16.msra.mxu0 %v837
    %3496 = vmatprep.subr.bf16.mxu0 %v842
    %3497 = vmatpush1.bf16.msra.mxu0 %v841
    %3498 = vmatprep.subr.bf16.mxu0 %v846
    %3499 = vmatpush1.bf16.msra.mxu0 %v845
    %3500 = vmatprep.subr.bf16.mxu0 %v850
    %3501 = vmatpush1.bf16.msra.mxu0 %v849
    %3502 = vmatprep.subr.bf16.mxu0 %v854
    %3503 = vmatpush1.bf16.msra.mxu0 %v853
    %3504 = vmatprep.subr.bf16.mxu0 %v858
    %3505 = vmatpush1.bf16.msra.mxu0 %v857
    %3506 = vmatprep.subr.bf16.mxu0 %v862
    %3507 = vmatpush1.bf16.msra.mxu0 %v861
    %3508 = vmatprep.subr.bf16.mxu0 0
    %3509 = vmatpush1.bf16.msra.mxu0 0
    %3510 = vmatprep.subr.bf16.mxu0 0
    %3511 = vmatpush1.bf16.msra.mxu0 0
    %3512 = vmatprep.subr.bf16.mxu0 0
    %3513 = vmatpush1.bf16.msra.mxu0 0
    %3514 = vmatprep.subr.bf16.mxu0 0
    %3515 = vmatpush1.bf16.msra.mxu0 0
    %3516 = vmatprep.subr.bf16.mxu0 0
    %3517 = vmatpush1.bf16.msra.mxu0 0
    %3518 = vmatprep.subr.bf16.mxu0 0
    %3519 = vmatpush1.bf16.msra.mxu0 0
    %3520 = vmatprep.subr.bf16.mxu0 0
    %3521 = vmatpush1.bf16.msra.mxu0 0
    %3522 = vmatprep.subr.bf16.mxu0 0
    %3523 = vmatpush1.bf16.msra.mxu0 0
    %3524 = vmatprep.mubr.bf16.mxu0 0
    %3525 = vmatmul.mubr.bf16.gmra.mrb[0].mxu0 %v3449
    %v3526 = vpop.f32.mrb[0].mxu0
    %v3527 = vadd.f32 0.0, %v3526
    %v3528 = vpop.f32.mrb[0].mxu0
    %v3529 = vadd.f32 0.0, %v3528
    %v3530 = vpop.f32.mrb[0].mxu0
    %v3531 = vpop.f32.mrb[0].mxu0
    %3532 = vdwg.mxu0
    %3533 = vmatprep.subr.bf16.mxu0 %v1074
    %3534 = vmatpush1.bf16.msra.mxu0 %v1073
    %3535 = vmatprep.subr.bf16.mxu0 %v1078
    %3536 = vmatpush1.bf16.msra.mxu0 %v1077
    %3537 = vmatprep.subr.bf16.mxu0 %v1082
    %3538 = vmatpush1.bf16.msra.mxu0 %v1081
    %3539 = vmatprep.subr.bf16.mxu0 %v1086
    %3540 = vmatpush1.bf16.msra.mxu0 %v1085
    %3541 = vmatprep.subr.bf16.mxu0 %v1090
    %3542 = vmatpush1.bf16.msra.mxu0 %v1089
    %3543 = vmatprep.subr.bf16.mxu0 %v1094
    %3544 = vmatpush1.bf16.msra.mxu0 %v1093
    %3545 = vmatprep.subr.bf16.mxu0 %v1098
    %3546 = vmatpush1.bf16.msra.mxu0 %v1097
    %3547 = vmatprep.subr.bf16.mxu0 %v1102
    %3548 = vmatpush1.bf16.msra.mxu0 %v1101
    %3549 = vmatprep.subr.bf16.mxu0 0
    %3550 = vmatpush1.bf16.msra.mxu0 0
    %3551 = vmatprep.subr.bf16.mxu0 0
    %3552 = vmatpush1.bf16.msra.mxu0 0
    %3553 = vmatprep.subr.bf16.mxu0 0
    %3554 = vmatpush1.bf16.msra.mxu0 0
    %3555 = vmatprep.subr.bf16.mxu0 0
    %3556 = vmatpush1.bf16.msra.mxu0 0
    %3557 = vmatprep.subr.bf16.mxu0 0
    %3558 = vmatpush1.bf16.msra.mxu0 0
    %3559 = vmatprep.subr.bf16.mxu0 0
    %3560 = vmatpush1.bf16.msra.mxu0 0
    %3561 = vmatprep.subr.bf16.mxu0 0
    %3562 = vmatpush1.bf16.msra.mxu0 0
    %3563 = vmatprep.subr.bf16.mxu0 0
    %3564 = vmatpush1.bf16.msra.mxu0 0
    %3565 = vmatprep.mubr.bf16.mxu0 0
    %3566 = vmatmul.mubr.bf16.gmra.mrb[0].mxu0 %v3447
    %v3567 = vpop.f32.mrb[0].mxu0
    %v3568 = vadd.f32 %v3486, %v3567
    %v3569 = vpop.f32.mrb[0].mxu0
    %v3570 = vadd.f32 %v3488, %v3569
    %v3571 = vpop.f32.mrb[0].mxu0
    %v3572 = vpop.f32.mrb[0].mxu0
    %3573 = vdwg.mxu0
    %3574 = vmatprep.subr.bf16.mxu0 %v1076
    %3575 = vmatpush1.bf16.msra.mxu0 %v1075
    %3576 = vmatprep.subr.bf16.mxu0 %v1080
    %3577 = vmatpush1.bf16.msra.mxu0 %v1079
    %3578 = vmatprep.subr.bf16.mxu0 %v1084
    %3579 = vmatpush1.bf16.msra.mxu0 %v1083
    %3580 = vmatprep.subr.bf16.mxu0 %v1088
    %3581 = vmatpush1.bf16.msra.mxu0 %v1087
    %3582 = vmatprep.subr.bf16.mxu0 %v1092
    %3583 = vmatpush1.bf16.msra.mxu0 %v1091
    %3584 = vmatprep.subr.bf16.mxu0 %v1096
    %3585 = vmatpush1.bf16.msra.mxu0 %v1095
    %3586 = vmatprep.subr.bf16.mxu0 %v1100
    %3587 = vmatpush1.bf16.msra.mxu0 %v1099
    %3588 = vmatprep.subr.bf16.mxu0 %v1104
    %3589 = vmatpush1.bf16.msra.mxu0 %v1103
    %3590 = vmatprep.subr.bf16.mxu0 0
    %3591 = vmatpush1.bf16.msra.mxu0 0
    %3592 = vmatprep.subr.bf16.mxu0 0
    %3593 = vmatpush1.bf16.msra.mxu0 0
    %3594 = vmatprep.subr.bf16.mxu0 0
    %3595 = vmatpush1.bf16.msra.mxu0 0
    %3596 = vmatprep.subr.bf16.mxu0 0
    %3597 = vmatpush1.bf16.msra.mxu0 0
    %3598 = vmatprep.subr.bf16.mxu0 0
    %3599 = vmatpush1.bf16.msra.mxu0 0
    %3600 = vmatprep.subr.bf16.mxu0 0
    %3601 = vmatpush1.bf16.msra.mxu0 0
    %3602 = vmatprep.subr.bf16.mxu0 0
    %3603 = vmatpush1.bf16.msra.mxu0 0
    %3604 = vmatprep.subr.bf16.mxu0 0
    %3605 = vmatpush1.bf16.msra.mxu0 0
    %3606 = vmatprep.mubr.bf16.mxu0 0
    %3607 = vmatmul.mubr.bf16.gmra.mrb[0].mxu0 %v3447
    %v3608 = vpop.f32.mrb[0].mxu0
    %v3609 = vadd.f32 %v3527, %v3608
    %v3610 = vpop.f32.mrb[0].mxu0
    %v3611 = vadd.f32 %v3529, %v3610
    %v3612 = vpop.f32.mrb[0].mxu0
    %v3613 = vpop.f32.mrb[0].mxu0
    %3614 = vdwg.mxu0
    %v3615 = vrot.slane %v3447, 2
    %3617 = vmatprep.subr.bf16.mxu0 %v1350
    %3618 = vmatpush1.bf16.msra.mxu0 %v1349
    %3619 = vmatprep.subr.bf16.mxu0 %v1354
    %3620 = vmatpush1.bf16.msra.mxu0 %v1353
    %3621 = vmatprep.subr.bf16.mxu0 %v1358
    %3622 = vmatpush1.bf16.msra.mxu0 %v1357
    %3623 = vmatprep.subr.bf16.mxu0 %v1362
    %3624 = vmatpush1.bf16.msra.mxu0 %v1361
    %3625 = vmatprep.subr.bf16.mxu0 %v1366
    %3626 = vmatpush1.bf16.msra.mxu0 %v1365
    %3627 = vmatprep.subr.bf16.mxu0 %v1370
    %3628 = vmatpush1.bf16.msra.mxu0 %v1369
    %3629 = vmatprep.subr.bf16.mxu0 %v1374
    %3630 = vmatpush1.bf16.msra.mxu0 %v1373
    %3631 = vmatprep.subr.bf16.mxu0 %v1378
    %3632 = vmatpush1.bf16.msra.mxu0 %v1377
    %3633 = vmatprep.subr.bf16.mxu0 0
    %3634 = vmatpush1.bf16.msra.mxu0 0
    %3635 = vmatprep.subr.bf16.mxu0 0
    %3636 = vmatpush1.bf16.msra.mxu0 0
    %3637 = vmatprep.subr.bf16.mxu0 0
    %3638 = vmatpush1.bf16.msra.mxu0 0
    %3639 = vmatprep.subr.bf16.mxu0 0
    %3640 = vmatpush1.bf16.msra.mxu0 0
    %3641 = vmatprep.subr.bf16.mxu0 0
    %3642 = vmatpush1.bf16.msra.mxu0 0
    %3643 = vmatprep.subr.bf16.mxu0 0
    %3644 = vmatpush1.bf16.msra.mxu0 0
    %3645 = vmatprep.subr.bf16.mxu0 0
    %3646 = vmatpush1.bf16.msra.mxu0 0
    %3647 = vmatprep.subr.bf16.mxu0 0
    %3648 = vmatpush1.bf16.msra.mxu0 0
    %3649 = vmatprep.mubr.bf16.mxu0 0
    %3650 = vmatmul.mubr.bf16.gmra.mrb[0].mxu0 %v3615
    %v3651 = vpop.f32.mrb[0].mxu0
    %v3652 = vadd.f32 0.0, %v3651
    %v3653 = vpop.f32.mrb[0].mxu0
    %v3654 = vadd.f32 0.0, %v3653
    %v3655 = vpop.f32.mrb[0].mxu0
    %v3656 = vpop.f32.mrb[0].mxu0
    %3657 = vdwg.mxu0
    %3658 = vmatprep.subr.bf16.mxu0 %v1352
    %3659 = vmatpush1.bf16.msra.mxu0 %v1351
    %3660 = vmatprep.subr.bf16.mxu0 %v1356
    %3661 = vmatpush1.bf16.msra.mxu0 %v1355
    %3662 = vmatprep.subr.bf16.mxu0 %v1360
    %3663 = vmatpush1.bf16.msra.mxu0 %v1359
    %3664 = vmatprep.subr.bf16.mxu0 %v1364
    %3665 = vmatpush1.bf16.msra.mxu0 %v1363
    %3666 = vmatprep.subr.bf16.mxu0 %v1368
    %3667 = vmatpush1.bf16.msra.mxu0 %v1367
    %3668 = vmatprep.subr.bf16.mxu0 %v1372
    %3669 = vmatpush1.bf16.msra.mxu0 %v1371
    %3670 = vmatprep.subr.bf16.mxu0 %v1376
    %3671 = vmatpush1.bf16.msra.mxu0 %v1375
    %3672 = vmatprep.subr.bf16.mxu0 %v1380
    %3673 = vmatpush1.bf16.msra.mxu0 %v1379
    %3674 = vmatprep.subr.bf16.mxu0 0
    %3675 = vmatpush1.bf16.msra.mxu0 0
    %3676 = vmatprep.subr.bf16.mxu0 0
    %3677 = vmatpush1.bf16.msra.mxu0 0
    %3678 = vmatprep.subr.bf16.mxu0 0
    %3679 = vmatpush1.bf16.msra.mxu0 0
    %3680 = vmatprep.subr.bf16.mxu0 0
    %3681 = vmatpush1.bf16.msra.mxu0 0
    %3682 = vmatprep.subr.bf16.mxu0 0
    %3683 = vmatpush1.bf16.msra.mxu0 0
    %3684 = vmatprep.subr.bf16.mxu0 0
    %3685 = vmatpush1.bf16.msra.mxu0 0
    %3686 = vmatprep.subr.bf16.mxu0 0
    %3687 = vmatpush1.bf16.msra.mxu0 0
    %3688 = vmatprep.subr.bf16.mxu0 0
    %3689 = vmatpush1.bf16.msra.mxu0 0
    %3690 = vmatprep.mubr.bf16.mxu0 0
    %3691 = vmatmul.mubr.bf16.gmra.mrb[0].mxu0 %v3615
    %v3692 = vpop.f32.mrb[0].mxu0
    %v3693 = vadd.f32 0.0, %v3692
    %v3694 = vpop.f32.mrb[0].mxu0
    %v3695 = vadd.f32 0.0, %v3694
    %v3696 = vpop.f32.mrb[0].mxu0
    %v3697 = vpop.f32.mrb[0].mxu0
    %3698 = vdwg.mxu0
    %v3699 = vadd.f32 %v3568, %v3652
    %v3700 = vadd.f32 %v3570, %v3654
    %v3701 = vadd.f32 %v3609, %v3693
    %v3702 = vadd.f32 %v3611, %v3695
    %v3703 = vrot.slane %v3447, 3
    %3705 = vmatprep.subr.bf16.mxu0 %v1630
    %3706 = vmatpush1.bf16.msra.mxu0 %v1629
    %3707 = vmatprep.subr.bf16.mxu0 %v1634
    %3708 = vmatpush1.bf16.msra.mxu0 %v1633
    %3709 = vmatprep.subr.bf16.mxu0 %v1638
    %3710 = vmatpush1.bf16.msra.mxu0 %v1637
    %3711 = vmatprep.subr.bf16.mxu0 %v1642
    %3712 = vmatpush1.bf16.msra.mxu0 %v1641
    %3713 = vmatprep.subr.bf16.mxu0 %v1646
    %3714 = vmatpush1.bf16.msra.mxu0 %v1645
    %3715 = vmatprep.subr.bf16.mxu0 %v1650
    %3716 = vmatpush1.bf16.msra.mxu0 %v1649
    %3717 = vmatprep.subr.bf16.mxu0 %v1654
    %3718 = vmatpush1.bf16.msra.mxu0 %v1653
    %3719 = vmatprep.subr.bf16.mxu0 %v1658
    %3720 = vmatpush1.bf16.msra.mxu0 %v1657
    %3721 = vmatprep.subr.bf16.mxu0 0
    %3722 = vmatpush1.bf16.msra.mxu0 0
    %3723 = vmatprep.subr.bf16.mxu0 0
    %3724 = vmatpush1.bf16.msra.mxu0 0
    %3725 = vmatprep.subr.bf16.mxu0 0
    %3726 = vmatpush1.bf16.msra.mxu0 0
    %3727 = vmatprep.subr.bf16.mxu0 0
    %3728 = vmatpush1.bf16.msra.mxu0 0
    %3729 = vmatprep.subr.bf16.mxu0 0
    %3730 = vmatpush1.bf16.msra.mxu0 0
    %3731 = vmatprep.subr.bf16.mxu0 0
    %3732 = vmatpush1.bf16.msra.mxu0 0
    %3733 = vmatprep.subr.bf16.mxu0 0
    %3734 = vmatpush1.bf16.msra.mxu0 0
    %3735 = vmatprep.subr.bf16.mxu0 0
    %3736 = vmatpush1.bf16.msra.mxu0 0
    %3737 = vmatprep.mubr.bf16.mxu0 0
    %3738 = vmatmul.mubr.bf16.gmra.mrb[0].mxu0 %v3703
    %v3739 = vpop.f32.mrb[0].mxu0
    %v3740 = vadd.f32 0.0, %v3739
    %v3741 = vpop.f32.mrb[0].mxu0
    %v3742 = vadd.f32 0.0, %v3741
    %v3743 = vpop.f32.mrb[0].mxu0
    %v3744 = vpop.f32.mrb[0].mxu0
    %3745 = vdwg.mxu0
    %3746 = vmatprep.subr.bf16.mxu0 %v1632
    %3747 = vmatpush1.bf16.msra.mxu0 %v1631
    %3748 = vmatprep.subr.bf16.mxu0 %v1636
    %3749 = vmatpush1.bf16.msra.mxu0 %v1635
    %3750 = vmatprep.subr.bf16.mxu0 %v1640
    %3751 = vmatpush1.bf16.msra.mxu0 %v1639
    %3752 = vmatprep.subr.bf16.mxu0 %v1644
    %3753 = vmatpush1.bf16.msra.mxu0 %v1643
    %3754 = vmatprep.subr.bf16.mxu0 %v1648
    %3755 = vmatpush1.bf16.msra.mxu0 %v1647
    %3756 = vmatprep.subr.bf16.mxu0 %v1652
    %3757 = vmatpush1.bf16.msra.mxu0 %v1651
    %3758 = vmatprep.subr.bf16.mxu0 %v1656
    %3759 = vmatpush1.bf16.msra.mxu0 %v1655
    %3760 = vmatprep.subr.bf16.mxu0 %v1660
    %3761 = vmatpush1.bf16.msra.mxu0 %v1659
    %3762 = vmatprep.subr.bf16.mxu0 0
    %3763 = vmatpush1.bf16.msra.mxu0 0
    %3764 = vmatprep.subr.bf16.mxu0 0
    %3765 = vmatpush1.bf16.msra.mxu0 0
    %3766 = vmatprep.subr.bf16.mxu0 0
    %3767 = vmatpush1.bf16.msra.mxu0 0
    %3768 = vmatprep.subr.bf16.mxu0 0
    %3769 = vmatpush1.bf16.msra.mxu0 0
    %3770 = vmatprep.subr.bf16.mxu0 0
    %3771 = vmatpush1.bf16.msra.mxu0 0
    %3772 = vmatprep.subr.bf16.mxu0 0
    %3773 = vmatpush1.bf16.msra.mxu0 0
    %3774 = vmatprep.subr.bf16.mxu0 0
    %3775 = vmatpush1.bf16.msra.mxu0 0
    %3776 = vmatprep.subr.bf16.mxu0 0
    %3777 = vmatpush1.bf16.msra.mxu0 0
    %3778 = vmatprep.mubr.bf16.mxu0 0
    %3779 = vmatmul.mubr.bf16.gmra.mrb[0].mxu0 %v3703
    %v3780 = vpop.f32.mrb[0].mxu0
    %v3781 = vadd.f32 0.0, %v3780
    %v3782 = vpop.f32.mrb[0].mxu0
    %v3783 = vadd.f32 0.0, %v3782
    %v3784 = vpop.f32.mrb[0].mxu0
    %v3785 = vpop.f32.mrb[0].mxu0
    %3786 = vdwg.mxu0
    %v3787 = vadd.f32 %v3699, %v3740
    %v3788 = vadd.f32 %v3700, %v3742
    %v3789 = vadd.f32 %v3701, %v3781
    %v3790 = vadd.f32 %v3702, %v3783
    %v3791 = vadd.f32 %v3391, %v1780
    %v3792 = vsel %vm608, %v3791, 0.0
    %3793 = vadd.xlane.f32.xlu0 %v3792
    %v3794 = vpop.xlane.xlu0 %3793
    %v3795 = vrot.slane %v3794, 4
    %v3796 = vadd.f32 %v3794, %v3795
    %v3797 = vrot.slane %v3796, 2
    %v3798 = vadd.f32 %v3796, %v3797
    %v3799 = vrot.slane %v3798, 1
    %v3800 = vadd.f32 %v3798, %v3799
    %s3801 = vtos %v3800
    %v3802 = vrcp.pop 128.0
    %s3803 = vtos %v3802
    %s3804 = smul.f32 %s3801, %s3803
    %v3805 = vstv %s3804
    %v3806 = vsub.f32 %v3791, %v3805
    %v3807 = vmul.f32 %v3806, %v3806
    %v3808 = vsel %vm608, %v3807, 0.0
    %3809 = vadd.xlane.f32.xlu0 %v3808
    %v3810 = vpop.xlane.xlu0 %3809
    %v3811 = vrot.slane %v3810, 4
    %v3812 = vadd.f32 %v3810, %v3811
    %v3813 = vrot.slane %v3812, 2
    %v3814 = vadd.f32 %v3812, %v3813
    %v3815 = vrot.slane %v3814, 1
    %v3816 = vadd.f32 %v3814, %v3815
    %s3817 = vtos %v3816
    %v3818 = vrcp.pop 128.0
    %s3819 = vtos %v3818
    %s3820 = smul.f32 %s3817, %s3819
    %s3821 = sadd.f32 %s3820, 1e-05
    %v3822 = vstv %s3821
    %v3823 = vrsqrt.pop %v3822
    %s3824 = vtos %v3823
    %v3825 = vstv %s3824
    %v3826 = vmul.f32 %v3806, %v3825
    %v3827 = vmul.f32 %v1818, %v3826
    %v3828 = vadd.f32 %v3827, %v1821
    %v3829 = vxor.u32 %v3828, 2147483648
    %v3830 = vmul.f32 %v3829, 1.442695
    %v3831 = vpow.pop %v3830
    %v3832 = vadd.f32 %v3831, 1.0
    %v3833 = vrcp.pop %v3832
    %v3834 = vmul.f32 1.0, %v3833
    %v3835 = vsel %vm608, %v3834, 0.0
    %3836 = vrot.lane.b32.xlu0 %v3835, 16
    %v3837 = vpop.permute.xlu0 %3836
    %v3838 = vadd.f32 %v3835, %v3837
    %3839 = vrot.lane.b32.xlu0 %v3838, 32
    %v3840 = vpop.permute.xlu0 %3839
    %v3841 = vadd.f32 %v3838, %v3840
    %3842 = vrot.lane.b32.xlu0 %v3841, 64
    %v3843 = vpop.permute.xlu0 %3842
    %v3844 = vadd.f32 %v3841, %v3843
    %v3845 = vmul.f32 %v3844, %v2997
    %v3846 = vpack.c.bf16 %v3845, %v3845
    %3847 = vmatprep.subr.bf16.mxu0 %v1970
    %3848 = vmatpush1.bf16.msra.mxu0 %v1969
    %3849 = vmatprep.subr.bf16.mxu0 %v1974
    %3850 = vmatpush1.bf16.msra.mxu0 %v1973
    %3851 = vmatprep.subr.bf16.mxu0 %v1978
    %3852 = vmatpush1.bf16.msra.mxu0 %v1977
    %3853 = vmatprep.subr.bf16.mxu0 %v1982
    %3854 = vmatpush1.bf16.msra.mxu0 %v1981
    %3855 = vmatprep.subr.bf16.mxu0 %v1986
    %3856 = vmatpush1.bf16.msra.mxu0 %v1985
    %3857 = vmatprep.subr.bf16.mxu0 %v1990
    %3858 = vmatpush1.bf16.msra.mxu0 %v1989
    %3859 = vmatprep.subr.bf16.mxu0 %v1994
    %3860 = vmatpush1.bf16.msra.mxu0 %v1993
    %3861 = vmatprep.subr.bf16.mxu0 %v1998
    %3862 = vmatpush1.bf16.msra.mxu0 %v1997
    %3863 = vmatprep.subr.bf16.mxu0 0
    %3864 = vmatpush1.bf16.msra.mxu0 0
    %3865 = vmatprep.subr.bf16.mxu0 0
    %3866 = vmatpush1.bf16.msra.mxu0 0
    %3867 = vmatprep.subr.bf16.mxu0 0
    %3868 = vmatpush1.bf16.msra.mxu0 0
    %3869 = vmatprep.subr.bf16.mxu0 0
    %3870 = vmatpush1.bf16.msra.mxu0 0
    %3871 = vmatprep.subr.bf16.mxu0 0
    %3872 = vmatpush1.bf16.msra.mxu0 0
    %3873 = vmatprep.subr.bf16.mxu0 0
    %3874 = vmatpush1.bf16.msra.mxu0 0
    %3875 = vmatprep.subr.bf16.mxu0 0
    %3876 = vmatpush1.bf16.msra.mxu0 0
    %3877 = vmatprep.subr.bf16.mxu0 0
    %3878 = vmatpush1.bf16.msra.mxu0 0
    %3879 = vmatprep.mubr.bf16.mxu0 0
    %3880 = vmatmul.mubr.bf16.gmra.mrb[0].mxu0 %v3846
    %v3881 = vpop.f32.mrb[0].mxu0
    %v3882 = vadd.f32 0.0, %v3881
    %v3883 = vpop.f32.mrb[0].mxu0
    %v3884 = vadd.f32 0.0, %v3883
    %v3885 = vpop.f32.mrb[0].mxu0
    %v3886 = vpop.f32.mrb[0].mxu0
    %3887 = vdwg.mxu0
    %3888 = vmatprep.subr.bf16.mxu0 %v1972
    %3889 = vmatpush1.bf16.msra.mxu0 %v1971
    %3890 = vmatprep.subr.bf16.mxu0 %v1976
    %3891 = vmatpush1.bf16.msra.mxu0 %v1975
    %3892 = vmatprep.subr.bf16.mxu0 %v1980
    %3893 = vmatpush1.bf16.msra.mxu0 %v1979
    %3894 = vmatprep.subr.bf16.mxu0 %v1984
    %3895 = vmatpush1.bf16.msra.mxu0 %v1983
    %3896 = vmatprep.subr.bf16.mxu0 %v1988
    %3897 = vmatpush1.bf16.msra.mxu0 %v1987
    %3898 = vmatprep.subr.bf16.mxu0 %v1992
    %3899 = vmatpush1.bf16.msra.mxu0 %v1991
    %3900 = vmatprep.subr.bf16.mxu0 %v1996
    %3901 = vmatpush1.bf16.msra.mxu0 %v1995
    %3902 = vmatprep.subr.bf16.mxu0 %v2000
    %3903 = vmatpush1.bf16.msra.mxu0 %v1999
    %3904 = vmatprep.subr.bf16.mxu0 0
    %3905 = vmatpush1.bf16.msra.mxu0 0
    %3906 = vmatprep.subr.bf16.mxu0 0
    %3907 = vmatpush1.bf16.msra.mxu0 0
    %3908 = vmatprep.subr.bf16.mxu0 0
    %3909 = vmatpush1.bf16.msra.mxu0 0
    %3910 = vmatprep.subr.bf16.mxu0 0
    %3911 = vmatpush1.bf16.msra.mxu0 0
    %3912 = vmatprep.subr.bf16.mxu0 0
    %3913 = vmatpush1.bf16.msra.mxu0 0
    %3914 = vmatprep.subr.bf16.mxu0 0
    %3915 = vmatpush1.bf16.msra.mxu0 0
    %3916 = vmatprep.subr.bf16.mxu0 0
    %3917 = vmatpush1.bf16.msra.mxu0 0
    %3918 = vmatprep.subr.bf16.mxu0 0
    %3919 = vmatpush1.bf16.msra.mxu0 0
    %3920 = vmatprep.mubr.bf16.mxu0 0
    %3921 = vmatmul.mubr.bf16.gmra.mrb[0].mxu0 %v3846
    %v3922 = vpop.f32.mrb[0].mxu0
    %v3923 = vadd.f32 0.0, %v3922
    %v3924 = vpop.f32.mrb[0].mxu0
    %v3925 = vadd.f32 0.0, %v3924
    %v3926 = vpop.f32.mrb[0].mxu0
    %v3927 = vpop.f32.mrb[0].mxu0
    %3928 = vdwg.mxu0
    %v3929 = vadd.f32 %v3787, %v3882
    %v3930 = vadd.f32 %v3788, %v3884
    %v3931 = vadd.f32 %v3789, %v3923
    %v3932 = vadd.f32 %v3790, %v3925
    %v3934 = vrot.slane %v3846, 1
    %3936 = vmatprep.subr.bf16.mxu0 %v2251
    %3937 = vmatpush1.bf16.msra.mxu0 %v2250
    %3938 = vmatprep.subr.bf16.mxu0 %v2255
    %3939 = vmatpush1.bf16.msra.mxu0 %v2254
    %3940 = vmatprep.subr.bf16.mxu0 %v2259
    %3941 = vmatpush1.bf16.msra.mxu0 %v2258
    %3942 = vmatprep.subr.bf16.mxu0 %v2263
    %3943 = vmatpush1.bf16.msra.mxu0 %v2262
    %3944 = vmatprep.subr.bf16.mxu0 %v2267
    %3945 = vmatpush1.bf16.msra.mxu0 %v2266
    %3946 = vmatprep.subr.bf16.mxu0 %v2271
    %3947 = vmatpush1.bf16.msra.mxu0 %v2270
    %3948 = vmatprep.subr.bf16.mxu0 %v2275
    %3949 = vmatpush1.bf16.msra.mxu0 %v2274
    %3950 = vmatprep.subr.bf16.mxu0 %v2279
    %3951 = vmatpush1.bf16.msra.mxu0 %v2278
    %3952 = vmatprep.subr.bf16.mxu0 0
    %3953 = vmatpush1.bf16.msra.mxu0 0
    %3954 = vmatprep.subr.bf16.mxu0 0
    %3955 = vmatpush1.bf16.msra.mxu0 0
    %3956 = vmatprep.subr.bf16.mxu0 0
    %3957 = vmatpush1.bf16.msra.mxu0 0
    %3958 = vmatprep.subr.bf16.mxu0 0
    %3959 = vmatpush1.bf16.msra.mxu0 0
    %3960 = vmatprep.subr.bf16.mxu0 0
    %3961 = vmatpush1.bf16.msra.mxu0 0
    %3962 = vmatprep.subr.bf16.mxu0 0
    %3963 = vmatpush1.bf16.msra.mxu0 0
    %3964 = vmatprep.subr.bf16.mxu0 0
    %3965 = vmatpush1.bf16.msra.mxu0 0
    %3966 = vmatprep.subr.bf16.mxu0 0
    %3967 = vmatpush1.bf16.msra.mxu0 0
    %3968 = vmatprep.mubr.bf16.mxu0 0
    %3969 = vmatmul.mubr.bf16.gmra.mrb[0].mxu0 %v3934
    %v3970 = vpop.f32.mrb[0].mxu0
    %v3971 = vadd.f32 0.0, %v3970
    %v3972 = vpop.f32.mrb[0].mxu0
    %v3973 = vadd.f32 0.0, %v3972
    %v3974 = vpop.f32.mrb[0].mxu0
    %v3975 = vpop.f32.mrb[0].mxu0
    %3976 = vdwg.mxu0
    %3977 = vmatprep.subr.bf16.mxu0 %v2253
    %3978 = vmatpush1.bf16.msra.mxu0 %v2252
    %3979 = vmatprep.subr.bf16.mxu0 %v2257
    %3980 = vmatpush1.bf16.msra.mxu0 %v2256
    %3981 = vmatprep.subr.bf16.mxu0 %v2261
    %3982 = vmatpush1.bf16.msra.mxu0 %v2260
    %3983 = vmatprep.subr.bf16.mxu0 %v2265
    %3984 = vmatpush1.bf16.msra.mxu0 %v2264
    %3985 = vmatprep.subr.bf16.mxu0 %v2269
    %3986 = vmatpush1.bf16.msra.mxu0 %v2268
    %3987 = vmatprep.subr.bf16.mxu0 %v2273
    %3988 = vmatpush1.bf16.msra.mxu0 %v2272
    %3989 = vmatprep.subr.bf16.mxu0 %v2277
    %3990 = vmatpush1.bf16.msra.mxu0 %v2276
    %3991 = vmatprep.subr.bf16.mxu0 %v2281
    %3992 = vmatpush1.bf16.msra.mxu0 %v2280
    %3993 = vmatprep.subr.bf16.mxu0 0
    %3994 = vmatpush1.bf16.msra.mxu0 0
    %3995 = vmatprep.subr.bf16.mxu0 0
    %3996 = vmatpush1.bf16.msra.mxu0 0
    %3997 = vmatprep.subr.bf16.mxu0 0
    %3998 = vmatpush1.bf16.msra.mxu0 0
    %3999 = vmatprep.subr.bf16.mxu0 0
    %4000 = vmatpush1.bf16.msra.mxu0 0
    %4001 = vmatprep.subr.bf16.mxu0 0
    %4002 = vmatpush1.bf16.msra.mxu0 0
    %4003 = vmatprep.subr.bf16.mxu0 0
    %4004 = vmatpush1.bf16.msra.mxu0 0
    %4005 = vmatprep.subr.bf16.mxu0 0
    %4006 = vmatpush1.bf16.msra.mxu0 0
    %4007 = vmatprep.subr.bf16.mxu0 0
    %4008 = vmatpush1.bf16.msra.mxu0 0
    %4009 = vmatprep.mubr.bf16.mxu0 0
    %4010 = vmatmul.mubr.bf16.gmra.mrb[0].mxu0 %v3934
    %v4011 = vpop.f32.mrb[0].mxu0
    %v4012 = vadd.f32 0.0, %v4011
    %v4013 = vpop.f32.mrb[0].mxu0
    %v4014 = vadd.f32 0.0, %v4013
    %v4015 = vpop.f32.mrb[0].mxu0
    %v4016 = vpop.f32.mrb[0].mxu0
    %4017 = vdwg.mxu0
    %v4018 = vadd.f32 %v3929, %v3971
    %v4019 = vadd.f32 %v3930, %v3973
    %v4020 = vadd.f32 %v3931, %v4012
    %v4021 = vadd.f32 %v3932, %v4014
    %v4022 = vrot.slane %v3846, 2
    %4024 = vmatprep.subr.bf16.mxu0 %v2531
    %4025 = vmatpush1.bf16.msra.mxu0 %v2530
    %4026 = vmatprep.subr.bf16.mxu0 %v2535
    %4027 = vmatpush1.bf16.msra.mxu0 %v2534
    %4028 = vmatprep.subr.bf16.mxu0 %v2539
    %4029 = vmatpush1.bf16.msra.mxu0 %v2538
    %4030 = vmatprep.subr.bf16.mxu0 %v2543
    %4031 = vmatpush1.bf16.msra.mxu0 %v2542
    %4032 = vmatprep.subr.bf16.mxu0 %v2547
    %4033 = vmatpush1.bf16.msra.mxu0 %v2546
    %4034 = vmatprep.subr.bf16.mxu0 %v2551
    %4035 = vmatpush1.bf16.msra.mxu0 %v2550
    %4036 = vmatprep.subr.bf16.mxu0 %v2555
    %4037 = vmatpush1.bf16.msra.mxu0 %v2554
    %4038 = vmatprep.subr.bf16.mxu0 %v2559
    %4039 = vmatpush1.bf16.msra.mxu0 %v2558
    %4040 = vmatprep.subr.bf16.mxu0 0
    %4041 = vmatpush1.bf16.msra.mxu0 0
    %4042 = vmatprep.subr.bf16.mxu0 0
    %4043 = vmatpush1.bf16.msra.mxu0 0
    %4044 = vmatprep.subr.bf16.mxu0 0
    %4045 = vmatpush1.bf16.msra.mxu0 0
    %4046 = vmatprep.subr.bf16.mxu0 0
    %4047 = vmatpush1.bf16.msra.mxu0 0
    %4048 = vmatprep.subr.bf16.mxu0 0
    %4049 = vmatpush1.bf16.msra.mxu0 0
    %4050 = vmatprep.subr.bf16.mxu0 0
    %4051 = vmatpush1.bf16.msra.mxu0 0
    %4052 = vmatprep.subr.bf16.mxu0 0
    %4053 = vmatpush1.bf16.msra.mxu0 0
    %4054 = vmatprep.subr.bf16.mxu0 0
    %4055 = vmatpush1.bf16.msra.mxu0 0
    %4056 = vmatprep.mubr.bf16.mxu0 0
    %4057 = vmatmul.mubr.bf16.gmra.mrb[0].mxu0 %v4022
    %v4058 = vpop.f32.mrb[0].mxu0
    %v4059 = vadd.f32 0.0, %v4058
    %v4060 = vpop.f32.mrb[0].mxu0
    %v4061 = vadd.f32 0.0, %v4060
    %v4062 = vpop.f32.mrb[0].mxu0
    %v4063 = vpop.f32.mrb[0].mxu0
    %4064 = vdwg.mxu0
    %4065 = vmatprep.subr.bf16.mxu0 %v2533
    %4066 = vmatpush1.bf16.msra.mxu0 %v2532
    %4067 = vmatprep.subr.bf16.mxu0 %v2537
    %4068 = vmatpush1.bf16.msra.mxu0 %v2536
    %4069 = vmatprep.subr.bf16.mxu0 %v2541
    %4070 = vmatpush1.bf16.msra.mxu0 %v2540
    %4071 = vmatprep.subr.bf16.mxu0 %v2545
    %4072 = vmatpush1.bf16.msra.mxu0 %v2544
    %4073 = vmatprep.subr.bf16.mxu0 %v2549
    %4074 = vmatpush1.bf16.msra.mxu0 %v2548
    %4075 = vmatprep.subr.bf16.mxu0 %v2553
    %4076 = vmatpush1.bf16.msra.mxu0 %v2552
    %4077 = vmatprep.subr.bf16.mxu0 %v2557
    %4078 = vmatpush1.bf16.msra.mxu0 %v2556
    %4079 = vmatprep.subr.bf16.mxu0 %v2561
    %4080 = vmatpush1.bf16.msra.mxu0 %v2560
    %4081 = vmatprep.subr.bf16.mxu0 0
    %4082 = vmatpush1.bf16.msra.mxu0 0
    %4083 = vmatprep.subr.bf16.mxu0 0
    %4084 = vmatpush1.bf16.msra.mxu0 0
    %4085 = vmatprep.subr.bf16.mxu0 0
    %4086 = vmatpush1.bf16.msra.mxu0 0
    %4087 = vmatprep.subr.bf16.mxu0 0
    %4088 = vmatpush1.bf16.msra.mxu0 0
    %4089 = vmatprep.subr.bf16.mxu0 0
    %4090 = vmatpush1.bf16.msra.mxu0 0
    %4091 = vmatprep.subr.bf16.mxu0 0
    %4092 = vmatpush1.bf16.msra.mxu0 0
    %4093 = vmatprep.subr.bf16.mxu0 0
    %4094 = vmatpush1.bf16.msra.mxu0 0
    %4095 = vmatprep.subr.bf16.mxu0 0
    %4096 = vmatpush1.bf16.msra.mxu0 0
    %4097 = vmatprep.mubr.bf16.mxu0 0
    %4098 = vmatmul.mubr.bf16.gmra.mrb[0].mxu0 %v4022
    %v4099 = vpop.f32.mrb[0].mxu0
    %v4100 = vadd.f32 0.0, %v4099
    %v4101 = vpop.f32.mrb[0].mxu0
    %v4102 = vadd.f32 0.0, %v4101
    %v4103 = vpop.f32.mrb[0].mxu0
    %v4104 = vpop.f32.mrb[0].mxu0
    %4105 = vdwg.mxu0
    %v4106 = vadd.f32 %v4018, %v4059
    %v4107 = vadd.f32 %v4019, %v4061
    %v4108 = vadd.f32 %v4020, %v4100
    %v4109 = vadd.f32 %v4021, %v4102
    %v4110 = vrot.slane %v3846, 3
    %4112 = vmatprep.subr.bf16.mxu0 %v2811
    %4113 = vmatpush1.bf16.msra.mxu0 %v2810
    %4114 = vmatprep.subr.bf16.mxu0 %v2815
    %4115 = vmatpush1.bf16.msra.mxu0 %v2814
    %4116 = vmatprep.subr.bf16.mxu0 %v2819
    %4117 = vmatpush1.bf16.msra.mxu0 %v2818
    %4118 = vmatprep.subr.bf16.mxu0 %v2823
    %4119 = vmatpush1.bf16.msra.mxu0 %v2822
    %4120 = vmatprep.subr.bf16.mxu0 %v2827
    %4121 = vmatpush1.bf16.msra.mxu0 %v2826
    %4122 = vmatprep.subr.bf16.mxu0 %v2831
    %4123 = vmatpush1.bf16.msra.mxu0 %v2830
    %4124 = vmatprep.subr.bf16.mxu0 %v2835
    %4125 = vmatpush1.bf16.msra.mxu0 %v2834
    %4126 = vmatprep.subr.bf16.mxu0 %v2839
    %4127 = vmatpush1.bf16.msra.mxu0 %v2838
    %4128 = vmatprep.subr.bf16.mxu0 0
    %4129 = vmatpush1.bf16.msra.mxu0 0
    %4130 = vmatprep.subr.bf16.mxu0 0
    %4131 = vmatpush1.bf16.msra.mxu0 0
    %4132 = vmatprep.subr.bf16.mxu0 0
    %4133 = vmatpush1.bf16.msra.mxu0 0
    %4134 = vmatprep.subr.bf16.mxu0 0
    %4135 = vmatpush1.bf16.msra.mxu0 0
    %4136 = vmatprep.subr.bf16.mxu0 0
    %4137 = vmatpush1.bf16.msra.mxu0 0
    %4138 = vmatprep.subr.bf16.mxu0 0
    %4139 = vmatpush1.bf16.msra.mxu0 0
    %4140 = vmatprep.subr.bf16.mxu0 0
    %4141 = vmatpush1.bf16.msra.mxu0 0
    %4142 = vmatprep.subr.bf16.mxu0 0
    %4143 = vmatpush1.bf16.msra.mxu0 0
    %4144 = vmatprep.mubr.bf16.mxu0 0
    %4145 = vmatmul.mubr.bf16.gmra.mrb[0].mxu0 %v4110
    %v4146 = vpop.f32.mrb[0].mxu0
    %v4147 = vadd.f32 0.0, %v4146
    %v4148 = vpop.f32.mrb[0].mxu0
    %v4149 = vadd.f32 0.0, %v4148
    %v4150 = vpop.f32.mrb[0].mxu0
    %v4151 = vpop.f32.mrb[0].mxu0
    %4152 = vdwg.mxu0
    %4153 = vmatprep.subr.bf16.mxu0 %v2813
    %4154 = vmatpush1.bf16.msra.mxu0 %v2812
    %4155 = vmatprep.subr.bf16.mxu0 %v2817
    %4156 = vmatpush1.bf16.msra.mxu0 %v2816
    %4157 = vmatprep.subr.bf16.mxu0 %v2821
    %4158 = vmatpush1.bf16.msra.mxu0 %v2820
    %4159 = vmatprep.subr.bf16.mxu0 %v2825
    %4160 = vmatpush1.bf16.msra.mxu0 %v2824
    %4161 = vmatprep.subr.bf16.mxu0 %v2829
    %4162 = vmatpush1.bf16.msra.mxu0 %v2828
    %4163 = vmatprep.subr.bf16.mxu0 %v2833
    %4164 = vmatpush1.bf16.msra.mxu0 %v2832
    %4165 = vmatprep.subr.bf16.mxu0 %v2837
    %4166 = vmatpush1.bf16.msra.mxu0 %v2836
    %4167 = vmatprep.subr.bf16.mxu0 %v2841
    %4168 = vmatpush1.bf16.msra.mxu0 %v2840
    %4169 = vmatprep.subr.bf16.mxu0 0
    %4170 = vmatpush1.bf16.msra.mxu0 0
    %4171 = vmatprep.subr.bf16.mxu0 0
    %4172 = vmatpush1.bf16.msra.mxu0 0
    %4173 = vmatprep.subr.bf16.mxu0 0
    %4174 = vmatpush1.bf16.msra.mxu0 0
    %4175 = vmatprep.subr.bf16.mxu0 0
    %4176 = vmatpush1.bf16.msra.mxu0 0
    %4177 = vmatprep.subr.bf16.mxu0 0
    %4178 = vmatpush1.bf16.msra.mxu0 0
    %4179 = vmatprep.subr.bf16.mxu0 0
    %4180 = vmatpush1.bf16.msra.mxu0 0
    %4181 = vmatprep.subr.bf16.mxu0 0
    %4182 = vmatpush1.bf16.msra.mxu0 0
    %4183 = vmatprep.subr.bf16.mxu0 0
    %4184 = vmatpush1.bf16.msra.mxu0 0
    %4185 = vmatprep.mubr.bf16.mxu0 0
    %4186 = vmatmul.mubr.bf16.gmra.mrb[0].mxu0 %v4110
    %v4187 = vpop.f32.mrb[0].mxu0
    %v4188 = vadd.f32 0.0, %v4187
    %v4189 = vpop.f32.mrb[0].mxu0
    %v4190 = vadd.f32 0.0, %v4189
    %v4191 = vpop.f32.mrb[0].mxu0
    %v4192 = vpop.f32.mrb[0].mxu0
    %4193 = vdwg.mxu0
    %v4194 = vadd.f32 %v4106, %v4147
    %v4195 = vadd.f32 %v4107, %v4149
    %v4196 = vadd.f32 %v4108, %v4188
    %v4197 = vadd.f32 %v4109, %v4190
    %v4198 = vadd.f32 %v4194, %v2965
    %v4199 = vadd.f32 %v4195, %v2969
    %v4200 = vadd.f32 %v4196, %v2973
    %v4201 = vadd.f32 %v4197, %v2977
    %v4206 = vcombine.low %v4198, %v4199
    %v4207 = vcombine.low %v4200, %v4201
    %v4209 = vunpack.c.l.s4 1983009808
    %v4210 = vunpack.c.0.s8 %v4209
    %v4211 = vlaneseq
    %v4212 = vshrl.u32 %v4211, 7
    %v4213 = vsub.s32 %v4210, %v4212
    %v4214 = vrot.slane %v4206, %v4213
    %v4216 = vunpack.c.l.s4 1983009808
    %v4217 = vunpack.c.0.s8 %v4216
    %v4218 = vlaneseq
    %v4219 = vshrl.u32 %v4218, 7
    %v4220 = vsub.s32 %v4217, %v4219
    %v4221 = vrot.slane %v4207, %v4220
    %v4222 = vcombine.low %v4214, %v4221
    %4224 = vst [vmem:[%s7] sm:$0xff] %v4222
    // Predicated region
    $region50: #{_forward.1} parent=1 // pred_check
      _
    $region51: #{_forward.1} parent=1 // pred_check_branch
      %4226 = sbr.rel (0) target = $region53
    $region52: #{_forward.1} parent=1 // pred_region
      _
    $region53: #{_forward.1} parent=1 // pred_fallthru
      _
    // Predicated region
    $region54: #{_forward.1} parent=1 // pred_check
      _
    $region55: #{_forward.1} parent=1 // pred_check_branch
      %4228 = sbr.rel (0) target = $region57
    $region56: #{_forward.1} parent=1 // pred_region
      _
    $region57: #{_forward.1} parent=1 // pred_fallthru
      _
    %4229 = vsyncpa [#allocation3], 1
    %4230 = vsyncpa [#allocation4], 1
    %4231 = vsyncpa [#allocation6], 1
    %4232 = vsyncpa [#allocation9], 1

</llo_original>
